<compile_context>
chip_gen: v5e
topology: v5e:2x2
jax: 0.10.0
libtpu: 0.0.40
codegen_flags: <defaults>
</compile_context>

<pallas_src>
import functools

import jax
import jax.numpy as jnp
from jax import lax
from jax.experimental import pallas as pl
from jax.experimental.pallas import tpu as pltpu


def _round_up(x, m):
    return (x + m - 1) // m * m


def _largest_divisor_leq(n, cap):
    cap = max(1, min(n, cap))
    for d in range(cap, 0, -1):
        if n % d == 0:
            return d
    return 1


# ---------------------------------------------------------------------------
# Fused kernel: one time-chunk per grid step; all LSTM layers + fc inside.
# Gate order along the 4*Hp axis is [i, f, o, g] (reordered at prep time).
# ---------------------------------------------------------------------------
def _fused_rnn_kernel(tok_ref, emb_ref, w_ih_ref, w_hh_ref, b_ref,
                      w_fc_ref, b_fc_ref,
                      out_ref, h_ref, c_ref,
                      x_slab, g_slab):
    Nc, Hp = x_slab.shape                     # Nc = Tc * Bp
    L, Bp, _ = h_ref.shape
    Tc = Nc // Bp
    Vp = emb_ref.shape[0]

    # (h, c) live in the resident output blocks (constant index_map) and are
    # carried across time-chunks; zero them on the first chunk only.
    @pl.when(pl.program_id(0) == 0)
    def _():
        h_ref[...] = jnp.zeros_like(h_ref)
        c_ref[...] = jnp.zeros_like(c_ref)

    # In-kernel embedding gather as an exact one-hot GEMM (MXU friendly).
    tok = tok_ref[...]                                          # (Nc, 1) int32
    one_hot = (lax.broadcasted_iota(jnp.int32, (Nc, Vp), 1) == tok
               ).astype(jnp.float32)                            # (Nc, Vp)
    x_slab[...] = jnp.dot(one_hot, emb_ref[...],
                          preferred_element_type=jnp.float32)   # (Nc, Hp)

    for l in range(L):                       # static, unrolled over layers
        w_hh = w_hh_ref[l]                   # (Hp, 4Hp), read once per layer

        # Whole-chunk input projection as one big GEMM, bias folded in.
        g_slab[...] = (jnp.dot(x_slab[...], w_ih_ref[l],
                               preferred_element_type=jnp.float32)
                       + b_ref[l])                              # (Nc, 4Hp)

        def step(t, carry):
            h_prev, c_prev = carry
            r = pl.multiple_of(t * Bp, Bp)                      # aligned rows
            gates = (g_slab[pl.ds(r, Bp), :]
                     + jnp.dot(h_prev, w_hh,
                               preferred_element_type=jnp.float32))  # (Bp,4Hp)
            # [i | f | o] with one wide sigmoid, then tanh(g): 3 EUP pushes
            # (incl. tanh(c)) instead of 5 narrow ones.
            sig = jax.nn.sigmoid(gates[:, :3 * Hp])
            i_g = sig[:, 0 * Hp:1 * Hp]
            f_g = sig[:, 1 * Hp:2 * Hp]
            o_g = sig[:, 2 * Hp:3 * Hp]
            g_g = jnp.tanh(gates[:, 3 * Hp:])
            c_new = f_g * c_prev + i_g * g_g
            h_new = o_g * jnp.tanh(c_new)
            x_slab[pl.ds(r, Bp), :] = h_new          # feeds next layer / fc
            return (h_new, c_new)

        unroll = Tc if Tc <= 8 else 4                # bounded unroll
        hT, cT = lax.fori_loop(0, Tc, step, (h_ref[l], c_ref[l]),
                               unroll=unroll)
        h_ref[l] = hT
        c_ref[l] = cT

    # Final Linear over the chunk -> lane-dense (Nc, Vp) logits block.
    out_ref[...] = (jnp.dot(x_slab[...], w_fc_ref[...],
                            preferred_element_type=jnp.float32)
                    + b_fc_ref[...])


# ---------------------------------------------------------------------------
# One-time parameter preparation: gate reorder [i,f,o,g], pad H->Hp, V->Vp,
# transpose, stack layers, combine biases.
# ---------------------------------------------------------------------------
def _reorder_pad_gate_rows(w, H, Hp):
    """(4H, In) torch order [i,f,g,o] -> (4Hp, In) kernel order [i,f,o,g]."""
    i_b, f_b, g_b, o_b = w[0:H], w[H:2 * H], w[2 * H:3 * H], w[3 * H:4 * H]
    out = jnp.zeros((4 * Hp, w.shape[1]), jnp.float32)
    for k, blk in enumerate((i_b, f_b, o_b, g_b)):
        out = out.at[k * Hp:k * Hp + H, :].set(blk)
    return out


def _reorder_pad_gate_vec(b, H, Hp):
    i_b, f_b, g_b, o_b = b[0:H], b[H:2 * H], b[2 * H:3 * H], b[3 * H:4 * H]
    out = jnp.zeros((4 * Hp,), jnp.float32)
    for k, blk in enumerate((i_b, f_b, o_b, g_b)):
        out = out.at[k * Hp:k * Hp + H].set(blk)
    return out.reshape(1, 4 * Hp)


def prepare_params(params):
    H = params["w_hh"][0].shape[1]
    V = params["w_fc"].shape[0]
    L = len(params["w_ih"])
    Hp = _round_up(H, 128)          # lane-dense hidden (exact: zero padding)
    Vp = _round_up(V, 128)          # lane-dense vocab

    w_ih, w_hh, b = [], [], []
    for l in range(L):
        wi = _reorder_pad_gate_rows(params["w_ih"][l].astype(jnp.float32), H, Hp)
        wh = _reorder_pad_gate_rows(params["w_hh"][l].astype(jnp.float32), H, Hp)
        # pad the contraction (input) dim to Hp, then transpose to (Hp, 4Hp)
        wi = jnp.zeros((4 * Hp, Hp), jnp.float32).at[:, :wi.shape[1]].set(wi).T
        wh = jnp.zeros((4 * Hp, Hp), jnp.float32).at[:, :wh.shape[1]].set(wh).T
        w_ih.append(wi)
        w_hh.append(wh)
        b.append(_reorder_pad_gate_vec(
            (params["b_ih"][l] + params["b_hh"][l]).astype(jnp.float32), H, Hp))

    emb = jnp.zeros((Vp, Hp), jnp.float32).at[:V, :H].set(
        params["embedding"].astype(jnp.float32))
    w_fc = jnp.zeros((Hp, Vp), jnp.float32).at[:H, :V].set(
        params["w_fc"].astype(jnp.float32).T)
    b_fc = jnp.zeros((1, Vp), jnp.float32).at[:, :V].set(
        params["b_fc"].astype(jnp.float32))

    return {"embedding": emb,
            "w_ih": jnp.stack(w_ih),      # (L, Hp, 4Hp)
            "w_hh": jnp.stack(w_hh),      # (L, Hp, 4Hp)
            "b": jnp.stack(b),            # (L, 1, 4Hp)
            "w_fc": w_fc,                 # (Hp, Vp)
            "b_fc": b_fc}                 # (1, Vp)


# ---------------------------------------------------------------------------
# Full forward pass (mirrors PasswordRNN.forward with hidden=None)
# ---------------------------------------------------------------------------
@functools.partial(jax.jit, static_argnames=("hidden_size", "vocab_size"))
def password_rnn_forward(tokens, prep, *, hidden_size, vocab_size):
    H, V = hidden_size, vocab_size
    B, T = tokens.shape
    L, Hp, _ = prep["w_ih"].shape
    Vp = prep["w_fc"].shape[1]
    Bp = _round_up(B, 8)                       # sublane-aligned batch

    # Time-chunk size: largest divisor of T with ~<=1024 rows per chunk.
    Tc = _largest_divisor_leq(T, max(1, 1024 // Bp))
    n_chunks = T // Tc
    Nc = Tc * Bp

    # Tokens, time-major, batch padded (pad with token 0; rows sliced off).
    tok_tm = jnp.transpose(tokens.astype(jnp.int32), (1, 0))     # (T, B)
    if Bp != B:
        tok_tm = jnp.pad(tok_tm, ((0, 0), (0, Bp - B)))
    tok2d = tok_tm.reshape(T * Bp, 1)

    # VMEM budget from the actual resident footprint (x2 for double buffers).
    f32 = 4
    resident = (
        2 * (Nc * 1 * 4                              # token chunk
             + Vp * Hp * f32                         # embedding table
             + 2 * L * Hp * 4 * Hp * f32             # w_ih + w_hh stacks
             + L * 4 * Hp * f32                      # biases
             + Hp * Vp * f32 + Vp * f32              # fc weights + bias
             + Nc * Vp * f32                         # logits chunk (out)
             + 2 * L * Bp * Hp * f32)                # h_n / c_n (out, resident)
        + Nc * Hp * f32 + Nc * 4 * Hp * f32)         # x_slab + g_slab scratch
    vmem_limit = min(max(int(resident * 1.5) + (2 << 20), 8 << 20), 64 << 20)

    # NOTE: weight BlockSpecs use a constant index_map (loaded once, not
    # re-DMA'd per chunk); default double-buffering on them is accepted here.
    grid_spec = pltpu.PrefetchScalarGridSpec(
        num_scalar_prefetch=0,
        grid=(n_chunks,),
        in_specs=[
            pl.BlockSpec((Nc, 1), lambda t: (t, 0)),                 # tokens
            pl.BlockSpec((Vp, Hp), lambda t: (0, 0)),                # emb
            pl.BlockSpec((L, Hp, 4 * Hp), lambda t: (0, 0, 0)),      # w_ih
            pl.BlockSpec((L, Hp, 4 * Hp), lambda t: (0, 0, 0)),      # w_hh
            pl.BlockSpec((L, 1, 4 * Hp), lambda t: (0, 0, 0)),       # bias
            pl.BlockSpec((Hp, Vp), lambda t: (0, 0)),                # w_fc
            pl.BlockSpec((1, Vp), lambda t: (0, 0)),                 # b_fc
        ],
        out_specs=(
            pl.BlockSpec((Nc, Vp), lambda t: (t, 0)),                # logits
            pl.BlockSpec((L, Bp, Hp), lambda t: (0, 0, 0)),          # h_n
            pl.BlockSpec((L, Bp, Hp), lambda t: (0, 0, 0)),          # c_n
        ),
        scratch_shapes=[
            pltpu.VMEM((Nc, Hp), jnp.float32),          # activation chunk slab
            pltpu.VMEM((Nc, 4 * Hp), jnp.float32),      # gate chunk slab
        ],
    )

    out2d, hT, cT = pl.pallas_call(
        _fused_rnn_kernel,
        out_shape=(
            jax.ShapeDtypeStruct((T * Bp, Vp), jnp.float32),
            jax.ShapeDtypeStruct((L, Bp, Hp), jnp.float32),
            jax.ShapeDtypeStruct((L, Bp, Hp), jnp.float32),
        ),
        grid_spec=grid_spec,
        compiler_params=pltpu.CompilerParams(
            dimension_semantics=("arbitrary",),        # (h, c) carried in time
            vmem_limit_bytes=vmem_limit,
        ),
    )(tok2d, prep["embedding"], prep["w_ih"], prep["w_hh"], prep["b"],
      prep["w_fc"], prep["b_fc"])

    out = jnp.transpose(out2d.reshape(T, Bp, Vp)[:, :B, :V], (1, 0, 2))
    hidden = (hT[:, :B, :H], cT[:, :B, :H])
    return out, hidden


# ---------------------------------------------------------------------------
# Pure-JAX reference (same math, torch gate order) for a correctness check.
# ---------------------------------------------------------------------------
def ref_forward(tokens, params, num_layers):
    x = jnp.take(params["embedding"], tokens, axis=0)     # (B, T, H)
    B, T, H = x.shape
    h_finals, c_finals = [], []
    for layer in range(num_layers):
        W_ih = params["w_ih"][layer]
        W_hh = params["w_hh"][layer]
        b = params["b_ih"][layer] + params["b_hh"][layer]

        def step(carry, x_t):
            h, c = carry
            gates = x_t @ W_ih.T + h @ W_hh.T + b
            i, f, g, o = jnp.split(gates, 4, axis=-1)
            i = jax.nn.sigmoid(i); f = jax.nn.sigmoid(f)
            g = jnp.tanh(g); o = jax.nn.sigmoid(o)
            c = f * c + i * g
            h = o * jnp.tanh(c)
            return (h, c), h

        h0 = jnp.zeros((B, H), jnp.float32)
        c0 = jnp.zeros((B, H), jnp.float32)
        (hT, cT), ys = lax.scan(step, (h0, c0), jnp.transpose(x, (1, 0, 2)))
        x = jnp.transpose(ys, (1, 0, 2))
        h_finals.append(hT); c_finals.append(cT)
    out = x @ params["w_fc"].T + params["b_fc"]
    return out, (jnp.stack(h_finals), jnp.stack(c_finals))


def init_params(key, vocab_size, hidden_size, num_layers):
    """Deterministic PyTorch-style init (uniform(-1/sqrt(H), 1/sqrt(H)))."""
    H, V = hidden_size, vocab_size
    k = 1.0 / jnp.sqrt(jnp.float32(H))
    keys = jax.random.split(key, 3 + 4 * num_layers)
    params = {}
    params["embedding"] = jax.random.normal(keys[0], (V, H), jnp.float32)
    w_ih, w_hh, b_ih, b_hh = [], [], [], []
    for layer in range(num_layers):
        in_size = H  # embedding dim == hidden_size, per the module
        kk = keys[3 + 4 * layer: 3 + 4 * (layer + 1)]
        w_ih.append(jax.random.uniform(kk[0], (4 * H, in_size), jnp.float32, -k, k))
        w_hh.append(jax.random.uniform(kk[1], (4 * H, H), jnp.float32, -k, k))
        b_ih.append(jax.random.uniform(kk[2], (4 * H,), jnp.float32, -k, k))
        b_hh.append(jax.random.uniform(kk[3], (4 * H,), jnp.float32, -k, k))
    params["w_ih"] = w_ih
    params["w_hh"] = w_hh
    params["b_ih"] = b_ih
    params["b_hh"] = b_hh
    params["w_fc"] = jax.random.uniform(keys[1], (V, H), jnp.float32, -k, k)
    params["b_fc"] = jax.random.uniform(keys[2], (V,), jnp.float32, -k, k)
    return params


if __name__ == "__main__":
    vocab_size = 32
    hidden_size = 32
    num_layers = 2
    batch, seq = 2, 8

    key = jax.random.PRNGKey(0)
    pkey, tkey = jax.random.split(key)
    params = init_params(pkey, vocab_size, hidden_size, num_layers)
    tokens = jax.random.randint(tkey, (batch, seq), 0, vocab_size, jnp.int32)

    prep = prepare_params(params)   # one-time weight reorder / pad / stack

    out, (h_n, c_n) = password_rnn_forward(
        tokens, prep, hidden_size=hidden_size, vocab_size=vocab_size)
    out = jax.block_until_ready(out)
    h_n = jax.block_until_ready(h_n)
    c_n = jax.block_until_ready(c_n)

    ref_out, (ref_h, ref_c) = ref_forward(tokens, params, num_layers)

    assert out.shape == (batch, seq, vocab_size)
    assert h_n.shape == (num_layers, batch, hidden_size)
    assert c_n.shape == (num_layers, batch, hidden_size)
    assert jnp.allclose(out, ref_out, atol=1e-4, rtol=1e-4)
    assert jnp.allclose(h_n, ref_h, atol=1e-4, rtol=1e-4)
    assert jnp.allclose(c_n, ref_c, atol=1e-4, rtol=1e-4)

    print("KERNEL_OK")
</pallas_src>

<mosaic_0001>
module attributes {stable_mosaic.version = 11 : i64} {
  func.func @_fused_rnn_kernel(%arg0: i32, %arg1: memref<64x1xi32, #tpu.memory_space<vmem>>, %arg2: memref<128x128xf32, #tpu.memory_space<vmem>>, %arg3: memref<2x128x512xf32, #tpu.memory_space<vmem>>, %arg4: memref<2x128x512xf32, #tpu.memory_space<vmem>>, %arg5: memref<2x1x512xf32, #tpu.memory_space<vmem>>, %arg6: memref<128x128xf32, #tpu.memory_space<vmem>>, %arg7: memref<1x128xf32, #tpu.memory_space<vmem>>, %arg8: memref<64x128xf32, #tpu.memory_space<vmem>>, %arg9: memref<2x8x128xf32, #tpu.memory_space<vmem>>, %arg10: memref<2x8x128xf32, #tpu.memory_space<vmem>>, %arg11: memref<64x128xf32, #tpu.memory_space<vmem>>, %arg12: memref<64x512xf32, #tpu.memory_space<vmem>>) attributes {dimension_semantics = [#tpu.dimension_semantics<arbitrary>], iteration_bounds = array<i64: 1>, scalar_prefetch = 0 : i64, scratch_operands = 2 : i64, tpu.core_type = #tpu.core_type<tc>, window_params = [{transform_indices = @transform_0, window_bounds = array<i64: 64, 1>}, {pipeline_mode = #tpu.pipeline_mode<synchronous>, transform_indices = @transform_1, window_bounds = array<i64: 128, 128>}, {pipeline_mode = #tpu.pipeline_mode<synchronous>, transform_indices = @transform_2, window_bounds = array<i64: 2, 128, 512>}, {pipeline_mode = #tpu.pipeline_mode<synchronous>, transform_indices = @transform_3, window_bounds = array<i64: 2, 128, 512>}, {pipeline_mode = #tpu.pipeline_mode<synchronous>, transform_indices = @transform_4, window_bounds = array<i64: 2, 1, 512>}, {pipeline_mode = #tpu.pipeline_mode<synchronous>, transform_indices = @transform_5, window_bounds = array<i64: 128, 128>}, {pipeline_mode = #tpu.pipeline_mode<synchronous>, transform_indices = @transform_6, window_bounds = array<i64: 1, 128>}, {transform_indices = @transform_7, window_bounds = array<i64: 64, 128>}, {pipeline_mode = #tpu.pipeline_mode<synchronous>, transform_indices = @transform_8, window_bounds = array<i64: 2, 8, 128>}, {pipeline_mode = #tpu.pipeline_mode<synchronous>, transform_indices = @transform_9, window_bounds = array<i64: 2, 8, 128>}]} {
    %c0_i32 = arith.constant 0 : i32
    %0 = arith.cmpi eq, %arg0, %c0_i32 : i32
    %1 = arith.extui %0 : i1 to i32
    %c0_i32_0 = arith.constant 0 : i32
    %2 = arith.cmpi ne, %1, %c0_i32_0 : i32
    scf.if %2 {
      %cst_156 = arith.constant 0.000000e+00 : f32
      %445 = vector.broadcast %cst_156 : f32 to vector<2x8x128xf32>
      %c0_157 = arith.constant 0 : index
      %c0_158 = arith.constant 0 : index
      %c0_159 = arith.constant 0 : index
      %446 = vector.load %arg9[%c0_157, %c0_158, %c0_159] : memref<2x8x128xf32, #tpu.memory_space<vmem>>, vector<2x8x128xf32>
      tpu.vector_store %arg9[%c0_157, %c0_158, %c0_159], %445 {strides = array<i32>} : memref<2x8x128xf32, #tpu.memory_space<vmem>>, vector<2x8x128xf32>,
      %cst_160 = arith.constant 0.000000e+00 : f32
      %447 = vector.broadcast %cst_160 : f32 to vector<2x8x128xf32>
      %c0_161 = arith.constant 0 : index
      %c0_162 = arith.constant 0 : index
      %c0_163 = arith.constant 0 : index
      %448 = vector.load %arg10[%c0_161, %c0_162, %c0_163] : memref<2x8x128xf32, #tpu.memory_space<vmem>>, vector<2x8x128xf32>
      tpu.vector_store %arg10[%c0_161, %c0_162, %c0_163], %447 {strides = array<i32>} : memref<2x8x128xf32, #tpu.memory_space<vmem>>, vector<2x8x128xf32>,
    } else {
    }
    %c0 = arith.constant 0 : index
    %c0_1 = arith.constant 0 : index
    %3 = vector.load %arg1[%c0, %c0_1] : memref<64x1xi32, #tpu.memory_space<vmem>>, vector<64x1xi32>
    %4 = tpu.iota {dimensions = array<i32: 1>} : vector<64x128xi32>
    %5 = vector.broadcast %3 : vector<64x1xi32> to vector<64x128xi32>
    %6 = arith.cmpi eq, %4, %5 : vector<64x128xi32>
    %7 = arith.extui %6 : vector<64x128xi1> to vector<64x128xi32>
    %8 = arith.sitofp %7 : vector<64x128xi32> to vector<64x128xf32>
    %c0_2 = arith.constant 0 : index
    %c0_3 = arith.constant 0 : index
    %9 = vector.load %arg2[%c0_2, %c0_3] : memref<128x128xf32, #tpu.memory_space<vmem>>, vector<128x128xf32>
    %cst = arith.constant dense<0.000000e+00> : vector<64x128xf32>
    %10 = tpu.matmul %8, %9, %cst {dimension_numbers = #tpu.dot_dimension_numbers<[1], [0], [0], [1], [0, 0, 1, 1], [], []>} : vector<64x128xf32>, vector<128x128xf32>, vector<64x128xf32> -> vector<64x128xf32>
    %c0_4 = arith.constant 0 : index
    %c0_5 = arith.constant 0 : index
    %11 = vector.load %arg11[%c0_4, %c0_5] : memref<64x128xf32, #tpu.memory_space<vmem>>, vector<64x128xf32>
    tpu.vector_store %arg11[%c0_4, %c0_5], %10 {strides = array<i32>} : memref<64x128xf32, #tpu.memory_space<vmem>>, vector<64x128xf32>,
    %c0_6 = arith.constant 0 : index
    %c0_7 = arith.constant 0 : index
    %c0_8 = arith.constant 0 : index
    %12 = vector.load %arg4[%c0_6, %c0_7, %c0_8] : memref<2x128x512xf32, #tpu.memory_space<vmem>>, vector<1x128x512xf32>
    %13 = vector.shape_cast %12 : vector<1x128x512xf32> to vector<128x512xf32>
    %c0_9 = arith.constant 0 : index
    %c0_10 = arith.constant 0 : index
    %14 = vector.load %arg11[%c0_9, %c0_10] : memref<64x128xf32, #tpu.memory_space<vmem>>, vector<64x128xf32>
    %c0_11 = arith.constant 0 : index
    %c0_12 = arith.constant 0 : index
    %c0_13 = arith.constant 0 : index
    %15 = vector.load %arg3[%c0_11, %c0_12, %c0_13] : memref<2x128x512xf32, #tpu.memory_space<vmem>>, vector<1x128x512xf32>
    %16 = vector.shape_cast %15 : vector<1x128x512xf32> to vector<128x512xf32>
    %cst_14 = arith.constant dense<0.000000e+00> : vector<64x512xf32>
    %17 = tpu.matmul %14, %16, %cst_14 {dimension_numbers = #tpu.dot_dimension_numbers<[1], [0], [0], [1], [0, 0, 1, 1], [], []>} : vector<64x128xf32>, vector<128x512xf32>, vector<64x512xf32> -> vector<64x512xf32>
    %c0_15 = arith.constant 0 : index
    %c0_16 = arith.constant 0 : index
    %c0_17 = arith.constant 0 : index
    %18 = vector.load %arg5[%c0_15, %c0_16, %c0_17] : memref<2x1x512xf32, #tpu.memory_space<vmem>>, vector<1x1x512xf32>
    %19 = vector.shape_cast %18 : vector<1x1x512xf32> to vector<1x512xf32>
    %20 = vector.broadcast %19 : vector<1x512xf32> to vector<64x512xf32>
    %21 = arith.addf %17, %20 : vector<64x512xf32>
    %c0_18 = arith.constant 0 : index
    %c0_19 = arith.constant 0 : index
    %22 = vector.load %arg12[%c0_18, %c0_19] : memref<64x512xf32, #tpu.memory_space<vmem>>, vector<64x512xf32>
    tpu.vector_store %arg12[%c0_18, %c0_19], %21 {strides = array<i32>} : memref<64x512xf32, #tpu.memory_space<vmem>>, vector<64x512xf32>,
    %c0_20 = arith.constant 0 : index
    %c0_21 = arith.constant 0 : index
    %c0_22 = arith.constant 0 : index
    %23 = vector.load %arg9[%c0_20, %c0_21, %c0_22] : memref<2x8x128xf32, #tpu.memory_space<vmem>>, vector<1x8x128xf32>
    %24 = vector.shape_cast %23 : vector<1x8x128xf32> to vector<8x128xf32>
    %c0_23 = arith.constant 0 : index
    %c0_24 = arith.constant 0 : index
    %c0_25 = arith.constant 0 : index
    %25 = vector.load %arg10[%c0_23, %c0_24, %c0_25] : memref<2x8x128xf32, #tpu.memory_space<vmem>>, vector<1x8x128xf32>
    %26 = vector.shape_cast %25 : vector<1x8x128xf32> to vector<8x128xf32>
    %c0_i32_26 = arith.constant 0 : i32
    %c8_i32 = arith.constant 8 : i32
    %27 = arith.muli %c0_i32_26, %c8_i32 : i32
    %28 = tpu.assume_multiple %27, 8 : i32
    %29 = arith.index_cast %28 : i32 to index
    %c0_27 = arith.constant 0 : index
    %30 = vector.load %arg12[%29, %c0_27] : memref<64x512xf32, #tpu.memory_space<vmem>>, vector<8x512xf32>
    %cst_28 = arith.constant dense<0.000000e+00> : vector<8x512xf32>
    %31 = tpu.matmul %24, %13, %cst_28 {dimension_numbers = #tpu.dot_dimension_numbers<[1], [0], [0], [1], [0, 0, 1, 1], [], []>} : vector<8x128xf32>, vector<128x512xf32>, vector<8x512xf32> -> vector<8x512xf32>
    %32 = arith.addf %30, %31 : vector<8x512xf32>
    %33 = vector.extract_strided_slice %32 {offsets = [0, 0], sizes = [8, 384], strides = [1, 1]} : vector<8x512xf32> to vector<8x384xf32>
    %34 = arith.negf %33 : vector<8x384xf32>
    %35 = math.exp %34 : vector<8x384xf32>
    %cst_29 = arith.constant 1.000000e+00 : f32
    %36 = vector.broadcast %cst_29 : f32 to vector<8x384xf32>
    %37 = arith.addf %36, %35 : vector<8x384xf32>
    %38 = arith.divf %36, %37 : vector<8x384xf32>
    %39 = vector.extract_strided_slice %38 {offsets = [0, 0], sizes = [8, 128], strides = [1, 1]} : vector<8x384xf32> to vector<8x128xf32>
    %40 = vector.extract_strided_slice %38 {offsets = [0, 128], sizes = [8, 128], strides = [1, 1]} : vector<8x384xf32> to vector<8x128xf32>
    %41 = vector.extract_strided_slice %38 {offsets = [0, 256], sizes = [8, 128], strides = [1, 1]} : vector<8x384xf32> to vector<8x128xf32>
    %42 = vector.extract_strided_slice %32 {offsets = [0, 384], sizes = [8, 128], strides = [1, 1]} : vector<8x512xf32> to vector<8x128xf32>
    %43 = math.tanh %42 : vector<8x128xf32>
    %44 = arith.mulf %40, %26 : vector<8x128xf32>
    %45 = arith.mulf %39, %43 : vector<8x128xf32>
    %46 = arith.addf %44, %45 : vector<8x128xf32>
    %47 = math.tanh %46 : vector<8x128xf32>
    %48 = arith.mulf %41, %47 : vector<8x128xf32>
    %49 = arith.index_cast %28 : i32 to index
    %c0_30 = arith.constant 0 : index
    %50 = vector.load %arg11[%49, %c0_30] : memref<64x128xf32, #tpu.memory_space<vmem>>, vector<8x128xf32>
    tpu.vector_store %arg11[%49, %c0_30], %48 {strides = array<i32>} : memref<64x128xf32, #tpu.memory_space<vmem>>, vector<8x128xf32>,
    %c1_i32 = arith.constant 1 : i32
    %c8_i32_31 = arith.constant 8 : i32
    %51 = arith.muli %c1_i32, %c8_i32_31 : i32
    %52 = tpu.assume_multiple %51, 8 : i32
    %53 = arith.index_cast %52 : i32 to index
    %c0_32 = arith.constant 0 : index
    %54 = vector.load %arg12[%53, %c0_32] : memref<64x512xf32, #tpu.memory_space<vmem>>, vector<8x512xf32>
    %cst_33 = arith.constant dense<0.000000e+00> : vector<8x512xf32>
    %55 = tpu.matmul %48, %13, %cst_33 {dimension_numbers = #tpu.dot_dimension_numbers<[1], [0], [0], [1], [0, 0, 1, 1], [], []>} : vector<8x128xf32>, vector<128x512xf32>, vector<8x512xf32> -> vector<8x512xf32>
    %56 = arith.addf %54, %55 : vector<8x512xf32>
    %57 = vector.extract_strided_slice %56 {offsets = [0, 0], sizes = [8, 384], strides = [1, 1]} : vector<8x512xf32> to vector<8x384xf32>
    %58 = arith.negf %57 : vector<8x384xf32>
    %59 = math.exp %58 : vector<8x384xf32>
    %cst_34 = arith.constant 1.000000e+00 : f32
    %60 = vector.broadcast %cst_34 : f32 to vector<8x384xf32>
    %61 = arith.addf %60, %59 : vector<8x384xf32>
    %62 = arith.divf %60, %61 : vector<8x384xf32>
    %63 = vector.extract_strided_slice %62 {offsets = [0, 0], sizes = [8, 128], strides = [1, 1]} : vector<8x384xf32> to vector<8x128xf32>
    %64 = vector.extract_strided_slice %62 {offsets = [0, 128], sizes = [8, 128], strides = [1, 1]} : vector<8x384xf32> to vector<8x128xf32>
    %65 = vector.extract_strided_slice %62 {offsets = [0, 256], sizes = [8, 128], strides = [1, 1]} : vector<8x384xf32> to vector<8x128xf32>
    %66 = vector.extract_strided_slice %56 {offsets = [0, 384], sizes = [8, 128], strides = [1, 1]} : vector<8x512xf32> to vector<8x128xf32>
    %67 = math.tanh %66 : vector<8x128xf32>
    %68 = arith.mulf %64, %46 : vector<8x128xf32>
    %69 = arith.mulf %63, %67 : vector<8x128xf32>
    %70 = arith.addf %68, %69 : vector<8x128xf32>
    %71 = math.tanh %70 : vector<8x128xf32>
    %72 = arith.mulf %65, %71 : vector<8x128xf32>
    %73 = arith.index_cast %52 : i32 to index
    %c0_35 = arith.constant 0 : index
    %74 = vector.load %arg11[%73, %c0_35] : memref<64x128xf32, #tpu.memory_space<vmem>>, vector<8x128xf32>
    tpu.vector_store %arg11[%73, %c0_35], %72 {strides = array<i32>} : memref<64x128xf32, #tpu.memory_space<vmem>>, vector<8x128xf32>,
    %c2_i32 = arith.constant 2 : i32
    %c8_i32_36 = arith.constant 8 : i32
    %75 = arith.muli %c2_i32, %c8_i32_36 : i32
    %76 = tpu.assume_multiple %75, 8 : i32
    %77 = arith.index_cast %76 : i32 to index
    %c0_37 = arith.constant 0 : index
    %78 = vector.load %arg12[%77, %c0_37] : memref<64x512xf32, #tpu.memory_space<vmem>>, vector<8x512xf32>
    %cst_38 = arith.constant dense<0.000000e+00> : vector<8x512xf32>
    %79 = tpu.matmul %72, %13, %cst_38 {dimension_numbers = #tpu.dot_dimension_numbers<[1], [0], [0], [1], [0, 0, 1, 1], [], []>} : vector<8x128xf32>, vector<128x512xf32>, vector<8x512xf32> -> vector<8x512xf32>
    %80 = arith.addf %78, %79 : vector<8x512xf32>
    %81 = vector.extract_strided_slice %80 {offsets = [0, 0], sizes = [8, 384], strides = [1, 1]} : vector<8x512xf32> to vector<8x384xf32>
    %82 = arith.negf %81 : vector<8x384xf32>
    %83 = math.exp %82 : vector<8x384xf32>
    %cst_39 = arith.constant 1.000000e+00 : f32
    %84 = vector.broadcast %cst_39 : f32 to vector<8x384xf32>
    %85 = arith.addf %84, %83 : vector<8x384xf32>
    %86 = arith.divf %84, %85 : vector<8x384xf32>
    %87 = vector.extract_strided_slice %86 {offsets = [0, 0], sizes = [8, 128], strides = [1, 1]} : vector<8x384xf32> to vector<8x128xf32>
    %88 = vector.extract_strided_slice %86 {offsets = [0, 128], sizes = [8, 128], strides = [1, 1]} : vector<8x384xf32> to vector<8x128xf32>
    %89 = vector.extract_strided_slice %86 {offsets = [0, 256], sizes = [8, 128], strides = [1, 1]} : vector<8x384xf32> to vector<8x128xf32>
    %90 = vector.extract_strided_slice %80 {offsets = [0, 384], sizes = [8, 128], strides = [1, 1]} : vector<8x512xf32> to vector<8x128xf32>
    %91 = math.tanh %90 : vector<8x128xf32>
    %92 = arith.mulf %88, %70 : vector<8x128xf32>
    %93 = arith.mulf %87, %91 : vector<8x128xf32>
    %94 = arith.addf %92, %93 : vector<8x128xf32>
    %95 = math.tanh %94 : vector<8x128xf32>
    %96 = arith.mulf %89, %95 : vector<8x128xf32>
    %97 = arith.index_cast %76 : i32 to index
    %c0_40 = arith.constant 0 : index
    %98 = vector.load %arg11[%97, %c0_40] : memref<64x128xf32, #tpu.memory_space<vmem>>, vector<8x128xf32>
    tpu.vector_store %arg11[%97, %c0_40], %96 {strides = array<i32>} : memref<64x128xf32, #tpu.memory_space<vmem>>, vector<8x128xf32>,
    %c3_i32 = arith.constant 3 : i32
    %c8_i32_41 = arith.constant 8 : i32
    %99 = arith.muli %c3_i32, %c8_i32_41 : i32
    %100 = tpu.assume_multiple %99, 8 : i32
    %101 = arith.index_cast %100 : i32 to index
    %c0_42 = arith.constant 0 : index
    %102 = vector.load %arg12[%101, %c0_42] : memref<64x512xf32, #tpu.memory_space<vmem>>, vector<8x512xf32>
    %cst_43 = arith.constant dense<0.000000e+00> : vector<8x512xf32>
    %103 = tpu.matmul %96, %13, %cst_43 {dimension_numbers = #tpu.dot_dimension_numbers<[1], [0], [0], [1], [0, 0, 1, 1], [], []>} : vector<8x128xf32>, vector<128x512xf32>, vector<8x512xf32> -> vector<8x512xf32>
    %104 = arith.addf %102, %103 : vector<8x512xf32>
    %105 = vector.extract_strided_slice %104 {offsets = [0, 0], sizes = [8, 384], strides = [1, 1]} : vector<8x512xf32> to vector<8x384xf32>
    %106 = arith.negf %105 : vector<8x384xf32>
    %107 = math.exp %106 : vector<8x384xf32>
    %cst_44 = arith.constant 1.000000e+00 : f32
    %108 = vector.broadcast %cst_44 : f32 to vector<8x384xf32>
    %109 = arith.addf %108, %107 : vector<8x384xf32>
    %110 = arith.divf %108, %109 : vector<8x384xf32>
    %111 = vector.extract_strided_slice %110 {offsets = [0, 0], sizes = [8, 128], strides = [1, 1]} : vector<8x384xf32> to vector<8x128xf32>
    %112 = vector.extract_strided_slice %110 {offsets = [0, 128], sizes = [8, 128], strides = [1, 1]} : vector<8x384xf32> to vector<8x128xf32>
    %113 = vector.extract_strided_slice %110 {offsets = [0, 256], sizes = [8, 128], strides = [1, 1]} : vector<8x384xf32> to vector<8x128xf32>
    %114 = vector.extract_strided_slice %104 {offsets = [0, 384], sizes = [8, 128], strides = [1, 1]} : vector<8x512xf32> to vector<8x128xf32>
    %115 = math.tanh %114 : vector<8x128xf32>
    %116 = arith.mulf %112, %94 : vector<8x128xf32>
    %117 = arith.mulf %111, %115 : vector<8x128xf32>
    %118 = arith.addf %116, %117 : vector<8x128xf32>
    %119 = math.tanh %118 : vector<8x128xf32>
    %120 = arith.mulf %113, %119 : vector<8x128xf32>
    %121 = arith.index_cast %100 : i32 to index
    %c0_45 = arith.constant 0 : index
    %122 = vector.load %arg11[%121, %c0_45] : memref<64x128xf32, #tpu.memory_space<vmem>>, vector<8x128xf32>
    tpu.vector_store %arg11[%121, %c0_45], %120 {strides = array<i32>} : memref<64x128xf32, #tpu.memory_space<vmem>>, vector<8x128xf32>,
    %c4_i32 = arith.constant 4 : i32
    %c8_i32_46 = arith.constant 8 : i32
    %123 = arith.muli %c4_i32, %c8_i32_46 : i32
    %124 = tpu.assume_multiple %123, 8 : i32
    %125 = arith.index_cast %124 : i32 to index
    %c0_47 = arith.constant 0 : index
    %126 = vector.load %arg12[%125, %c0_47] : memref<64x512xf32, #tpu.memory_space<vmem>>, vector<8x512xf32>
    %cst_48 = arith.constant dense<0.000000e+00> : vector<8x512xf32>
    %127 = tpu.matmul %120, %13, %cst_48 {dimension_numbers = #tpu.dot_dimension_numbers<[1], [0], [0], [1], [0, 0, 1, 1], [], []>} : vector<8x128xf32>, vector<128x512xf32>, vector<8x512xf32> -> vector<8x512xf32>
    %128 = arith.addf %126, %127 : vector<8x512xf32>
    %129 = vector.extract_strided_slice %128 {offsets = [0, 0], sizes = [8, 384], strides = [1, 1]} : vector<8x512xf32> to vector<8x384xf32>
    %130 = arith.negf %129 : vector<8x384xf32>
    %131 = math.exp %130 : vector<8x384xf32>
    %cst_49 = arith.constant 1.000000e+00 : f32
    %132 = vector.broadcast %cst_49 : f32 to vector<8x384xf32>
    %133 = arith.addf %132, %131 : vector<8x384xf32>
    %134 = arith.divf %132, %133 : vector<8x384xf32>
    %135 = vector.extract_strided_slice %134 {offsets = [0, 0], sizes = [8, 128], strides = [1, 1]} : vector<8x384xf32> to vector<8x128xf32>
    %136 = vector.extract_strided_slice %134 {offsets = [0, 128], sizes = [8, 128], strides = [1, 1]} : vector<8x384xf32> to vector<8x128xf32>
    %137 = vector.extract_strided_slice %134 {offsets = [0, 256], sizes = [8, 128], strides = [1, 1]} : vector<8x384xf32> to vector<8x128xf32>
    %138 = vector.extract_strided_slice %128 {offsets = [0, 384], sizes = [8, 128], strides = [1, 1]} : vector<8x512xf32> to vector<8x128xf32>
    %139 = math.tanh %138 : vector<8x128xf32>
    %140 = arith.mulf %136, %118 : vector<8x128xf32>
    %141 = arith.mulf %135, %139 : vector<8x128xf32>
    %142 = arith.addf %140, %141 : vector<8x128xf32>
    %143 = math.tanh %142 : vector<8x128xf32>
    %144 = arith.mulf %137, %143 : vector<8x128xf32>
    %145 = arith.index_cast %124 : i32 to index
    %c0_50 = arith.constant 0 : index
    %146 = vector.load %arg11[%145, %c0_50] : memref<64x128xf32, #tpu.memory_space<vmem>>, vector<8x128xf32>
    tpu.vector_store %arg11[%145, %c0_50], %144 {strides = array<i32>} : memref<64x128xf32, #tpu.memory_space<vmem>>, vector<8x128xf32>,
    %c5_i32 = arith.constant 5 : i32
    %c8_i32_51 = arith.constant 8 : i32
    %147 = arith.muli %c5_i32, %c8_i32_51 : i32
    %148 = tpu.assume_multiple %147, 8 : i32
    %149 = arith.index_cast %148 : i32 to index
    %c0_52 = arith.constant 0 : index
    %150 = vector.load %arg12[%149, %c0_52] : memref<64x512xf32, #tpu.memory_space<vmem>>, vector<8x512xf32>
    %cst_53 = arith.constant dense<0.000000e+00> : vector<8x512xf32>
    %151 = tpu.matmul %144, %13, %cst_53 {dimension_numbers = #tpu.dot_dimension_numbers<[1], [0], [0], [1], [0, 0, 1, 1], [], []>} : vector<8x128xf32>, vector<128x512xf32>, vector<8x512xf32> -> vector<8x512xf32>
    %152 = arith.addf %150, %151 : vector<8x512xf32>
    %153 = vector.extract_strided_slice %152 {offsets = [0, 0], sizes = [8, 384], strides = [1, 1]} : vector<8x512xf32> to vector<8x384xf32>
    %154 = arith.negf %153 : vector<8x384xf32>
    %155 = math.exp %154 : vector<8x384xf32>
    %cst_54 = arith.constant 1.000000e+00 : f32
    %156 = vector.broadcast %cst_54 : f32 to vector<8x384xf32>
    %157 = arith.addf %156, %155 : vector<8x384xf32>
    %158 = arith.divf %156, %157 : vector<8x384xf32>
    %159 = vector.extract_strided_slice %158 {offsets = [0, 0], sizes = [8, 128], strides = [1, 1]} : vector<8x384xf32> to vector<8x128xf32>
    %160 = vector.extract_strided_slice %158 {offsets = [0, 128], sizes = [8, 128], strides = [1, 1]} : vector<8x384xf32> to vector<8x128xf32>
    %161 = vector.extract_strided_slice %158 {offsets = [0, 256], sizes = [8, 128], strides = [1, 1]} : vector<8x384xf32> to vector<8x128xf32>
    %162 = vector.extract_strided_slice %152 {offsets = [0, 384], sizes = [8, 128], strides = [1, 1]} : vector<8x512xf32> to vector<8x128xf32>
    %163 = math.tanh %162 : vector<8x128xf32>
    %164 = arith.mulf %160, %142 : vector<8x128xf32>
    %165 = arith.mulf %159, %163 : vector<8x128xf32>
    %166 = arith.addf %164, %165 : vector<8x128xf32>
    %167 = math.tanh %166 : vector<8x128xf32>
    %168 = arith.mulf %161, %167 : vector<8x128xf32>
    %169 = arith.index_cast %148 : i32 to index
    %c0_55 = arith.constant 0 : index
    %170 = vector.load %arg11[%169, %c0_55] : memref<64x128xf32, #tpu.memory_space<vmem>>, vector<8x128xf32>
    tpu.vector_store %arg11[%169, %c0_55], %168 {strides = array<i32>} : memref<64x128xf32, #tpu.memory_space<vmem>>, vector<8x128xf32>,
    %c6_i32 = arith.constant 6 : i32
    %c8_i32_56 = arith.constant 8 : i32
    %171 = arith.muli %c6_i32, %c8_i32_56 : i32
    %172 = tpu.assume_multiple %171, 8 : i32
    %173 = arith.index_cast %172 : i32 to index
    %c0_57 = arith.constant 0 : index
    %174 = vector.load %arg12[%173, %c0_57] : memref<64x512xf32, #tpu.memory_space<vmem>>, vector<8x512xf32>
    %cst_58 = arith.constant dense<0.000000e+00> : vector<8x512xf32>
    %175 = tpu.matmul %168, %13, %cst_58 {dimension_numbers = #tpu.dot_dimension_numbers<[1], [0], [0], [1], [0, 0, 1, 1], [], []>} : vector<8x128xf32>, vector<128x512xf32>, vector<8x512xf32> -> vector<8x512xf32>
    %176 = arith.addf %174, %175 : vector<8x512xf32>
    %177 = vector.extract_strided_slice %176 {offsets = [0, 0], sizes = [8, 384], strides = [1, 1]} : vector<8x512xf32> to vector<8x384xf32>
    %178 = arith.negf %177 : vector<8x384xf32>
    %179 = math.exp %178 : vector<8x384xf32>
    %cst_59 = arith.constant 1.000000e+00 : f32
    %180 = vector.broadcast %cst_59 : f32 to vector<8x384xf32>
    %181 = arith.addf %180, %179 : vector<8x384xf32>
    %182 = arith.divf %180, %181 : vector<8x384xf32>
    %183 = vector.extract_strided_slice %182 {offsets = [0, 0], sizes = [8, 128], strides = [1, 1]} : vector<8x384xf32> to vector<8x128xf32>
    %184 = vector.extract_strided_slice %182 {offsets = [0, 128], sizes = [8, 128], strides = [1, 1]} : vector<8x384xf32> to vector<8x128xf32>
    %185 = vector.extract_strided_slice %182 {offsets = [0, 256], sizes = [8, 128], strides = [1, 1]} : vector<8x384xf32> to vector<8x128xf32>
    %186 = vector.extract_strided_slice %176 {offsets = [0, 384], sizes = [8, 128], strides = [1, 1]} : vector<8x512xf32> to vector<8x128xf32>
    %187 = math.tanh %186 : vector<8x128xf32>
    %188 = arith.mulf %184, %166 : vector<8x128xf32>
    %189 = arith.mulf %183, %187 : vector<8x128xf32>
    %190 = arith.addf %188, %189 : vector<8x128xf32>
    %191 = math.tanh %190 : vector<8x128xf32>
    %192 = arith.mulf %185, %191 : vector<8x128xf32>
    %193 = arith.index_cast %172 : i32 to index
    %c0_60 = arith.constant 0 : index
    %194 = vector.load %arg11[%193, %c0_60] : memref<64x128xf32, #tpu.memory_space<vmem>>, vector<8x128xf32>
    tpu.vector_store %arg11[%193, %c0_60], %192 {strides = array<i32>} : memref<64x128xf32, #tpu.memory_space<vmem>>, vector<8x128xf32>,
    %c7_i32 = arith.constant 7 : i32
    %c8_i32_61 = arith.constant 8 : i32
    %195 = arith.muli %c7_i32, %c8_i32_61 : i32
    %196 = tpu.assume_multiple %195, 8 : i32
    %197 = arith.index_cast %196 : i32 to index
    %c0_62 = arith.constant 0 : index
    %198 = vector.load %arg12[%197, %c0_62] : memref<64x512xf32, #tpu.memory_space<vmem>>, vector<8x512xf32>
    %cst_63 = arith.constant dense<0.000000e+00> : vector<8x512xf32>
    %199 = tpu.matmul %192, %13, %cst_63 {dimension_numbers = #tpu.dot_dimension_numbers<[1], [0], [0], [1], [0, 0, 1, 1], [], []>} : vector<8x128xf32>, vector<128x512xf32>, vector<8x512xf32> -> vector<8x512xf32>
    %200 = arith.addf %198, %199 : vector<8x512xf32>
    %201 = vector.extract_strided_slice %200 {offsets = [0, 0], sizes = [8, 384], strides = [1, 1]} : vector<8x512xf32> to vector<8x384xf32>
    %202 = arith.negf %201 : vector<8x384xf32>
    %203 = math.exp %202 : vector<8x384xf32>
    %cst_64 = arith.constant 1.000000e+00 : f32
    %204 = vector.broadcast %cst_64 : f32 to vector<8x384xf32>
    %205 = arith.addf %204, %203 : vector<8x384xf32>
    %206 = arith.divf %204, %205 : vector<8x384xf32>
    %207 = vector.extract_strided_slice %206 {offsets = [0, 0], sizes = [8, 128], strides = [1, 1]} : vector<8x384xf32> to vector<8x128xf32>
    %208 = vector.extract_strided_slice %206 {offsets = [0, 128], sizes = [8, 128], strides = [1, 1]} : vector<8x384xf32> to vector<8x128xf32>
    %209 = vector.extract_strided_slice %206 {offsets = [0, 256], sizes = [8, 128], strides = [1, 1]} : vector<8x384xf32> to vector<8x128xf32>
    %210 = vector.extract_strided_slice %200 {offsets = [0, 384], sizes = [8, 128], strides = [1, 1]} : vector<8x512xf32> to vector<8x128xf32>
    %211 = math.tanh %210 : vector<8x128xf32>
    %212 = arith.mulf %208, %190 : vector<8x128xf32>
    %213 = arith.mulf %207, %211 : vector<8x128xf32>
    %214 = arith.addf %212, %213 : vector<8x128xf32>
    %215 = math.tanh %214 : vector<8x128xf32>
    %216 = arith.mulf %209, %215 : vector<8x128xf32>
    %217 = arith.index_cast %196 : i32 to index
    %c0_65 = arith.constant 0 : index
    %218 = vector.load %arg11[%217, %c0_65] : memref<64x128xf32, #tpu.memory_space<vmem>>, vector<8x128xf32>
    tpu.vector_store %arg11[%217, %c0_65], %216 {strides = array<i32>} : memref<64x128xf32, #tpu.memory_space<vmem>>, vector<8x128xf32>,
    %c8_i32_66 = arith.constant 8 : i32
    %c0_67 = arith.constant 0 : index
    %c0_68 = arith.constant 0 : index
    %c0_69 = arith.constant 0 : index
    %219 = vector.load %arg9[%c0_67, %c0_68, %c0_69] : memref<2x8x128xf32, #tpu.memory_space<vmem>>, vector<1x8x128xf32>
    %220 = vector.shape_cast %219 : vector<1x8x128xf32> to vector<8x128xf32>
    %221 = vector.shape_cast %216 : vector<8x128xf32> to vector<1x8x128xf32>
    tpu.vector_store %arg9[%c0_67, %c0_68, %c0_69], %221 {strides = array<i32>} : memref<2x8x128xf32, #tpu.memory_space<vmem>>, vector<1x8x128xf32>,
    %c0_70 = arith.constant 0 : index
    %c0_71 = arith.constant 0 : index
    %c0_72 = arith.constant 0 : index
    %222 = vector.load %arg10[%c0_70, %c0_71, %c0_72] : memref<2x8x128xf32, #tpu.memory_space<vmem>>, vector<1x8x128xf32>
    %223 = vector.shape_cast %222 : vector<1x8x128xf32> to vector<8x128xf32>
    %224 = vector.shape_cast %214 : vector<8x128xf32> to vector<1x8x128xf32>
    tpu.vector_store %arg10[%c0_70, %c0_71, %c0_72], %224 {strides = array<i32>} : memref<2x8x128xf32, #tpu.memory_space<vmem>>, vector<1x8x128xf32>,
    %c1 = arith.constant 1 : index
    %c0_73 = arith.constant 0 : index
    %c0_74 = arith.constant 0 : index
    %225 = vector.load %arg4[%c1, %c0_73, %c0_74] : memref<2x128x512xf32, #tpu.memory_space<vmem>>, vector<1x128x512xf32>
    %226 = vector.shape_cast %225 : vector<1x128x512xf32> to vector<128x512xf32>
    %c0_75 = arith.constant 0 : index
    %c0_76 = arith.constant 0 : index
    %227 = vector.load %arg11[%c0_75, %c0_76] : memref<64x128xf32, #tpu.memory_space<vmem>>, vector<64x128xf32>
    %c1_77 = arith.constant 1 : index
    %c0_78 = arith.constant 0 : index
    %c0_79 = arith.constant 0 : index
    %228 = vector.load %arg3[%c1_77, %c0_78, %c0_79] : memref<2x128x512xf32, #tpu.memory_space<vmem>>, vector<1x128x512xf32>
    %229 = vector.shape_cast %228 : vector<1x128x512xf32> to vector<128x512xf32>
    %cst_80 = arith.constant dense<0.000000e+00> : vector<64x512xf32>
    %230 = tpu.matmul %227, %229, %cst_80 {dimension_numbers = #tpu.dot_dimension_numbers<[1], [0], [0], [1], [0, 0, 1, 1], [], []>} : vector<64x128xf32>, vector<128x512xf32>, vector<64x512xf32> -> vector<64x512xf32>
    %c1_81 = arith.constant 1 : index
    %c0_82 = arith.constant 0 : index
    %c0_83 = arith.constant 0 : index
    %231 = vector.load %arg5[%c1_81, %c0_82, %c0_83] : memref<2x1x512xf32, #tpu.memory_space<vmem>>, vector<1x1x512xf32>
    %232 = vector.shape_cast %231 : vector<1x1x512xf32> to vector<1x512xf32>
    %233 = vector.broadcast %232 : vector<1x512xf32> to vector<64x512xf32>
    %234 = arith.addf %230, %233 : vector<64x512xf32>
    %c0_84 = arith.constant 0 : index
    %c0_85 = arith.constant 0 : index
    %235 = vector.load %arg12[%c0_84, %c0_85] : memref<64x512xf32, #tpu.memory_space<vmem>>, vector<64x512xf32>
    tpu.vector_store %arg12[%c0_84, %c0_85], %234 {strides = array<i32>} : memref<64x512xf32, #tpu.memory_space<vmem>>, vector<64x512xf32>,
    %c1_86 = arith.constant 1 : index
    %c0_87 = arith.constant 0 : index
    %c0_88 = arith.constant 0 : index
    %236 = vector.load %arg9[%c1_86, %c0_87, %c0_88] : memref<2x8x128xf32, #tpu.memory_space<vmem>>, vector<1x8x128xf32>
    %237 = vector.shape_cast %236 : vector<1x8x128xf32> to vector<8x128xf32>
    %c1_89 = arith.constant 1 : index
    %c0_90 = arith.constant 0 : index
    %c0_91 = arith.constant 0 : index
    %238 = vector.load %arg10[%c1_89, %c0_90, %c0_91] : memref<2x8x128xf32, #tpu.memory_space<vmem>>, vector<1x8x128xf32>
    %239 = vector.shape_cast %238 : vector<1x8x128xf32> to vector<8x128xf32>
    %c0_i32_92 = arith.constant 0 : i32
    %c8_i32_93 = arith.constant 8 : i32
    %240 = arith.muli %c0_i32_92, %c8_i32_93 : i32
    %241 = tpu.assume_multiple %240, 8 : i32
    %242 = arith.index_cast %241 : i32 to index
    %c0_94 = arith.constant 0 : index
    %243 = vector.load %arg12[%242, %c0_94] : memref<64x512xf32, #tpu.memory_space<vmem>>, vector<8x512xf32>
    %cst_95 = arith.constant dense<0.000000e+00> : vector<8x512xf32>
    %244 = tpu.matmul %237, %226, %cst_95 {dimension_numbers = #tpu.dot_dimension_numbers<[1], [0], [0], [1], [0, 0, 1, 1], [], []>} : vector<8x128xf32>, vector<128x512xf32>, vector<8x512xf32> -> vector<8x512xf32>
    %245 = arith.addf %243, %244 : vector<8x512xf32>
    %246 = vector.extract_strided_slice %245 {offsets = [0, 0], sizes = [8, 384], strides = [1, 1]} : vector<8x512xf32> to vector<8x384xf32>
    %247 = arith.negf %246 : vector<8x384xf32>
    %248 = math.exp %247 : vector<8x384xf32>
    %cst_96 = arith.constant 1.000000e+00 : f32
    %249 = vector.broadcast %cst_96 : f32 to vector<8x384xf32>
    %250 = arith.addf %249, %248 : vector<8x384xf32>
    %251 = arith.divf %249, %250 : vector<8x384xf32>
    %252 = vector.extract_strided_slice %251 {offsets = [0, 0], sizes = [8, 128], strides = [1, 1]} : vector<8x384xf32> to vector<8x128xf32>
    %253 = vector.extract_strided_slice %251 {offsets = [0, 128], sizes = [8, 128], strides = [1, 1]} : vector<8x384xf32> to vector<8x128xf32>
    %254 = vector.extract_strided_slice %251 {offsets = [0, 256], sizes = [8, 128], strides = [1, 1]} : vector<8x384xf32> to vector<8x128xf32>
    %255 = vector.extract_strided_slice %245 {offsets = [0, 384], sizes = [8, 128], strides = [1, 1]} : vector<8x512xf32> to vector<8x128xf32>
    %256 = math.tanh %255 : vector<8x128xf32>
    %257 = arith.mulf %253, %239 : vector<8x128xf32>
    %258 = arith.mulf %252, %256 : vector<8x128xf32>
    %259 = arith.addf %257, %258 : vector<8x128xf32>
    %260 = math.tanh %259 : vector<8x128xf32>
    %261 = arith.mulf %254, %260 : vector<8x128xf32>
    %262 = arith.index_cast %241 : i32 to index
    %c0_97 = arith.constant 0 : index
    %263 = vector.load %arg11[%262, %c0_97] : memref<64x128xf32, #tpu.memory_space<vmem>>, vector<8x128xf32>
    tpu.vector_store %arg11[%262, %c0_97], %261 {strides = array<i32>} : memref<64x128xf32, #tpu.memory_space<vmem>>, vector<8x128xf32>,
    %c1_i32_98 = arith.constant 1 : i32
    %c8_i32_99 = arith.constant 8 : i32
    %264 = arith.muli %c1_i32_98, %c8_i32_99 : i32
    %265 = tpu.assume_multiple %264, 8 : i32
    %266 = arith.index_cast %265 : i32 to index
    %c0_100 = arith.constant 0 : index
    %267 = vector.load %arg12[%266, %c0_100] : memref<64x512xf32, #tpu.memory_space<vmem>>, vector<8x512xf32>
    %cst_101 = arith.constant dense<0.000000e+00> : vector<8x512xf32>
    %268 = tpu.matmul %261, %226, %cst_101 {dimension_numbers = #tpu.dot_dimension_numbers<[1], [0], [0], [1], [0, 0, 1, 1], [], []>} : vector<8x128xf32>, vector<128x512xf32>, vector<8x512xf32> -> vector<8x512xf32>
    %269 = arith.addf %267, %268 : vector<8x512xf32>
    %270 = vector.extract_strided_slice %269 {offsets = [0, 0], sizes = [8, 384], strides = [1, 1]} : vector<8x512xf32> to vector<8x384xf32>
    %271 = arith.negf %270 : vector<8x384xf32>
    %272 = math.exp %271 : vector<8x384xf32>
    %cst_102 = arith.constant 1.000000e+00 : f32
    %273 = vector.broadcast %cst_102 : f32 to vector<8x384xf32>
    %274 = arith.addf %273, %272 : vector<8x384xf32>
    %275 = arith.divf %273, %274 : vector<8x384xf32>
    %276 = vector.extract_strided_slice %275 {offsets = [0, 0], sizes = [8, 128], strides = [1, 1]} : vector<8x384xf32> to vector<8x128xf32>
    %277 = vector.extract_strided_slice %275 {offsets = [0, 128], sizes = [8, 128], strides = [1, 1]} : vector<8x384xf32> to vector<8x128xf32>
    %278 = vector.extract_strided_slice %275 {offsets = [0, 256], sizes = [8, 128], strides = [1, 1]} : vector<8x384xf32> to vector<8x128xf32>
    %279 = vector.extract_strided_slice %269 {offsets = [0, 384], sizes = [8, 128], strides = [1, 1]} : vector<8x512xf32> to vector<8x128xf32>
    %280 = math.tanh %279 : vector<8x128xf32>
    %281 = arith.mulf %277, %259 : vector<8x128xf32>
    %282 = arith.mulf %276, %280 : vector<8x128xf32>
    %283 = arith.addf %281, %282 : vector<8x128xf32>
    %284 = math.tanh %283 : vector<8x128xf32>
    %285 = arith.mulf %278, %284 : vector<8x128xf32>
    %286 = arith.index_cast %265 : i32 to index
    %c0_103 = arith.constant 0 : index
    %287 = vector.load %arg11[%286, %c0_103] : memref<64x128xf32, #tpu.memory_space<vmem>>, vector<8x128xf32>
    tpu.vector_store %arg11[%286, %c0_103], %285 {strides = array<i32>} : memref<64x128xf32, #tpu.memory_space<vmem>>, vector<8x128xf32>,
    %c2_i32_104 = arith.constant 2 : i32
    %c8_i32_105 = arith.constant 8 : i32
    %288 = arith.muli %c2_i32_104, %c8_i32_105 : i32
    %289 = tpu.assume_multiple %288, 8 : i32
    %290 = arith.index_cast %289 : i32 to index
    %c0_106 = arith.constant 0 : index
    %291 = vector.load %arg12[%290, %c0_106] : memref<64x512xf32, #tpu.memory_space<vmem>>, vector<8x512xf32>
    %cst_107 = arith.constant dense<0.000000e+00> : vector<8x512xf32>
    %292 = tpu.matmul %285, %226, %cst_107 {dimension_numbers = #tpu.dot_dimension_numbers<[1], [0], [0], [1], [0, 0, 1, 1], [], []>} : vector<8x128xf32>, vector<128x512xf32>, vector<8x512xf32> -> vector<8x512xf32>
    %293 = arith.addf %291, %292 : vector<8x512xf32>
    %294 = vector.extract_strided_slice %293 {offsets = [0, 0], sizes = [8, 384], strides = [1, 1]} : vector<8x512xf32> to vector<8x384xf32>
    %295 = arith.negf %294 : vector<8x384xf32>
    %296 = math.exp %295 : vector<8x384xf32>
    %cst_108 = arith.constant 1.000000e+00 : f32
    %297 = vector.broadcast %cst_108 : f32 to vector<8x384xf32>
    %298 = arith.addf %297, %296 : vector<8x384xf32>
    %299 = arith.divf %297, %298 : vector<8x384xf32>
    %300 = vector.extract_strided_slice %299 {offsets = [0, 0], sizes = [8, 128], strides = [1, 1]} : vector<8x384xf32> to vector<8x128xf32>
    %301 = vector.extract_strided_slice %299 {offsets = [0, 128], sizes = [8, 128], strides = [1, 1]} : vector<8x384xf32> to vector<8x128xf32>
    %302 = vector.extract_strided_slice %299 {offsets = [0, 256], sizes = [8, 128], strides = [1, 1]} : vector<8x384xf32> to vector<8x128xf32>
    %303 = vector.extract_strided_slice %293 {offsets = [0, 384], sizes = [8, 128], strides = [1, 1]} : vector<8x512xf32> to vector<8x128xf32>
    %304 = math.tanh %303 : vector<8x128xf32>
    %305 = arith.mulf %301, %283 : vector<8x128xf32>
    %306 = arith.mulf %300, %304 : vector<8x128xf32>
    %307 = arith.addf %305, %306 : vector<8x128xf32>
    %308 = math.tanh %307 : vector<8x128xf32>
    %309 = arith.mulf %302, %308 : vector<8x128xf32>
    %310 = arith.index_cast %289 : i32 to index
    %c0_109 = arith.constant 0 : index
    %311 = vector.load %arg11[%310, %c0_109] : memref<64x128xf32, #tpu.memory_space<vmem>>, vector<8x128xf32>
    tpu.vector_store %arg11[%310, %c0_109], %309 {strides = array<i32>} : memref<64x128xf32, #tpu.memory_space<vmem>>, vector<8x128xf32>,
    %c3_i32_110 = arith.constant 3 : i32
    %c8_i32_111 = arith.constant 8 : i32
    %312 = arith.muli %c3_i32_110, %c8_i32_111 : i32
    %313 = tpu.assume_multiple %312, 8 : i32
    %314 = arith.index_cast %313 : i32 to index
    %c0_112 = arith.constant 0 : index
    %315 = vector.load %arg12[%314, %c0_112] : memref<64x512xf32, #tpu.memory_space<vmem>>, vector<8x512xf32>
    %cst_113 = arith.constant dense<0.000000e+00> : vector<8x512xf32>
    %316 = tpu.matmul %309, %226, %cst_113 {dimension_numbers = #tpu.dot_dimension_numbers<[1], [0], [0], [1], [0, 0, 1, 1], [], []>} : vector<8x128xf32>, vector<128x512xf32>, vector<8x512xf32> -> vector<8x512xf32>
    %317 = arith.addf %315, %316 : vector<8x512xf32>
    %318 = vector.extract_strided_slice %317 {offsets = [0, 0], sizes = [8, 384], strides = [1, 1]} : vector<8x512xf32> to vector<8x384xf32>
    %319 = arith.negf %318 : vector<8x384xf32>
    %320 = math.exp %319 : vector<8x384xf32>
    %cst_114 = arith.constant 1.000000e+00 : f32
    %321 = vector.broadcast %cst_114 : f32 to vector<8x384xf32>
    %322 = arith.addf %321, %320 : vector<8x384xf32>
    %323 = arith.divf %321, %322 : vector<8x384xf32>
    %324 = vector.extract_strided_slice %323 {offsets = [0, 0], sizes = [8, 128], strides = [1, 1]} : vector<8x384xf32> to vector<8x128xf32>
    %325 = vector.extract_strided_slice %323 {offsets = [0, 128], sizes = [8, 128], strides = [1, 1]} : vector<8x384xf32> to vector<8x128xf32>
    %326 = vector.extract_strided_slice %323 {offsets = [0, 256], sizes = [8, 128], strides = [1, 1]} : vector<8x384xf32> to vector<8x128xf32>
    %327 = vector.extract_strided_slice %317 {offsets = [0, 384], sizes = [8, 128], strides = [1, 1]} : vector<8x512xf32> to vector<8x128xf32>
    %328 = math.tanh %327 : vector<8x128xf32>
    %329 = arith.mulf %325, %307 : vector<8x128xf32>
    %330 = arith.mulf %324, %328 : vector<8x128xf32>
    %331 = arith.addf %329, %330 : vector<8x128xf32>
    %332 = math.tanh %331 : vector<8x128xf32>
    %333 = arith.mulf %326, %332 : vector<8x128xf32>
    %334 = arith.index_cast %313 : i32 to index
    %c0_115 = arith.constant 0 : index
    %335 = vector.load %arg11[%334, %c0_115] : memref<64x128xf32, #tpu.memory_space<vmem>>, vector<8x128xf32>
    tpu.vector_store %arg11[%334, %c0_115], %333 {strides = array<i32>} : memref<64x128xf32, #tpu.memory_space<vmem>>, vector<8x128xf32>,
    %c4_i32_116 = arith.constant 4 : i32
    %c8_i32_117 = arith.constant 8 : i32
    %336 = arith.muli %c4_i32_116, %c8_i32_117 : i32
    %337 = tpu.assume_multiple %336, 8 : i32
    %338 = arith.index_cast %337 : i32 to index
    %c0_118 = arith.constant 0 : index
    %339 = vector.load %arg12[%338, %c0_118] : memref<64x512xf32, #tpu.memory_space<vmem>>, vector<8x512xf32>
    %cst_119 = arith.constant dense<0.000000e+00> : vector<8x512xf32>
    %340 = tpu.matmul %333, %226, %cst_119 {dimension_numbers = #tpu.dot_dimension_numbers<[1], [0], [0], [1], [0, 0, 1, 1], [], []>} : vector<8x128xf32>, vector<128x512xf32>, vector<8x512xf32> -> vector<8x512xf32>
    %341 = arith.addf %339, %340 : vector<8x512xf32>
    %342 = vector.extract_strided_slice %341 {offsets = [0, 0], sizes = [8, 384], strides = [1, 1]} : vector<8x512xf32> to vector<8x384xf32>
    %343 = arith.negf %342 : vector<8x384xf32>
    %344 = math.exp %343 : vector<8x384xf32>
    %cst_120 = arith.constant 1.000000e+00 : f32
    %345 = vector.broadcast %cst_120 : f32 to vector<8x384xf32>
    %346 = arith.addf %345, %344 : vector<8x384xf32>
    %347 = arith.divf %345, %346 : vector<8x384xf32>
    %348 = vector.extract_strided_slice %347 {offsets = [0, 0], sizes = [8, 128], strides = [1, 1]} : vector<8x384xf32> to vector<8x128xf32>
    %349 = vector.extract_strided_slice %347 {offsets = [0, 128], sizes = [8, 128], strides = [1, 1]} : vector<8x384xf32> to vector<8x128xf32>
    %350 = vector.extract_strided_slice %347 {offsets = [0, 256], sizes = [8, 128], strides = [1, 1]} : vector<8x384xf32> to vector<8x128xf32>
    %351 = vector.extract_strided_slice %341 {offsets = [0, 384], sizes = [8, 128], strides = [1, 1]} : vector<8x512xf32> to vector<8x128xf32>
    %352 = math.tanh %351 : vector<8x128xf32>
    %353 = arith.mulf %349, %331 : vector<8x128xf32>
    %354 = arith.mulf %348, %352 : vector<8x128xf32>
    %355 = arith.addf %353, %354 : vector<8x128xf32>
    %356 = math.tanh %355 : vector<8x128xf32>
    %357 = arith.mulf %350, %356 : vector<8x128xf32>
    %358 = arith.index_cast %337 : i32 to index
    %c0_121 = arith.constant 0 : index
    %359 = vector.load %arg11[%358, %c0_121] : memref<64x128xf32, #tpu.memory_space<vmem>>, vector<8x128xf32>
    tpu.vector_store %arg11[%358, %c0_121], %357 {strides = array<i32>} : memref<64x128xf32, #tpu.memory_space<vmem>>, vector<8x128xf32>,
    %c5_i32_122 = arith.constant 5 : i32
    %c8_i32_123 = arith.constant 8 : i32
    %360 = arith.muli %c5_i32_122, %c8_i32_123 : i32
    %361 = tpu.assume_multiple %360, 8 : i32
    %362 = arith.index_cast %361 : i32 to index
    %c0_124 = arith.constant 0 : index
    %363 = vector.load %arg12[%362, %c0_124] : memref<64x512xf32, #tpu.memory_space<vmem>>, vector<8x512xf32>
    %cst_125 = arith.constant dense<0.000000e+00> : vector<8x512xf32>
    %364 = tpu.matmul %357, %226, %cst_125 {dimension_numbers = #tpu.dot_dimension_numbers<[1], [0], [0], [1], [0, 0, 1, 1], [], []>} : vector<8x128xf32>, vector<128x512xf32>, vector<8x512xf32> -> vector<8x512xf32>
    %365 = arith.addf %363, %364 : vector<8x512xf32>
    %366 = vector.extract_strided_slice %365 {offsets = [0, 0], sizes = [8, 384], strides = [1, 1]} : vector<8x512xf32> to vector<8x384xf32>
    %367 = arith.negf %366 : vector<8x384xf32>
    %368 = math.exp %367 : vector<8x384xf32>
    %cst_126 = arith.constant 1.000000e+00 : f32
    %369 = vector.broadcast %cst_126 : f32 to vector<8x384xf32>
    %370 = arith.addf %369, %368 : vector<8x384xf32>
    %371 = arith.divf %369, %370 : vector<8x384xf32>
    %372 = vector.extract_strided_slice %371 {offsets = [0, 0], sizes = [8, 128], strides = [1, 1]} : vector<8x384xf32> to vector<8x128xf32>
    %373 = vector.extract_strided_slice %371 {offsets = [0, 128], sizes = [8, 128], strides = [1, 1]} : vector<8x384xf32> to vector<8x128xf32>
    %374 = vector.extract_strided_slice %371 {offsets = [0, 256], sizes = [8, 128], strides = [1, 1]} : vector<8x384xf32> to vector<8x128xf32>
    %375 = vector.extract_strided_slice %365 {offsets = [0, 384], sizes = [8, 128], strides = [1, 1]} : vector<8x512xf32> to vector<8x128xf32>
    %376 = math.tanh %375 : vector<8x128xf32>
    %377 = arith.mulf %373, %355 : vector<8x128xf32>
    %378 = arith.mulf %372, %376 : vector<8x128xf32>
    %379 = arith.addf %377, %378 : vector<8x128xf32>
    %380 = math.tanh %379 : vector<8x128xf32>
    %381 = arith.mulf %374, %380 : vector<8x128xf32>
    %382 = arith.index_cast %361 : i32 to index
    %c0_127 = arith.constant 0 : index
    %383 = vector.load %arg11[%382, %c0_127] : memref<64x128xf32, #tpu.memory_space<vmem>>, vector<8x128xf32>
    tpu.vector_store %arg11[%382, %c0_127], %381 {strides = array<i32>} : memref<64x128xf32, #tpu.memory_space<vmem>>, vector<8x128xf32>,
    %c6_i32_128 = arith.constant 6 : i32
    %c8_i32_129 = arith.constant 8 : i32
    %384 = arith.muli %c6_i32_128, %c8_i32_129 : i32
    %385 = tpu.assume_multiple %384, 8 : i32
    %386 = arith.index_cast %385 : i32 to index
    %c0_130 = arith.constant 0 : index
    %387 = vector.load %arg12[%386, %c0_130] : memref<64x512xf32, #tpu.memory_space<vmem>>, vector<8x512xf32>
    %cst_131 = arith.constant dense<0.000000e+00> : vector<8x512xf32>
    %388 = tpu.matmul %381, %226, %cst_131 {dimension_numbers = #tpu.dot_dimension_numbers<[1], [0], [0], [1], [0, 0, 1, 1], [], []>} : vector<8x128xf32>, vector<128x512xf32>, vector<8x512xf32> -> vector<8x512xf32>
    %389 = arith.addf %387, %388 : vector<8x512xf32>
    %390 = vector.extract_strided_slice %389 {offsets = [0, 0], sizes = [8, 384], strides = [1, 1]} : vector<8x512xf32> to vector<8x384xf32>
    %391 = arith.negf %390 : vector<8x384xf32>
    %392 = math.exp %391 : vector<8x384xf32>
    %cst_132 = arith.constant 1.000000e+00 : f32
    %393 = vector.broadcast %cst_132 : f32 to vector<8x384xf32>
    %394 = arith.addf %393, %392 : vector<8x384xf32>
    %395 = arith.divf %393, %394 : vector<8x384xf32>
    %396 = vector.extract_strided_slice %395 {offsets = [0, 0], sizes = [8, 128], strides = [1, 1]} : vector<8x384xf32> to vector<8x128xf32>
    %397 = vector.extract_strided_slice %395 {offsets = [0, 128], sizes = [8, 128], strides = [1, 1]} : vector<8x384xf32> to vector<8x128xf32>
    %398 = vector.extract_strided_slice %395 {offsets = [0, 256], sizes = [8, 128], strides = [1, 1]} : vector<8x384xf32> to vector<8x128xf32>
    %399 = vector.extract_strided_slice %389 {offsets = [0, 384], sizes = [8, 128], strides = [1, 1]} : vector<8x512xf32> to vector<8x128xf32>
    %400 = math.tanh %399 : vector<8x128xf32>
    %401 = arith.mulf %397, %379 : vector<8x128xf32>
    %402 = arith.mulf %396, %400 : vector<8x128xf32>
    %403 = arith.addf %401, %402 : vector<8x128xf32>
    %404 = math.tanh %403 : vector<8x128xf32>
    %405 = arith.mulf %398, %404 : vector<8x128xf32>
    %406 = arith.index_cast %385 : i32 to index
    %c0_133 = arith.constant 0 : index
    %407 = vector.load %arg11[%406, %c0_133] : memref<64x128xf32, #tpu.memory_space<vmem>>, vector<8x128xf32>
    tpu.vector_store %arg11[%406, %c0_133], %405 {strides = array<i32>} : memref<64x128xf32, #tpu.memory_space<vmem>>, vector<8x128xf32>,
    %c7_i32_134 = arith.constant 7 : i32
    %c8_i32_135 = arith.constant 8 : i32
    %408 = arith.muli %c7_i32_134, %c8_i32_135 : i32
    %409 = tpu.assume_multiple %408, 8 : i32
    %410 = arith.index_cast %409 : i32 to index
    %c0_136 = arith.constant 0 : index
    %411 = vector.load %arg12[%410, %c0_136] : memref<64x512xf32, #tpu.memory_space<vmem>>, vector<8x512xf32>
    %cst_137 = arith.constant dense<0.000000e+00> : vector<8x512xf32>
    %412 = tpu.matmul %405, %226, %cst_137 {dimension_numbers = #tpu.dot_dimension_numbers<[1], [0], [0], [1], [0, 0, 1, 1], [], []>} : vector<8x128xf32>, vector<128x512xf32>, vector<8x512xf32> -> vector<8x512xf32>
    %413 = arith.addf %411, %412 : vector<8x512xf32>
    %414 = vector.extract_strided_slice %413 {offsets = [0, 0], sizes = [8, 384], strides = [1, 1]} : vector<8x512xf32> to vector<8x384xf32>
    %415 = arith.negf %414 : vector<8x384xf32>
    %416 = math.exp %415 : vector<8x384xf32>
    %cst_138 = arith.constant 1.000000e+00 : f32
    %417 = vector.broadcast %cst_138 : f32 to vector<8x384xf32>
    %418 = arith.addf %417, %416 : vector<8x384xf32>
    %419 = arith.divf %417, %418 : vector<8x384xf32>
    %420 = vector.extract_strided_slice %419 {offsets = [0, 0], sizes = [8, 128], strides = [1, 1]} : vector<8x384xf32> to vector<8x128xf32>
    %421 = vector.extract_strided_slice %419 {offsets = [0, 128], sizes = [8, 128], strides = [1, 1]} : vector<8x384xf32> to vector<8x128xf32>
    %422 = vector.extract_strided_slice %419 {offsets = [0, 256], sizes = [8, 128], strides = [1, 1]} : vector<8x384xf32> to vector<8x128xf32>
    %423 = vector.extract_strided_slice %413 {offsets = [0, 384], sizes = [8, 128], strides = [1, 1]} : vector<8x512xf32> to vector<8x128xf32>
    %424 = math.tanh %423 : vector<8x128xf32>
    %425 = arith.mulf %421, %403 : vector<8x128xf32>
    %426 = arith.mulf %420, %424 : vector<8x128xf32>
    %427 = arith.addf %425, %426 : vector<8x128xf32>
    %428 = math.tanh %427 : vector<8x128xf32>
    %429 = arith.mulf %422, %428 : vector<8x128xf32>
    %430 = arith.index_cast %409 : i32 to index
    %c0_139 = arith.constant 0 : index
    %431 = vector.load %arg11[%430, %c0_139] : memref<64x128xf32, #tpu.memory_space<vmem>>, vector<8x128xf32>
    tpu.vector_store %arg11[%430, %c0_139], %429 {strides = array<i32>} : memref<64x128xf32, #tpu.memory_space<vmem>>, vector<8x128xf32>,
    %c8_i32_140 = arith.constant 8 : i32
    %c1_141 = arith.constant 1 : index
    %c0_142 = arith.constant 0 : index
    %c0_143 = arith.constant 0 : index
    %432 = vector.load %arg9[%c1_141, %c0_142, %c0_143] : memref<2x8x128xf32, #tpu.memory_space<vmem>>, vector<1x8x128xf32>
    %433 = vector.shape_cast %432 : vector<1x8x128xf32> to vector<8x128xf32>
    %434 = vector.shape_cast %429 : vector<8x128xf32> to vector<1x8x128xf32>
    tpu.vector_store %arg9[%c1_141, %c0_142, %c0_143], %434 {strides = array<i32>} : memref<2x8x128xf32, #tpu.memory_space<vmem>>, vector<1x8x128xf32>,
    %c1_144 = arith.constant 1 : index
    %c0_145 = arith.constant 0 : index
    %c0_146 = arith.constant 0 : index
    %435 = vector.load %arg10[%c1_144, %c0_145, %c0_146] : memref<2x8x128xf32, #tpu.memory_space<vmem>>, vector<1x8x128xf32>
    %436 = vector.shape_cast %435 : vector<1x8x128xf32> to vector<8x128xf32>
    %437 = vector.shape_cast %427 : vector<8x128xf32> to vector<1x8x128xf32>
    tpu.vector_store %arg10[%c1_144, %c0_145, %c0_146], %437 {strides = array<i32>} : memref<2x8x128xf32, #tpu.memory_space<vmem>>, vector<1x8x128xf32>,
    %c0_147 = arith.constant 0 : index
    %c0_148 = arith.constant 0 : index
    %438 = vector.load %arg11[%c0_147, %c0_148] : memref<64x128xf32, #tpu.memory_space<vmem>>, vector<64x128xf32>
    %c0_149 = arith.constant 0 : index
    %c0_150 = arith.constant 0 : index
    %439 = vector.load %arg6[%c0_149, %c0_150] : memref<128x128xf32, #tpu.memory_space<vmem>>, vector<128x128xf32>
    %cst_151 = arith.constant dense<0.000000e+00> : vector<64x128xf32>
    %440 = tpu.matmul %438, %439, %cst_151 {dimension_numbers = #tpu.dot_dimension_numbers<[1], [0], [0], [1], [0, 0, 1, 1], [], []>} : vector<64x128xf32>, vector<128x128xf32>, vector<64x128xf32> -> vector<64x128xf32>
    %c0_152 = arith.constant 0 : index
    %c0_153 = arith.constant 0 : index
    %441 = vector.load %arg7[%c0_152, %c0_153] : memref<1x128xf32, #tpu.memory_space<vmem>>, vector<1x128xf32>
    %442 = vector.broadcast %441 : vector<1x128xf32> to vector<64x128xf32>
    %443 = arith.addf %440, %442 : vector<64x128xf32>
    %c0_154 = arith.constant 0 : index
    %c0_155 = arith.constant 0 : index
    %444 = vector.load %arg8[%c0_154, %c0_155] : memref<64x128xf32, #tpu.memory_space<vmem>>, vector<64x128xf32>
    tpu.vector_store %arg8[%c0_154, %c0_155], %443 {strides = array<i32>} : memref<64x128xf32, #tpu.memory_space<vmem>>, vector<64x128xf32>,
    return
  }
  func.func @transform_0(%arg0: i32) -> (i32, i32) {
    %c0_i32 = arith.constant 0 : i32
    %c0_i32_0 = arith.constant 0 : i32
    return %arg0, %c0_i32 : i32, i32
  }
  func.func @transform_1(%arg0: i32) -> (i32, i32) {
    %c0_i32 = arith.constant 0 : i32
    %c0_i32_0 = arith.constant 0 : i32
    %c0_i32_1 = arith.constant 0 : i32
    return %c0_i32, %c0_i32_0 : i32, i32
  }
  func.func @transform_2(%arg0: i32) -> (i32, i32, i32) {
    %c0_i32 = arith.constant 0 : i32
    %c0_i32_0 = arith.constant 0 : i32
    %c0_i32_1 = arith.constant 0 : i32
    %c0_i32_2 = arith.constant 0 : i32
    return %c0_i32, %c0_i32_0, %c0_i32_1 : i32, i32, i32
  }
  func.func @transform_3(%arg0: i32) -> (i32, i32, i32) {
    %c0_i32 = arith.constant 0 : i32
    %c0_i32_0 = arith.constant 0 : i32
    %c0_i32_1 = arith.constant 0 : i32
    %c0_i32_2 = arith.constant 0 : i32
    return %c0_i32, %c0_i32_0, %c0_i32_1 : i32, i32, i32
  }
  func.func @transform_4(%arg0: i32) -> (i32, i32, i32) {
    %c0_i32 = arith.constant 0 : i32
    %c0_i32_0 = arith.constant 0 : i32
    %c0_i32_1 = arith.constant 0 : i32
    %c0_i32_2 = arith.constant 0 : i32
    return %c0_i32, %c0_i32_0, %c0_i32_1 : i32, i32, i32
  }
  func.func @transform_5(%arg0: i32) -> (i32, i32) {
    %c0_i32 = arith.constant 0 : i32
    %c0_i32_0 = arith.constant 0 : i32
    %c0_i32_1 = arith.constant 0 : i32
    return %c0_i32, %c0_i32_0 : i32, i32
  }
  func.func @transform_6(%arg0: i32) -> (i32, i32) {
    %c0_i32 = arith.constant 0 : i32
    %c0_i32_0 = arith.constant 0 : i32
    %c0_i32_1 = arith.constant 0 : i32
    return %c0_i32, %c0_i32_0 : i32, i32
  }
  func.func @transform_7(%arg0: i32) -> (i32, i32) {
    %c0_i32 = arith.constant 0 : i32
    %c0_i32_0 = arith.constant 0 : i32
    return %arg0, %c0_i32 : i32, i32
  }
  func.func @transform_8(%arg0: i32) -> (i32, i32, i32) {
    %c0_i32 = arith.constant 0 : i32
    %c0_i32_0 = arith.constant 0 : i32
    %c0_i32_1 = arith.constant 0 : i32
    %c0_i32_2 = arith.constant 0 : i32
    return %c0_i32, %c0_i32_0, %c0_i32_1 : i32, i32, i32
  }
  func.func @transform_9(%arg0: i32) -> (i32, i32, i32) {
    %c0_i32 = arith.constant 0 : i32
    %c0_i32_0 = arith.constant 0 : i32
    %c0_i32_1 = arith.constant 0 : i32
    %c0_i32_2 = arith.constant 0 : i32
    return %c0_i32, %c0_i32_0, %c0_i32_1 : i32, i32, i32
  }
}

</mosaic_0001>

<llo_original>
// kernel: password_rnn_forward.1
$region0: #{password_rnn_forward.1}
  #allocation0 [shape = 'u32[]', space=smem, size = 0x4, offset = 0x4, fixed_abs, tag = 'smem constant byte address 0x4 - core index']
  #allocation1 [shape = 'u32[72,128]{1,0:T(1,128)}', space=vmem, size = 0x9000, scoped, tag = 'internal scratch']
  #allocation2 [shape = 'f32[64,128]{1,0:T(8,128)}', space=vmem, size = 0x8000, scoped, tag = 'scratch operand']
  #allocation3 [shape = 'f32[64,512]{1,0:T(8,128)}', space=vmem, size = 0x20000, scoped, tag = 'scratch operand']
  %s0 = inlined_call_operand.vmem [shape: s32[64,1], index: 0, kind: input, shape index: {}]
  %s1 = inlined_call_operand.hbm [shape: f32[128,128], index: 1, kind: input, shape index: {}]
  %s2 = inlined_call_operand.hbm [shape: f32[2,128,512], index: 2, kind: input, shape index: {}]
  %s3 = inlined_call_operand.hbm [shape: f32[2,128,512], index: 3, kind: input, shape index: {}]
  %s4 = inlined_call_operand.vmem [shape: f32[2,1,512], index: 4, kind: input, shape index: {}]
  %s5 = inlined_call_operand.hbm [shape: f32[128,128], index: 5, kind: input, shape index: {}]
  %s6 = inlined_call_operand.vmem [shape: f32[1,128], index: 6, kind: input, shape index: {}]
  %s7 = inlined_call_operand.vmem [shape: f32[64,128], index: 7, kind: output, shape index: {0}]
  %s8 = inlined_call_operand.vmem [shape: f32[2,8,128], index: 8, kind: output, shape index: {1}]
  %s9 = inlined_call_operand.vmem [shape: f32[2,8,128], index: 9, kind: output, shape index: {2}]
  %10 = xla_tuple %s7, %s8, %s9
  %s11 = sld [smem:[#allocation0]]
  $region74: #{password_rnn_forward.1} parent=0
    _
  %s13 = ssub.s32 1, %s11
  %s14 = scalar_select 0, %s13, %s11
  $region1: #{password_rnn_forward.1} parent=0
    #allocation4 [shape = 'u8[65536]{0}', space=vmem, size = 0x10000, scoped, tag = 'input window, operand 1, single buffered']
    #allocation5 [shape = 's32[1]{0}', space=sflag, size = 0x4, scoped, tag = 'scoped memory for password_rnn_forward.1']
    #allocation6 [shape = 'u8[524288]{0}', space=vmem, size = 0x80000, scoped, tag = 'input window, operand 2, single buffered']
    #allocation7 [shape = 's32[1]{0}', space=sflag, size = 0x4, scoped, tag = 'scoped memory for password_rnn_forward.1']
    #allocation8 [shape = 'u8[524288]{0}', space=vmem, size = 0x80000, scoped, tag = 'input window, operand 3, single buffered']
    #allocation9 [shape = 'u8[65536]{0}', space=vmem, size = 0x10000, scoped, tag = 'input window, operand 5, single buffered']
    #allocation10 [shape = 's32[1]{0}', space=sflag, size = 0x4, scoped, tag = 'scoped memory for password_rnn_forward.1']
    %15 = vsyncpa [#allocation5], 0
    %16 = vsyncpa [#allocation7], 0
    %17 = vsyncpa [#allocation10], 0
    // Predicated region
    $region2: #{password_rnn_forward.1} parent=1 // pred_check
      _
    $region3: #{password_rnn_forward.1} parent=1 // pred_check_branch
      %19 = sbr.rel (0) target = $region5
    $region4: #{password_rnn_forward.1} parent=1 // pred_region
      _
    $region5: #{password_rnn_forward.1} parent=1 // pred_fallthru
      _
    // Predicated region
    $region6: #{password_rnn_forward.1} parent=1 // pred_check
      _
    $region7: #{password_rnn_forward.1} parent=1 // pred_check_branch
      %21 = sbr.rel (0) target = $region9
    $region8: #{password_rnn_forward.1} parent=1 // pred_region
      %23 = vsyncadd [#allocation5], 0
      %s24 = sshll.u32 %s1, 4
      %s25 = int_to_ptr.hbm [resolvable:$true] %s24
      %s26 = sshll.u32 [#allocation4], 4
      %s27 = int_to_ptr.vmem [resolvable:$true] %s26
      %32 = dma.hbm_to_vmem [thread:$0]  %s25, 2048, %s27, [#allocation5], 128, 128, 8
    $region9: #{password_rnn_forward.1} parent=1 // pred_fallthru
      _
    // Predicated region
    $region10: #{password_rnn_forward.1} parent=1 // pred_check
      _
    $region11: #{password_rnn_forward.1} parent=1 // pred_check_branch
      %34 = sbr.rel (0) target = $region13
    $region12: #{password_rnn_forward.1} parent=1 // pred_region
      %36 = vsyncadd [#allocation7], 0
      %s37 = sshll.u32 %s2, 4
      %s38 = int_to_ptr.hbm [resolvable:$true] %s37
      %s39 = sshll.u32 [#allocation6], 4
      %s40 = int_to_ptr.vmem [resolvable:$true] %s39
      %45 = dma.hbm_to_vmem [thread:$0]  %s38, 16384, %s40, [#allocation7], 512, 512, 32
    $region13: #{password_rnn_forward.1} parent=1 // pred_fallthru
      _
    // Predicated region
    $region14: #{password_rnn_forward.1} parent=1 // pred_check
      _
    $region15: #{password_rnn_forward.1} parent=1 // pred_check_branch
      %47 = sbr.rel (0) target = $region17
    $region16: #{password_rnn_forward.1} parent=1 // pred_region
      %49 = vsyncadd [#allocation7], 0
      %s50 = sshll.u32 %s3, 4
      %s51 = int_to_ptr.hbm [resolvable:$true] %s50
      %s52 = sshll.u32 [#allocation8], 4
      %s53 = int_to_ptr.vmem [resolvable:$true] %s52
      %58 = dma.hbm_to_vmem [thread:$0]  %s51, 16384, %s53, [#allocation7], 512, 512, 32
    $region17: #{password_rnn_forward.1} parent=1 // pred_fallthru
      _
    // Predicated region
    $region18: #{password_rnn_forward.1} parent=1 // pred_check
      _
    $region19: #{password_rnn_forward.1} parent=1 // pred_check_branch
      %60 = sbr.rel (0) target = $region21
    $region20: #{password_rnn_forward.1} parent=1 // pred_region
      _
    $region21: #{password_rnn_forward.1} parent=1 // pred_fallthru
      _
    // Predicated region
    $region22: #{password_rnn_forward.1} parent=1 // pred_check
      _
    $region23: #{password_rnn_forward.1} parent=1 // pred_check_branch
      %62 = sbr.rel (0) target = $region25
    $region24: #{password_rnn_forward.1} parent=1 // pred_region
      %64 = vsyncadd [#allocation10], 0
      %s65 = sshll.u32 %s5, 4
      %s66 = int_to_ptr.hbm [resolvable:$true] %s65
      %s67 = sshll.u32 [#allocation9], 4
      %s68 = int_to_ptr.vmem [resolvable:$true] %s67
      %73 = dma.hbm_to_vmem [thread:$0]  %s66, 2048, %s68, [#allocation10], 128, 128, 8
    $region25: #{password_rnn_forward.1} parent=1 // pred_fallthru
      _
    // Predicated region
    $region26: #{password_rnn_forward.1} parent=1 // pred_check
      _
    $region27: #{password_rnn_forward.1} parent=1 // pred_check_branch
      %75 = sbr.rel (0) target = $region29
    $region28: #{password_rnn_forward.1} parent=1 // pred_region
      _
    $region29: #{password_rnn_forward.1} parent=1 // pred_fallthru
      _
    // Predicated region
    $region30: #{password_rnn_forward.1} parent=1 // pred_check
      _
    $region31: #{password_rnn_forward.1} parent=1 // pred_check_branch
      %77 = sbr.rel (0) target = $region33
    $region32: #{password_rnn_forward.1} parent=1 // pred_region
      %79 = dma.done [#allocation5], 2048
    $region33: #{password_rnn_forward.1} parent=1 // pred_fallthru
      _
    // Predicated region
    $region34: #{password_rnn_forward.1} parent=1 // pred_check
      _
    $region35: #{password_rnn_forward.1} parent=1 // pred_check_branch
      %81 = sbr.rel (0) target = $region37
    $region36: #{password_rnn_forward.1} parent=1 // pred_region
      %83 = dma.done [#allocation7], 16384
    $region37: #{password_rnn_forward.1} parent=1 // pred_fallthru
      _
    // Predicated region
    $region38: #{password_rnn_forward.1} parent=1 // pred_check
      _
    $region39: #{password_rnn_forward.1} parent=1 // pred_check_branch
      %85 = sbr.rel (0) target = $region41
    $region40: #{password_rnn_forward.1} parent=1 // pred_region
      %87 = dma.done [#allocation7], 16384
    $region41: #{password_rnn_forward.1} parent=1 // pred_fallthru
      _
    // Predicated region
    $region42: #{password_rnn_forward.1} parent=1 // pred_check
      _
    $region43: #{password_rnn_forward.1} parent=1 // pred_check_branch
      %89 = sbr.rel (0) target = $region45
    $region44: #{password_rnn_forward.1} parent=1 // pred_region
      %91 = dma.done [#allocation10], 2048
    $region45: #{password_rnn_forward.1} parent=1 // pred_fallthru
      _
    %p92 = scmp.eq.s32.totalorder 0, 0
    // Predicated region
    $region46: #{password_rnn_forward.1} parent=1 // pred_check
      %p93 = pneg %p92
    $region47: #{password_rnn_forward.1} parent=1 // pred_check_branch
      %95 = sbr.rel (%p93) target = $region49
    $region48: #{password_rnn_forward.1} parent=1 // pred_region
      %96 = vst [vmem:[%s8] sm:$0xff] 0.0
      %97 = vst [vmem:[%s8 + $0x8] sm:$0xff] 0.0
      %98 = vst [vmem:[%s9] sm:$0xff] 0.0
      %99 = vst [vmem:[%s9 + $0x8] sm:$0xff] 0.0
    $region49: #{password_rnn_forward.1} parent=1 // pred_fallthru
      _
    %v100 = vld [vmem:[%s0] sm:$0xff]
    %v101 = vld [vmem:[%s0 + $0x8] sm:$0xff]
    %v102 = vld [vmem:[%s0 + $0x10] sm:$0xff]
    %v103 = vld [vmem:[%s0 + $0x18] sm:$0xff]
    %v104 = vld [vmem:[%s0 + $0x20] sm:$0xff]
    %v105 = vld [vmem:[%s0 + $0x28] sm:$0xff]
    %v106 = vld [vmem:[%s0 + $0x30] sm:$0xff]
    %v107 = vld [vmem:[%s0 + $0x38] sm:$0xff]
    %v108 = vlaneseq
    %v109 = vand.u32 %v108, 127
    %110 = vset.pattern.permute.xlu0 0
    %111 = vperm.xlu0 %110, %v100
    %v112 = vpop.permute.xlu0 %111
    %113 = vset.pattern.permute.xlu0 0
    %114 = vperm.xlu0 %113, %v101
    %v115 = vpop.permute.xlu0 %114
    %116 = vset.pattern.permute.xlu0 0
    %117 = vperm.xlu0 %116, %v102
    %v118 = vpop.permute.xlu0 %117
    %119 = vset.pattern.permute.xlu0 0
    %120 = vperm.xlu0 %119, %v103
    %v121 = vpop.permute.xlu0 %120
    %122 = vset.pattern.permute.xlu0 0
    %123 = vperm.xlu0 %122, %v104
    %v124 = vpop.permute.xlu0 %123
    %125 = vset.pattern.permute.xlu0 0
    %126 = vperm.xlu0 %125, %v105
    %v127 = vpop.permute.xlu0 %126
    %128 = vset.pattern.permute.xlu0 0
    %129 = vperm.xlu0 %128, %v106
    %v130 = vpop.permute.xlu0 %129
    %131 = vset.pattern.permute.xlu0 0
    %132 = vperm.xlu0 %131, %v107
    %v133 = vpop.permute.xlu0 %132
    %vm134 = vcmp.eq.s32.totalorder %v109, %v112
    %vm135 = vcmp.eq.s32.totalorder %v109, %v115
    %vm136 = vcmp.eq.s32.totalorder %v109, %v118
    %vm137 = vcmp.eq.s32.totalorder %v109, %v121
    %vm138 = vcmp.eq.s32.totalorder %v109, %v124
    %vm139 = vcmp.eq.s32.totalorder %v109, %v127
    %vm140 = vcmp.eq.s32.totalorder %v109, %v130
    %vm141 = vcmp.eq.s32.totalorder %v109, %v133
    %v142 = vsel %vm134, 1, 0
    %v143 = vsel %vm135, 1, 0
    %v144 = vsel %vm136, 1, 0
    %v145 = vsel %vm137, 1, 0
    %v146 = vsel %vm138, 1, 0
    %v147 = vsel %vm139, 1, 0
    %v148 = vsel %vm140, 1, 0
    %v149 = vsel %vm141, 1, 0
    %v150 = vcvt.s32.f32 %v142
    %v151 = vcvt.s32.f32 %v143
    %v152 = vcvt.s32.f32 %v144
    %v153 = vcvt.s32.f32 %v145
    %v154 = vcvt.s32.f32 %v146
    %v155 = vcvt.s32.f32 %v147
    %v156 = vcvt.s32.f32 %v148
    %v157 = vcvt.s32.f32 %v149
    %v158 = vld [vmem:[#allocation4] sm:$0xff]
    %v159 = vld [vmem:[#allocation4 + $0x8] sm:$0xff]
    %v160 = vld [vmem:[#allocation4 + $0x10] sm:$0xff]
    %v161 = vld [vmem:[#allocation4 + $0x18] sm:$0xff]
    %v162 = vld [vmem:[#allocation4 + $0x20] sm:$0xff]
    %v163 = vld [vmem:[#allocation4 + $0x28] sm:$0xff]
    %v164 = vld [vmem:[#allocation4 + $0x30] sm:$0xff]
    %v165 = vld [vmem:[#allocation4 + $0x38] sm:$0xff]
    %v166 = vld [vmem:[#allocation4 + $0x40] sm:$0xff]
    %v167 = vld [vmem:[#allocation4 + $0x48] sm:$0xff]
    %v168 = vld [vmem:[#allocation4 + $0x50] sm:$0xff]
    %v169 = vld [vmem:[#allocation4 + $0x58] sm:$0xff]
    %v170 = vld [vmem:[#allocation4 + $0x60] sm:$0xff]
    %v171 = vld [vmem:[#allocation4 + $0x68] sm:$0xff]
    %v172 = vld [vmem:[#allocation4 + $0x70] sm:$0xff]
    %v173 = vld [vmem:[#allocation4 + $0x78] sm:$0xff]
    %174 = vmatpush.msra.mxu0 %v173
    %175 = vmatpush.msra.mxu0 %v172
    %176 = vmatpush.msra.mxu0 %v171
    %177 = vmatpush.msra.mxu0 %v170
    %178 = vmatpush.msra.mxu0 %v169
    %179 = vmatpush.msra.mxu0 %v168
    %180 = vmatpush.msra.mxu0 %v167
    %181 = vmatpush.msra.mxu0 %v166
    %182 = vmatpush.msra.mxu0 %v165
    %183 = vmatpush.msra.mxu0 %v164
    %184 = vmatpush.msra.mxu0 %v163
    %185 = vmatpush.msra.mxu0 %v162
    %186 = vmatpush.msra.mxu0 %v161
    %187 = vmatpush.msra.mxu0 %v160
    %188 = vmatpush.msra.mxu0 %v159
    %189 = vmatpush.msra.mxu0 %v158
    %190 = vmatmul.f32.gmra.mxu0 %v150
    %v191 = vpop.f32.mrf.mxu0
    %v192 = vadd.f32 0.0, %v191
    %193 = vmatmul.f32.gmra.mxu0 %v151
    %v194 = vpop.f32.mrf.mxu0
    %v195 = vadd.f32 0.0, %v194
    %196 = vmatmul.f32.gmra.mxu0 %v152
    %v197 = vpop.f32.mrf.mxu0
    %v198 = vadd.f32 0.0, %v197
    %199 = vmatmul.f32.gmra.mxu0 %v153
    %v200 = vpop.f32.mrf.mxu0
    %v201 = vadd.f32 0.0, %v200
    %202 = vmatmul.f32.gmra.mxu0 %v154
    %v203 = vpop.f32.mrf.mxu0
    %v204 = vadd.f32 0.0, %v203
    %205 = vmatmul.f32.gmra.mxu0 %v155
    %v206 = vpop.f32.mrf.mxu0
    %v207 = vadd.f32 0.0, %v206
    %208 = vmatmul.f32.gmra.mxu0 %v156
    %v209 = vpop.f32.mrf.mxu0
    %v210 = vadd.f32 0.0, %v209
    %211 = vmatmul.f32.gmra.mxu0 %v157
    %v212 = vpop.f32.mrf.mxu0
    %v213 = vadd.f32 0.0, %v212
    %214 = vdwg.mxu0
    %215 = vst [vmem:[#allocation2] sm:$0xff] %v192
    %216 = vst [vmem:[#allocation2 + $0x8] sm:$0xff] %v195
    %217 = vst [vmem:[#allocation2 + $0x10] sm:$0xff] %v198
    %218 = vst [vmem:[#allocation2 + $0x18] sm:$0xff] %v201
    %219 = vst [vmem:[#allocation2 + $0x20] sm:$0xff] %v204
    %220 = vst [vmem:[#allocation2 + $0x28] sm:$0xff] %v207
    %221 = vst [vmem:[#allocation2 + $0x30] sm:$0xff] %v210
    %222 = vst [vmem:[#allocation2 + $0x38] sm:$0xff] %v213
    %v223 = vld [vmem:[#allocation8] sm:$0xff]
    %v224 = vld [vmem:[#allocation8 + $0x8] sm:$0xff]
    %v225 = vld [vmem:[#allocation8 + $0x10] sm:$0xff]
    %v226 = vld [vmem:[#allocation8 + $0x18] sm:$0xff]
    %v227 = vld [vmem:[#allocation8 + $0x20] sm:$0xff]
    %v228 = vld [vmem:[#allocation8 + $0x28] sm:$0xff]
    %v229 = vld [vmem:[#allocation8 + $0x30] sm:$0xff]
    %v230 = vld [vmem:[#allocation8 + $0x38] sm:$0xff]
    %v231 = vld [vmem:[#allocation8 + $0x40] sm:$0xff]
    %v232 = vld [vmem:[#allocation8 + $0x48] sm:$0xff]
    %v233 = vld [vmem:[#allocation8 + $0x50] sm:$0xff]
    %v234 = vld [vmem:[#allocation8 + $0x58] sm:$0xff]
    %v235 = vld [vmem:[#allocation8 + $0x60] sm:$0xff]
    %v236 = vld [vmem:[#allocation8 + $0x68] sm:$0xff]
    %v237 = vld [vmem:[#allocation8 + $0x70] sm:$0xff]
    %v238 = vld [vmem:[#allocation8 + $0x78] sm:$0xff]
    %v239 = vld [vmem:[#allocation8 + $0x80] sm:$0xff]
    %v240 = vld [vmem:[#allocation8 + $0x88] sm:$0xff]
    %v241 = vld [vmem:[#allocation8 + $0x90] sm:$0xff]
    %v242 = vld [vmem:[#allocation8 + $0x98] sm:$0xff]
    %v243 = vld [vmem:[#allocation8 + $0xa0] sm:$0xff]
    %v244 = vld [vmem:[#allocation8 + $0xa8] sm:$0xff]
    %v245 = vld [vmem:[#allocation8 + $0xb0] sm:$0xff]
    %v246 = vld [vmem:[#allocation8 + $0xb8] sm:$0xff]
    %v247 = vld [vmem:[#allocation8 + $0xc0] sm:$0xff]
    %v248 = vld [vmem:[#allocation8 + $0xc8] sm:$0xff]
    %v249 = vld [vmem:[#allocation8 + $0xd0] sm:$0xff]
    %v250 = vld [vmem:[#allocation8 + $0xd8] sm:$0xff]
    %v251 = vld [vmem:[#allocation8 + $0xe0] sm:$0xff]
    %v252 = vld [vmem:[#allocation8 + $0xe8] sm:$0xff]
    %v253 = vld [vmem:[#allocation8 + $0xf0] sm:$0xff]
    %v254 = vld [vmem:[#allocation8 + $0xf8] sm:$0xff]
    %v255 = vld [vmem:[#allocation8 + $0x100] sm:$0xff]
    %v256 = vld [vmem:[#allocation8 + $0x108] sm:$0xff]
    %v257 = vld [vmem:[#allocation8 + $0x110] sm:$0xff]
    %v258 = vld [vmem:[#allocation8 + $0x118] sm:$0xff]
    %v259 = vld [vmem:[#allocation8 + $0x120] sm:$0xff]
    %v260 = vld [vmem:[#allocation8 + $0x128] sm:$0xff]
    %v261 = vld [vmem:[#allocation8 + $0x130] sm:$0xff]
    %v262 = vld [vmem:[#allocation8 + $0x138] sm:$0xff]
    %v263 = vld [vmem:[#allocation8 + $0x140] sm:$0xff]
    %v264 = vld [vmem:[#allocation8 + $0x148] sm:$0xff]
    %v265 = vld [vmem:[#allocation8 + $0x150] sm:$0xff]
    %v266 = vld [vmem:[#allocation8 + $0x158] sm:$0xff]
    %v267 = vld [vmem:[#allocation8 + $0x160] sm:$0xff]
    %v268 = vld [vmem:[#allocation8 + $0x168] sm:$0xff]
    %v269 = vld [vmem:[#allocation8 + $0x170] sm:$0xff]
    %v270 = vld [vmem:[#allocation8 + $0x178] sm:$0xff]
    %v271 = vld [vmem:[#allocation8 + $0x180] sm:$0xff]
    %v272 = vld [vmem:[#allocation8 + $0x188] sm:$0xff]
    %v273 = vld [vmem:[#allocation8 + $0x190] sm:$0xff]
    %v274 = vld [vmem:[#allocation8 + $0x198] sm:$0xff]
    %v275 = vld [vmem:[#allocation8 + $0x1a0] sm:$0xff]
    %v276 = vld [vmem:[#allocation8 + $0x1a8] sm:$0xff]
    %v277 = vld [vmem:[#allocation8 + $0x1b0] sm:$0xff]
    %v278 = vld [vmem:[#allocation8 + $0x1b8] sm:$0xff]
    %v279 = vld [vmem:[#allocation8 + $0x1c0] sm:$0xff]
    %v280 = vld [vmem:[#allocation8 + $0x1c8] sm:$0xff]
    %v281 = vld [vmem:[#allocation8 + $0x1d0] sm:$0xff]
    %v282 = vld [vmem:[#allocation8 + $0x1d8] sm:$0xff]
    %v283 = vld [vmem:[#allocation8 + $0x1e0] sm:$0xff]
    %v284 = vld [vmem:[#allocation8 + $0x1e8] sm:$0xff]
    %v285 = vld [vmem:[#allocation8 + $0x1f0] sm:$0xff]
    %v286 = vld [vmem:[#allocation8 + $0x1f8] sm:$0xff]
    %v287 = vld [vmem:[#allocation2] sm:$0xff]
    %v288 = vld [vmem:[#allocation2 + $0x8] sm:$0xff]
    %v289 = vld [vmem:[#allocation2 + $0x10] sm:$0xff]
    %v290 = vld [vmem:[#allocation2 + $0x18] sm:$0xff]
    %v291 = vld [vmem:[#allocation2 + $0x20] sm:$0xff]
    %v292 = vld [vmem:[#allocation2 + $0x28] sm:$0xff]
    %v293 = vld [vmem:[#allocation2 + $0x30] sm:$0xff]
    %v294 = vld [vmem:[#allocation2 + $0x38] sm:$0xff]
    %v295 = vld [vmem:[#allocation6] sm:$0xff]
    %v296 = vld [vmem:[#allocation6 + $0x8] sm:$0xff]
    %v297 = vld [vmem:[#allocation6 + $0x10] sm:$0xff]
    %v298 = vld [vmem:[#allocation6 + $0x18] sm:$0xff]
    %v299 = vld [vmem:[#allocation6 + $0x20] sm:$0xff]
    %v300 = vld [vmem:[#allocation6 + $0x28] sm:$0xff]
    %v301 = vld [vmem:[#allocation6 + $0x30] sm:$0xff]
    %v302 = vld [vmem:[#allocation6 + $0x38] sm:$0xff]
    %v303 = vld [vmem:[#allocation6 + $0x40] sm:$0xff]
    %v304 = vld [vmem:[#allocation6 + $0x48] sm:$0xff]
    %v305 = vld [vmem:[#allocation6 + $0x50] sm:$0xff]
    %v306 = vld [vmem:[#allocation6 + $0x58] sm:$0xff]
    %v307 = vld [vmem:[#allocation6 + $0x60] sm:$0xff]
    %v308 = vld [vmem:[#allocation6 + $0x68] sm:$0xff]
    %v309 = vld [vmem:[#allocation6 + $0x70] sm:$0xff]
    %v310 = vld [vmem:[#allocation6 + $0x78] sm:$0xff]
    %v311 = vld [vmem:[#allocation6 + $0x80] sm:$0xff]
    %v312 = vld [vmem:[#allocation6 + $0x88] sm:$0xff]
    %v313 = vld [vmem:[#allocation6 + $0x90] sm:$0xff]
    %v314 = vld [vmem:[#allocation6 + $0x98] sm:$0xff]
    %v315 = vld [vmem:[#allocation6 + $0xa0] sm:$0xff]
    %v316 = vld [vmem:[#allocation6 + $0xa8] sm:$0xff]
    %v317 = vld [vmem:[#allocation6 + $0xb0] sm:$0xff]
    %v318 = vld [vmem:[#allocation6 + $0xb8] sm:$0xff]
    %v319 = vld [vmem:[#allocation6 + $0xc0] sm:$0xff]
    %v320 = vld [vmem:[#allocation6 + $0xc8] sm:$0xff]
    %v321 = vld [vmem:[#allocation6 + $0xd0] sm:$0xff]
    %v322 = vld [vmem:[#allocation6 + $0xd8] sm:$0xff]
    %v323 = vld [vmem:[#allocation6 + $0xe0] sm:$0xff]
    %v324 = vld [vmem:[#allocation6 + $0xe8] sm:$0xff]
    %v325 = vld [vmem:[#allocation6 + $0xf0] sm:$0xff]
    %v326 = vld [vmem:[#allocation6 + $0xf8] sm:$0xff]
    %v327 = vld [vmem:[#allocation6 + $0x100] sm:$0xff]
    %v328 = vld [vmem:[#allocation6 + $0x108] sm:$0xff]
    %v329 = vld [vmem:[#allocation6 + $0x110] sm:$0xff]
    %v330 = vld [vmem:[#allocation6 + $0x118] sm:$0xff]
    %v331 = vld [vmem:[#allocation6 + $0x120] sm:$0xff]
    %v332 = vld [vmem:[#allocation6 + $0x128] sm:$0xff]
    %v333 = vld [vmem:[#allocation6 + $0x130] sm:$0xff]
    %v334 = vld [vmem:[#allocation6 + $0x138] sm:$0xff]
    %v335 = vld [vmem:[#allocation6 + $0x140] sm:$0xff]
    %v336 = vld [vmem:[#allocation6 + $0x148] sm:$0xff]
    %v337 = vld [vmem:[#allocation6 + $0x150] sm:$0xff]
    %v338 = vld [vmem:[#allocation6 + $0x158] sm:$0xff]
    %v339 = vld [vmem:[#allocation6 + $0x160] sm:$0xff]
    %v340 = vld [vmem:[#allocation6 + $0x168] sm:$0xff]
    %v341 = vld [vmem:[#allocation6 + $0x170] sm:$0xff]
    %v342 = vld [vmem:[#allocation6 + $0x178] sm:$0xff]
    %v343 = vld [vmem:[#allocation6 + $0x180] sm:$0xff]
    %v344 = vld [vmem:[#allocation6 + $0x188] sm:$0xff]
    %v345 = vld [vmem:[#allocation6 + $0x190] sm:$0xff]
    %v346 = vld [vmem:[#allocation6 + $0x198] sm:$0xff]
    %v347 = vld [vmem:[#allocation6 + $0x1a0] sm:$0xff]
    %v348 = vld [vmem:[#allocation6 + $0x1a8] sm:$0xff]
    %v349 = vld [vmem:[#allocation6 + $0x1b0] sm:$0xff]
    %v350 = vld [vmem:[#allocation6 + $0x1b8] sm:$0xff]
    %v351 = vld [vmem:[#allocation6 + $0x1c0] sm:$0xff]
    %v352 = vld [vmem:[#allocation6 + $0x1c8] sm:$0xff]
    %v353 = vld [vmem:[#allocation6 + $0x1d0] sm:$0xff]
    %v354 = vld [vmem:[#allocation6 + $0x1d8] sm:$0xff]
    %v355 = vld [vmem:[#allocation6 + $0x1e0] sm:$0xff]
    %v356 = vld [vmem:[#allocation6 + $0x1e8] sm:$0xff]
    %v357 = vld [vmem:[#allocation6 + $0x1f0] sm:$0xff]
    %v358 = vld [vmem:[#allocation6 + $0x1f8] sm:$0xff]
    %v359 = vld [vmem:[%s4] sm:$0xf]
    %v361 = vperm.slane %v359, 0
    %v362 = vperm.slane %v359, 1
    %v363 = vperm.slane %v359, 2
    %v364 = vperm.slane %v359, 3
    %369 = vmatpush.msra.mxu0 %v355
    %370 = vmatpush.msra.mxu0 %v351
    %371 = vmatpush.msra.mxu0 %v347
    %372 = vmatpush.msra.mxu0 %v343
    %373 = vmatpush.msra.mxu0 %v339
    %374 = vmatpush.msra.mxu0 %v335
    %375 = vmatpush.msra.mxu0 %v331
    %376 = vmatpush.msra.mxu0 %v327
    %377 = vmatpush.msra.mxu0 %v323
    %378 = vmatpush.msra.mxu0 %v319
    %379 = vmatpush.msra.mxu0 %v315
    %380 = vmatpush.msra.mxu0 %v311
    %381 = vmatpush.msra.mxu0 %v307
    %382 = vmatpush.msra.mxu0 %v303
    %383 = vmatpush.msra.mxu0 %v299
    %384 = vmatpush.msra.mxu0 %v295
    %385 = vmatmul.f32.gmra.mxu0 %v287
    %v386 = vpop.f32.mrf.mxu0
    %v387 = vadd.f32 %v361, %v386
    %388 = vmatmul.f32.gmra.mxu0 %v288
    %v389 = vpop.f32.mrf.mxu0
    %v390 = vadd.f32 %v361, %v389
    %391 = vmatmul.f32.gmra.mxu0 %v289
    %v392 = vpop.f32.mrf.mxu0
    %v393 = vadd.f32 %v361, %v392
    %394 = vmatmul.f32.gmra.mxu0 %v290
    %v395 = vpop.f32.mrf.mxu0
    %v396 = vadd.f32 %v361, %v395
    %397 = vmatmul.f32.gmra.mxu0 %v291
    %v398 = vpop.f32.mrf.mxu0
    %v399 = vadd.f32 %v361, %v398
    %400 = vmatmul.f32.gmra.mxu0 %v292
    %v401 = vpop.f32.mrf.mxu0
    %v402 = vadd.f32 %v361, %v401
    %403 = vmatmul.f32.gmra.mxu0 %v293
    %v404 = vpop.f32.mrf.mxu0
    %v405 = vadd.f32 %v361, %v404
    %406 = vmatmul.f32.gmra.mxu0 %v294
    %v407 = vpop.f32.mrf.mxu0
    %v408 = vadd.f32 %v361, %v407
    %409 = vdwg.mxu0
    %410 = vmatpush.msra.mxu0 %v356
    %411 = vmatpush.msra.mxu0 %v352
    %412 = vmatpush.msra.mxu0 %v348
    %413 = vmatpush.msra.mxu0 %v344
    %414 = vmatpush.msra.mxu0 %v340
    %415 = vmatpush.msra.mxu0 %v336
    %416 = vmatpush.msra.mxu0 %v332
    %417 = vmatpush.msra.mxu0 %v328
    %418 = vmatpush.msra.mxu0 %v324
    %419 = vmatpush.msra.mxu0 %v320
    %420 = vmatpush.msra.mxu0 %v316
    %421 = vmatpush.msra.mxu0 %v312
    %422 = vmatpush.msra.mxu0 %v308
    %423 = vmatpush.msra.mxu0 %v304
    %424 = vmatpush.msra.mxu0 %v300
    %425 = vmatpush.msra.mxu0 %v296
    %426 = vmatmul.f32.gmra.mxu0 %v287
    %v427 = vpop.f32.mrf.mxu0
    %v428 = vadd.f32 %v362, %v427
    %429 = vmatmul.f32.gmra.mxu0 %v288
    %v430 = vpop.f32.mrf.mxu0
    %v431 = vadd.f32 %v362, %v430
    %432 = vmatmul.f32.gmra.mxu0 %v289
    %v433 = vpop.f32.mrf.mxu0
    %v434 = vadd.f32 %v362, %v433
    %435 = vmatmul.f32.gmra.mxu0 %v290
    %v436 = vpop.f32.mrf.mxu0
    %v437 = vadd.f32 %v362, %v436
    %438 = vmatmul.f32.gmra.mxu0 %v291
    %v439 = vpop.f32.mrf.mxu0
    %v440 = vadd.f32 %v362, %v439
    %441 = vmatmul.f32.gmra.mxu0 %v292
    %v442 = vpop.f32.mrf.mxu0
    %v443 = vadd.f32 %v362, %v442
    %444 = vmatmul.f32.gmra.mxu0 %v293
    %v445 = vpop.f32.mrf.mxu0
    %v446 = vadd.f32 %v362, %v445
    %447 = vmatmul.f32.gmra.mxu0 %v294
    %v448 = vpop.f32.mrf.mxu0
    %v449 = vadd.f32 %v362, %v448
    %450 = vdwg.mxu0
    %451 = vmatpush.msra.mxu0 %v357
    %452 = vmatpush.msra.mxu0 %v353
    %453 = vmatpush.msra.mxu0 %v349
    %454 = vmatpush.msra.mxu0 %v345
    %455 = vmatpush.msra.mxu0 %v341
    %456 = vmatpush.msra.mxu0 %v337
    %457 = vmatpush.msra.mxu0 %v333
    %458 = vmatpush.msra.mxu0 %v329
    %459 = vmatpush.msra.mxu0 %v325
    %460 = vmatpush.msra.mxu0 %v321
    %461 = vmatpush.msra.mxu0 %v317
    %462 = vmatpush.msra.mxu0 %v313
    %463 = vmatpush.msra.mxu0 %v309
    %464 = vmatpush.msra.mxu0 %v305
    %465 = vmatpush.msra.mxu0 %v301
    %466 = vmatpush.msra.mxu0 %v297
    %467 = vmatmul.f32.gmra.mxu0 %v287
    %v468 = vpop.f32.mrf.mxu0
    %v469 = vadd.f32 %v363, %v468
    %470 = vmatmul.f32.gmra.mxu0 %v288
    %v471 = vpop.f32.mrf.mxu0
    %v472 = vadd.f32 %v363, %v471
    %473 = vmatmul.f32.gmra.mxu0 %v289
    %v474 = vpop.f32.mrf.mxu0
    %v475 = vadd.f32 %v363, %v474
    %476 = vmatmul.f32.gmra.mxu0 %v290
    %v477 = vpop.f32.mrf.mxu0
    %v478 = vadd.f32 %v363, %v477
    %479 = vmatmul.f32.gmra.mxu0 %v291
    %v480 = vpop.f32.mrf.mxu0
    %v481 = vadd.f32 %v363, %v480
    %482 = vmatmul.f32.gmra.mxu0 %v292
    %v483 = vpop.f32.mrf.mxu0
    %v484 = vadd.f32 %v363, %v483
    %485 = vmatmul.f32.gmra.mxu0 %v293
    %v486 = vpop.f32.mrf.mxu0
    %v487 = vadd.f32 %v363, %v486
    %488 = vmatmul.f32.gmra.mxu0 %v294
    %v489 = vpop.f32.mrf.mxu0
    %v490 = vadd.f32 %v363, %v489
    %491 = vdwg.mxu0
    %492 = vmatpush.msra.mxu0 %v358
    %493 = vmatpush.msra.mxu0 %v354
    %494 = vmatpush.msra.mxu0 %v350
    %495 = vmatpush.msra.mxu0 %v346
    %496 = vmatpush.msra.mxu0 %v342
    %497 = vmatpush.msra.mxu0 %v338
    %498 = vmatpush.msra.mxu0 %v334
    %499 = vmatpush.msra.mxu0 %v330
    %500 = vmatpush.msra.mxu0 %v326
    %501 = vmatpush.msra.mxu0 %v322
    %502 = vmatpush.msra.mxu0 %v318
    %503 = vmatpush.msra.mxu0 %v314
    %504 = vmatpush.msra.mxu0 %v310
    %505 = vmatpush.msra.mxu0 %v306
    %506 = vmatpush.msra.mxu0 %v302
    %507 = vmatpush.msra.mxu0 %v298
    %508 = vmatmul.f32.gmra.mxu0 %v287
    %v509 = vpop.f32.mrf.mxu0
    %v510 = vadd.f32 %v364, %v509
    %511 = vmatmul.f32.gmra.mxu0 %v288
    %v512 = vpop.f32.mrf.mxu0
    %v513 = vadd.f32 %v364, %v512
    %514 = vmatmul.f32.gmra.mxu0 %v289
    %v515 = vpop.f32.mrf.mxu0
    %v516 = vadd.f32 %v364, %v515
    %517 = vmatmul.f32.gmra.mxu0 %v290
    %v518 = vpop.f32.mrf.mxu0
    %v519 = vadd.f32 %v364, %v518
    %520 = vmatmul.f32.gmra.mxu0 %v291
    %v521 = vpop.f32.mrf.mxu0
    %v522 = vadd.f32 %v364, %v521
    %523 = vmatmul.f32.gmra.mxu0 %v292
    %v524 = vpop.f32.mrf.mxu0
    %v525 = vadd.f32 %v364, %v524
    %526 = vmatmul.f32.gmra.mxu0 %v293
    %v527 = vpop.f32.mrf.mxu0
    %v528 = vadd.f32 %v364, %v527
    %529 = vmatmul.f32.gmra.mxu0 %v294
    %v530 = vpop.f32.mrf.mxu0
    %v531 = vadd.f32 %v364, %v530
    %532 = vdwg.mxu0
    %533 = vst [vmem:[#allocation3] sm:$0xff] %v387
    %534 = vst [vmem:[#allocation3 + $0x8] sm:$0xff] %v428
    %535 = vst [vmem:[#allocation3 + $0x10] sm:$0xff] %v469
    %536 = vst [vmem:[#allocation3 + $0x18] sm:$0xff] %v510
    %537 = vst [vmem:[#allocation3 + $0x20] sm:$0xff] %v390
    %538 = vst [vmem:[#allocation3 + $0x28] sm:$0xff] %v431
    %539 = vst [vmem:[#allocation3 + $0x30] sm:$0xff] %v472
    %540 = vst [vmem:[#allocation3 + $0x38] sm:$0xff] %v513
    %541 = vst [vmem:[#allocation3 + $0x40] sm:$0xff] %v393
    %542 = vst [vmem:[#allocation3 + $0x48] sm:$0xff] %v434
    %543 = vst [vmem:[#allocation3 + $0x50] sm:$0xff] %v475
    %544 = vst [vmem:[#allocation3 + $0x58] sm:$0xff] %v516
    %545 = vst [vmem:[#allocation3 + $0x60] sm:$0xff] %v396
    %546 = vst [vmem:[#allocation3 + $0x68] sm:$0xff] %v437
    %547 = vst [vmem:[#allocation3 + $0x70] sm:$0xff] %v478
    %548 = vst [vmem:[#allocation3 + $0x78] sm:$0xff] %v519
    %549 = vst [vmem:[#allocation3 + $0x80] sm:$0xff] %v399
    %550 = vst [vmem:[#allocation3 + $0x88] sm:$0xff] %v440
    %551 = vst [vmem:[#allocation3 + $0x90] sm:$0xff] %v481
    %552 = vst [vmem:[#allocation3 + $0x98] sm:$0xff] %v522
    %553 = vst [vmem:[#allocation3 + $0xa0] sm:$0xff] %v402
    %554 = vst [vmem:[#allocation3 + $0xa8] sm:$0xff] %v443
    %555 = vst [vmem:[#allocation3 + $0xb0] sm:$0xff] %v484
    %556 = vst [vmem:[#allocation3 + $0xb8] sm:$0xff] %v525
    %557 = vst [vmem:[#allocation3 + $0xc0] sm:$0xff] %v405
    %558 = vst [vmem:[#allocation3 + $0xc8] sm:$0xff] %v446
    %559 = vst [vmem:[#allocation3 + $0xd0] sm:$0xff] %v487
    %560 = vst [vmem:[#allocation3 + $0xd8] sm:$0xff] %v528
    %561 = vst [vmem:[#allocation3 + $0xe0] sm:$0xff] %v408
    %562 = vst [vmem:[#allocation3 + $0xe8] sm:$0xff] %v449
    %563 = vst [vmem:[#allocation3 + $0xf0] sm:$0xff] %v490
    %564 = vst [vmem:[#allocation3 + $0xf8] sm:$0xff] %v531
    %v565 = vld [vmem:[%s8] sm:$0xff]
    %v566 = vld [vmem:[%s9] sm:$0xff]
    %s567 = smul.u32 0, 4
    %s568 = smul.addr %s567, 8
    %s569 = scalar_lea.vmem [#allocation3], %s568
    %v570 = vld [vmem:[%s569] sm:$0xff]
    %v571 = vld [vmem:[%s569 + $0x8] sm:$0xff]
    %v572 = vld [vmem:[%s569 + $0x10] sm:$0xff]
    %v573 = vld [vmem:[%s569 + $0x18] sm:$0xff]
    %574 = vmatpush.msra.mxu0 %v283
    %575 = vmatpush.msra.mxu0 %v279
    %576 = vmatpush.msra.mxu0 %v275
    %577 = vmatpush.msra.mxu0 %v271
    %578 = vmatpush.msra.mxu0 %v267
    %579 = vmatpush.msra.mxu0 %v263
    %580 = vmatpush.msra.mxu0 %v259
    %581 = vmatpush.msra.mxu0 %v255
    %582 = vmatpush.msra.mxu0 %v251
    %583 = vmatpush.msra.mxu0 %v247
    %584 = vmatpush.msra.mxu0 %v243
    %585 = vmatpush.msra.mxu0 %v239
    %586 = vmatpush.msra.mxu0 %v235
    %587 = vmatpush.msra.mxu0 %v231
    %588 = vmatpush.msra.mxu0 %v227
    %589 = vmatpush.msra.mxu0 %v223
    %590 = vmatmul.f32.gmra.mxu0 %v565
    %v591 = vpop.f32.mrf.mxu0
    %v592 = vadd.f32 0.0, %v591
    %593 = vdwg.mxu0
    %594 = vmatpush.msra.mxu0 %v284
    %595 = vmatpush.msra.mxu0 %v280
    %596 = vmatpush.msra.mxu0 %v276
    %597 = vmatpush.msra.mxu0 %v272
    %598 = vmatpush.msra.mxu0 %v268
    %599 = vmatpush.msra.mxu0 %v264
    %600 = vmatpush.msra.mxu0 %v260
    %601 = vmatpush.msra.mxu0 %v256
    %602 = vmatpush.msra.mxu0 %v252
    %603 = vmatpush.msra.mxu0 %v248
    %604 = vmatpush.msra.mxu0 %v244
    %605 = vmatpush.msra.mxu0 %v240
    %606 = vmatpush.msra.mxu0 %v236
    %607 = vmatpush.msra.mxu0 %v232
    %608 = vmatpush.msra.mxu0 %v228
    %609 = vmatpush.msra.mxu0 %v224
    %610 = vmatmul.f32.gmra.mxu0 %v565
    %v611 = vpop.f32.mrf.mxu0
    %v612 = vadd.f32 0.0, %v611
    %613 = vdwg.mxu0
    %614 = vmatpush.msra.mxu0 %v285
    %615 = vmatpush.msra.mxu0 %v281
    %616 = vmatpush.msra.mxu0 %v277
    %617 = vmatpush.msra.mxu0 %v273
    %618 = vmatpush.msra.mxu0 %v269
    %619 = vmatpush.msra.mxu0 %v265
    %620 = vmatpush.msra.mxu0 %v261
    %621 = vmatpush.msra.mxu0 %v257
    %622 = vmatpush.msra.mxu0 %v253
    %623 = vmatpush.msra.mxu0 %v249
    %624 = vmatpush.msra.mxu0 %v245
    %625 = vmatpush.msra.mxu0 %v241
    %626 = vmatpush.msra.mxu0 %v237
    %627 = vmatpush.msra.mxu0 %v233
    %628 = vmatpush.msra.mxu0 %v229
    %629 = vmatpush.msra.mxu0 %v225
    %630 = vmatmul.f32.gmra.mxu0 %v565
    %v631 = vpop.f32.mrf.mxu0
    %v632 = vadd.f32 0.0, %v631
    %633 = vdwg.mxu0
    %634 = vmatpush.msra.mxu0 %v286
    %635 = vmatpush.msra.mxu0 %v282
    %636 = vmatpush.msra.mxu0 %v278
    %637 = vmatpush.msra.mxu0 %v274
    %638 = vmatpush.msra.mxu0 %v270
    %639 = vmatpush.msra.mxu0 %v266
    %640 = vmatpush.msra.mxu0 %v262
    %641 = vmatpush.msra.mxu0 %v258
    %642 = vmatpush.msra.mxu0 %v254
    %643 = vmatpush.msra.mxu0 %v250
    %644 = vmatpush.msra.mxu0 %v246
    %645 = vmatpush.msra.mxu0 %v242
    %646 = vmatpush.msra.mxu0 %v238
    %647 = vmatpush.msra.mxu0 %v234
    %648 = vmatpush.msra.mxu0 %v230
    %649 = vmatpush.msra.mxu0 %v226
    %650 = vmatmul.f32.gmra.mxu0 %v565
    %v651 = vpop.f32.mrf.mxu0
    %v652 = vadd.f32 0.0, %v651
    %653 = vdwg.mxu0
    %v654 = vadd.f32 %v570, %v592
    %v655 = vadd.f32 %v571, %v612
    %v656 = vadd.f32 %v572, %v632
    %v657 = vadd.f32 %v573, %v652
    %v658 = vxor.u32 %v654, 2147483648
    %v659 = vxor.u32 %v655, 2147483648
    %v660 = vxor.u32 %v656, 2147483648
    %v661 = vmul.f32 %v658, 1.442695
    %v662 = vpow.pop %v661
    %v663 = vmul.f32 %v659, 1.442695
    %v664 = vpow.pop %v663
    %v665 = vmul.f32 %v660, 1.442695
    %v666 = vpow.pop %v665
    %v667 = vadd.f32 %v662, 1.0
    %v668 = vadd.f32 %v664, 1.0
    %v669 = vadd.f32 %v666, 1.0
    %v670 = vrcp.pop %v667
    %v671 = vmul.f32 %v667, %v670
    %v672 = vsub.f32 1.0, %v671
    %v673 = vmul.f32 %v670, %v672
    %v674 = vadd.f32 %v670, %v673
    %vm675 = vweird.f32 %v667
    %vm676 = vweird.f32 %v670
    %vm677 = vmor %vm675, %vm676
    %v678 = vsel %vm677, %v670, %v674
    %v679 = vand.u32 2147483647, %v667
    %vm680 = vcmp.eq.f32.partialorder %v679, 8.507059e+37
    %v681 = vand.u32 %v667, 2147483648
    %v682 = vor.u32 1.1754944e-38, %v681
    %v683 = vsel %vm680, %v682, %v678
    %v684 = vmul.f32 1.0, %v683
    %v685 = vrcp.pop %v668
    %v686 = vmul.f32 %v668, %v685
    %v687 = vsub.f32 1.0, %v686
    %v688 = vmul.f32 %v685, %v687
    %v689 = vadd.f32 %v685, %v688
    %vm690 = vweird.f32 %v668
    %vm691 = vweird.f32 %v685
    %vm692 = vmor %vm690, %vm691
    %v693 = vsel %vm692, %v685, %v689
    %v694 = vand.u32 2147483647, %v668
    %vm695 = vcmp.eq.f32.partialorder %v694, 8.507059e+37
    %v696 = vand.u32 %v668, 2147483648
    %v697 = vor.u32 1.1754944e-38, %v696
    %v698 = vsel %vm695, %v697, %v693
    %v699 = vmul.f32 1.0, %v698
    %v700 = vrcp.pop %v669
    %v701 = vmul.f32 %v669, %v700
    %v702 = vsub.f32 1.0, %v701
    %v703 = vmul.f32 %v700, %v702
    %v704 = vadd.f32 %v700, %v703
    %vm705 = vweird.f32 %v669
    %vm706 = vweird.f32 %v700
    %vm707 = vmor %vm705, %vm706
    %v708 = vsel %vm707, %v700, %v704
    %v709 = vand.u32 2147483647, %v669
    %vm710 = vcmp.eq.f32.partialorder %v709, 8.507059e+37
    %v711 = vand.u32 %v669, 2147483648
    %v712 = vor.u32 1.1754944e-38, %v711
    %v713 = vsel %vm710, %v712, %v708
    %v714 = vmul.f32 1.0, %v713
    %v715 = vtanh.pop %v657
    %v716 = vmul.f32 %v699, %v566
    %v717 = vmul.f32 %v684, %v715
    %v718 = vadd.f32 %v716, %v717
    %v719 = vtanh.pop %v718
    %v720 = vmul.f32 %v714, %v719
    %721 = vst [vmem:[#allocation2] sm:$0xff] %v720
    %s722 = smul.u32 1, 4
    %s723 = smul.addr %s722, 8
    %s724 = scalar_lea.vmem [#allocation3], %s723
    %v725 = vld [vmem:[%s724] sm:$0xff]
    %v726 = vld [vmem:[%s724 + $0x8] sm:$0xff]
    %v727 = vld [vmem:[%s724 + $0x10] sm:$0xff]
    %v728 = vld [vmem:[%s724 + $0x18] sm:$0xff]
    %729 = vmatpush.msra.mxu0 %v283
    %730 = vmatpush.msra.mxu0 %v279
    %731 = vmatpush.msra.mxu0 %v275
    %732 = vmatpush.msra.mxu0 %v271
    %733 = vmatpush.msra.mxu0 %v267
    %734 = vmatpush.msra.mxu0 %v263
    %735 = vmatpush.msra.mxu0 %v259
    %736 = vmatpush.msra.mxu0 %v255
    %737 = vmatpush.msra.mxu0 %v251
    %738 = vmatpush.msra.mxu0 %v247
    %739 = vmatpush.msra.mxu0 %v243
    %740 = vmatpush.msra.mxu0 %v239
    %741 = vmatpush.msra.mxu0 %v235
    %742 = vmatpush.msra.mxu0 %v231
    %743 = vmatpush.msra.mxu0 %v227
    %744 = vmatpush.msra.mxu0 %v223
    %745 = vmatmul.f32.gmra.mxu0 %v720
    %v746 = vpop.f32.mrf.mxu0
    %v747 = vadd.f32 0.0, %v746
    %748 = vdwg.mxu0
    %749 = vmatpush.msra.mxu0 %v284
    %750 = vmatpush.msra.mxu0 %v280
    %751 = vmatpush.msra.mxu0 %v276
    %752 = vmatpush.msra.mxu0 %v272
    %753 = vmatpush.msra.mxu0 %v268
    %754 = vmatpush.msra.mxu0 %v264
    %755 = vmatpush.msra.mxu0 %v260
    %756 = vmatpush.msra.mxu0 %v256
    %757 = vmatpush.msra.mxu0 %v252
    %758 = vmatpush.msra.mxu0 %v248
    %759 = vmatpush.msra.mxu0 %v244
    %760 = vmatpush.msra.mxu0 %v240
    %761 = vmatpush.msra.mxu0 %v236
    %762 = vmatpush.msra.mxu0 %v232
    %763 = vmatpush.msra.mxu0 %v228
    %764 = vmatpush.msra.mxu0 %v224
    %765 = vmatmul.f32.gmra.mxu0 %v720
    %v766 = vpop.f32.mrf.mxu0
    %v767 = vadd.f32 0.0, %v766
    %768 = vdwg.mxu0
    %769 = vmatpush.msra.mxu0 %v285
    %770 = vmatpush.msra.mxu0 %v281
    %771 = vmatpush.msra.mxu0 %v277
    %772 = vmatpush.msra.mxu0 %v273
    %773 = vmatpush.msra.mxu0 %v269
    %774 = vmatpush.msra.mxu0 %v265
    %775 = vmatpush.msra.mxu0 %v261
    %776 = vmatpush.msra.mxu0 %v257
    %777 = vmatpush.msra.mxu0 %v253
    %778 = vmatpush.msra.mxu0 %v249
    %779 = vmatpush.msra.mxu0 %v245
    %780 = vmatpush.msra.mxu0 %v241
    %781 = vmatpush.msra.mxu0 %v237
    %782 = vmatpush.msra.mxu0 %v233
    %783 = vmatpush.msra.mxu0 %v229
    %784 = vmatpush.msra.mxu0 %v225
    %785 = vmatmul.f32.gmra.mxu0 %v720
    %v786 = vpop.f32.mrf.mxu0
    %v787 = vadd.f32 0.0, %v786
    %788 = vdwg.mxu0
    %789 = vmatpush.msra.mxu0 %v286
    %790 = vmatpush.msra.mxu0 %v282
    %791 = vmatpush.msra.mxu0 %v278
    %792 = vmatpush.msra.mxu0 %v274
    %793 = vmatpush.msra.mxu0 %v270
    %794 = vmatpush.msra.mxu0 %v266
    %795 = vmatpush.msra.mxu0 %v262
    %796 = vmatpush.msra.mxu0 %v258
    %797 = vmatpush.msra.mxu0 %v254
    %798 = vmatpush.msra.mxu0 %v250
    %799 = vmatpush.msra.mxu0 %v246
    %800 = vmatpush.msra.mxu0 %v242
    %801 = vmatpush.msra.mxu0 %v238
    %802 = vmatpush.msra.mxu0 %v234
    %803 = vmatpush.msra.mxu0 %v230
    %804 = vmatpush.msra.mxu0 %v226
    %805 = vmatmul.f32.gmra.mxu0 %v720
    %v806 = vpop.f32.mrf.mxu0
    %v807 = vadd.f32 0.0, %v806
    %808 = vdwg.mxu0
    %v809 = vadd.f32 %v725, %v747
    %v810 = vadd.f32 %v726, %v767
    %v811 = vadd.f32 %v727, %v787
    %v812 = vadd.f32 %v728, %v807
    %v813 = vxor.u32 %v809, 2147483648
    %v814 = vxor.u32 %v810, 2147483648
    %v815 = vxor.u32 %v811, 2147483648
    %v816 = vmul.f32 %v813, 1.442695
    %v817 = vpow.pop %v816
    %v818 = vmul.f32 %v814, 1.442695
    %v819 = vpow.pop %v818
    %v820 = vmul.f32 %v815, 1.442695
    %v821 = vpow.pop %v820
    %v822 = vadd.f32 %v817, 1.0
    %v823 = vadd.f32 %v819, 1.0
    %v824 = vadd.f32 %v821, 1.0
    %v825 = vrcp.pop %v822
    %v826 = vmul.f32 %v822, %v825
    %v827 = vsub.f32 1.0, %v826
    %v828 = vmul.f32 %v825, %v827
    %v829 = vadd.f32 %v825, %v828
    %vm830 = vweird.f32 %v822
    %vm831 = vweird.f32 %v825
    %vm832 = vmor %vm830, %vm831
    %v833 = vsel %vm832, %v825, %v829
    %v834 = vand.u32 2147483647, %v822
    %vm835 = vcmp.eq.f32.partialorder %v834, 8.507059e+37
    %v836 = vand.u32 %v822, 2147483648
    %v837 = vor.u32 1.1754944e-38, %v836
    %v838 = vsel %vm835, %v837, %v833
    %v839 = vmul.f32 1.0, %v838
    %v840 = vrcp.pop %v823
    %v841 = vmul.f32 %v823, %v840
    %v842 = vsub.f32 1.0, %v841
    %v843 = vmul.f32 %v840, %v842
    %v844 = vadd.f32 %v840, %v843
    %vm845 = vweird.f32 %v823
    %vm846 = vweird.f32 %v840
    %vm847 = vmor %vm845, %vm846
    %v848 = vsel %vm847, %v840, %v844
    %v849 = vand.u32 2147483647, %v823
    %vm850 = vcmp.eq.f32.partialorder %v849, 8.507059e+37
    %v851 = vand.u32 %v823, 2147483648
    %v852 = vor.u32 1.1754944e-38, %v851
    %v853 = vsel %vm850, %v852, %v848
    %v854 = vmul.f32 1.0, %v853
    %v855 = vrcp.pop %v824
    %v856 = vmul.f32 %v824, %v855
    %v857 = vsub.f32 1.0, %v856
    %v858 = vmul.f32 %v855, %v857
    %v859 = vadd.f32 %v855, %v858
    %vm860 = vweird.f32 %v824
    %vm861 = vweird.f32 %v855
    %vm862 = vmor %vm860, %vm861
    %v863 = vsel %vm862, %v855, %v859
    %v864 = vand.u32 2147483647, %v824
    %vm865 = vcmp.eq.f32.partialorder %v864, 8.507059e+37
    %v866 = vand.u32 %v824, 2147483648
    %v867 = vor.u32 1.1754944e-38, %v866
    %v868 = vsel %vm865, %v867, %v863
    %v869 = vmul.f32 1.0, %v868
    %v870 = vtanh.pop %v812
    %v871 = vmul.f32 %v854, %v718
    %v872 = vmul.f32 %v839, %v870
    %v873 = vadd.f32 %v871, %v872
    %v874 = vtanh.pop %v873
    %v875 = vmul.f32 %v869, %v874
    %s876 = scalar_lea.vmem [#allocation2], 8
    %877 = vst [vmem:[%s876] sm:$0xff] %v875
    %s878 = smul.u32 2, 4
    %s879 = smul.addr %s878, 8
    %s880 = scalar_lea.vmem [#allocation3], %s879
    %v881 = vld [vmem:[%s880] sm:$0xff]
    %v882 = vld [vmem:[%s880 + $0x8] sm:$0xff]
    %v883 = vld [vmem:[%s880 + $0x10] sm:$0xff]
    %v884 = vld [vmem:[%s880 + $0x18] sm:$0xff]
    %885 = vmatpush.msra.mxu0 %v283
    %886 = vmatpush.msra.mxu0 %v279
    %887 = vmatpush.msra.mxu0 %v275
    %888 = vmatpush.msra.mxu0 %v271
    %889 = vmatpush.msra.mxu0 %v267
    %890 = vmatpush.msra.mxu0 %v263
    %891 = vmatpush.msra.mxu0 %v259
    %892 = vmatpush.msra.mxu0 %v255
    %893 = vmatpush.msra.mxu0 %v251
    %894 = vmatpush.msra.mxu0 %v247
    %895 = vmatpush.msra.mxu0 %v243
    %896 = vmatpush.msra.mxu0 %v239
    %897 = vmatpush.msra.mxu0 %v235
    %898 = vmatpush.msra.mxu0 %v231
    %899 = vmatpush.msra.mxu0 %v227
    %900 = vmatpush.msra.mxu0 %v223
    %901 = vmatmul.f32.gmra.mxu0 %v875
    %v902 = vpop.f32.mrf.mxu0
    %v903 = vadd.f32 0.0, %v902
    %904 = vdwg.mxu0
    %905 = vmatpush.msra.mxu0 %v284
    %906 = vmatpush.msra.mxu0 %v280
    %907 = vmatpush.msra.mxu0 %v276
    %908 = vmatpush.msra.mxu0 %v272
    %909 = vmatpush.msra.mxu0 %v268
    %910 = vmatpush.msra.mxu0 %v264
    %911 = vmatpush.msra.mxu0 %v260
    %912 = vmatpush.msra.mxu0 %v256
    %913 = vmatpush.msra.mxu0 %v252
    %914 = vmatpush.msra.mxu0 %v248
    %915 = vmatpush.msra.mxu0 %v244
    %916 = vmatpush.msra.mxu0 %v240
    %917 = vmatpush.msra.mxu0 %v236
    %918 = vmatpush.msra.mxu0 %v232
    %919 = vmatpush.msra.mxu0 %v228
    %920 = vmatpush.msra.mxu0 %v224
    %921 = vmatmul.f32.gmra.mxu0 %v875
    %v922 = vpop.f32.mrf.mxu0
    %v923 = vadd.f32 0.0, %v922
    %924 = vdwg.mxu0
    %925 = vmatpush.msra.mxu0 %v285
    %926 = vmatpush.msra.mxu0 %v281
    %927 = vmatpush.msra.mxu0 %v277
    %928 = vmatpush.msra.mxu0 %v273
    %929 = vmatpush.msra.mxu0 %v269
    %930 = vmatpush.msra.mxu0 %v265
    %931 = vmatpush.msra.mxu0 %v261
    %932 = vmatpush.msra.mxu0 %v257
    %933 = vmatpush.msra.mxu0 %v253
    %934 = vmatpush.msra.mxu0 %v249
    %935 = vmatpush.msra.mxu0 %v245
    %936 = vmatpush.msra.mxu0 %v241
    %937 = vmatpush.msra.mxu0 %v237
    %938 = vmatpush.msra.mxu0 %v233
    %939 = vmatpush.msra.mxu0 %v229
    %940 = vmatpush.msra.mxu0 %v225
    %941 = vmatmul.f32.gmra.mxu0 %v875
    %v942 = vpop.f32.mrf.mxu0
    %v943 = vadd.f32 0.0, %v942
    %944 = vdwg.mxu0
    %945 = vmatpush.msra.mxu0 %v286
    %946 = vmatpush.msra.mxu0 %v282
    %947 = vmatpush.msra.mxu0 %v278
    %948 = vmatpush.msra.mxu0 %v274
    %949 = vmatpush.msra.mxu0 %v270
    %950 = vmatpush.msra.mxu0 %v266
    %951 = vmatpush.msra.mxu0 %v262
    %952 = vmatpush.msra.mxu0 %v258
    %953 = vmatpush.msra.mxu0 %v254
    %954 = vmatpush.msra.mxu0 %v250
    %955 = vmatpush.msra.mxu0 %v246
    %956 = vmatpush.msra.mxu0 %v242
    %957 = vmatpush.msra.mxu0 %v238
    %958 = vmatpush.msra.mxu0 %v234
    %959 = vmatpush.msra.mxu0 %v230
    %960 = vmatpush.msra.mxu0 %v226
    %961 = vmatmul.f32.gmra.mxu0 %v875
    %v962 = vpop.f32.mrf.mxu0
    %v963 = vadd.f32 0.0, %v962
    %964 = vdwg.mxu0
    %v965 = vadd.f32 %v881, %v903
    %v966 = vadd.f32 %v882, %v923
    %v967 = vadd.f32 %v883, %v943
    %v968 = vadd.f32 %v884, %v963
    %v969 = vxor.u32 %v965, 2147483648
    %v970 = vxor.u32 %v966, 2147483648
    %v971 = vxor.u32 %v967, 2147483648
    %v972 = vmul.f32 %v969, 1.442695
    %v973 = vpow.pop %v972
    %v974 = vmul.f32 %v970, 1.442695
    %v975 = vpow.pop %v974
    %v976 = vmul.f32 %v971, 1.442695
    %v977 = vpow.pop %v976
    %v978 = vadd.f32 %v973, 1.0
    %v979 = vadd.f32 %v975, 1.0
    %v980 = vadd.f32 %v977, 1.0
    %v981 = vrcp.pop %v978
    %v982 = vmul.f32 %v978, %v981
    %v983 = vsub.f32 1.0, %v982
    %v984 = vmul.f32 %v981, %v983
    %v985 = vadd.f32 %v981, %v984
    %vm986 = vweird.f32 %v978
    %vm987 = vweird.f32 %v981
    %vm988 = vmor %vm986, %vm987
    %v989 = vsel %vm988, %v981, %v985
    %v990 = vand.u32 2147483647, %v978
    %vm991 = vcmp.eq.f32.partialorder %v990, 8.507059e+37
    %v992 = vand.u32 %v978, 2147483648
    %v993 = vor.u32 1.1754944e-38, %v992
    %v994 = vsel %vm991, %v993, %v989
    %v995 = vmul.f32 1.0, %v994
    %v996 = vrcp.pop %v979
    %v997 = vmul.f32 %v979, %v996
    %v998 = vsub.f32 1.0, %v997
    %v999 = vmul.f32 %v996, %v998
    %v1000 = vadd.f32 %v996, %v999
    %vm1001 = vweird.f32 %v979
    %vm1002 = vweird.f32 %v996
    %vm1003 = vmor %vm1001, %vm1002
    %v1004 = vsel %vm1003, %v996, %v1000
    %v1005 = vand.u32 2147483647, %v979
    %vm1006 = vcmp.eq.f32.partialorder %v1005, 8.507059e+37
    %v1007 = vand.u32 %v979, 2147483648
    %v1008 = vor.u32 1.1754944e-38, %v1007
    %v1009 = vsel %vm1006, %v1008, %v1004
    %v1010 = vmul.f32 1.0, %v1009
    %v1011 = vrcp.pop %v980
    %v1012 = vmul.f32 %v980, %v1011
    %v1013 = vsub.f32 1.0, %v1012
    %v1014 = vmul.f32 %v1011, %v1013
    %v1015 = vadd.f32 %v1011, %v1014
    %vm1016 = vweird.f32 %v980
    %vm1017 = vweird.f32 %v1011
    %vm1018 = vmor %vm1016, %vm1017
    %v1019 = vsel %vm1018, %v1011, %v1015
    %v1020 = vand.u32 2147483647, %v980
    %vm1021 = vcmp.eq.f32.partialorder %v1020, 8.507059e+37
    %v1022 = vand.u32 %v980, 2147483648
    %v1023 = vor.u32 1.1754944e-38, %v1022
    %v1024 = vsel %vm1021, %v1023, %v1019
    %v1025 = vmul.f32 1.0, %v1024
    %v1026 = vtanh.pop %v968
    %v1027 = vmul.f32 %v1010, %v873
    %v1028 = vmul.f32 %v995, %v1026
    %v1029 = vadd.f32 %v1027, %v1028
    %v1030 = vtanh.pop %v1029
    %v1031 = vmul.f32 %v1025, %v1030
    %s1032 = scalar_lea.vmem [#allocation2], 16
    %1033 = vst [vmem:[%s1032] sm:$0xff] %v1031
    %s1034 = smul.u32 3, 4
    %s1035 = smul.addr %s1034, 8
    %s1036 = scalar_lea.vmem [#allocation3], %s1035
    %v1037 = vld [vmem:[%s1036] sm:$0xff]
    %v1038 = vld [vmem:[%s1036 + $0x8] sm:$0xff]
    %v1039 = vld [vmem:[%s1036 + $0x10] sm:$0xff]
    %v1040 = vld [vmem:[%s1036 + $0x18] sm:$0xff]
    %1041 = vmatpush.msra.mxu0 %v283
    %1042 = vmatpush.msra.mxu0 %v279
    %1043 = vmatpush.msra.mxu0 %v275
    %1044 = vmatpush.msra.mxu0 %v271
    %1045 = vmatpush.msra.mxu0 %v267
    %1046 = vmatpush.msra.mxu0 %v263
    %1047 = vmatpush.msra.mxu0 %v259
    %1048 = vmatpush.msra.mxu0 %v255
    %1049 = vmatpush.msra.mxu0 %v251
    %1050 = vmatpush.msra.mxu0 %v247
    %1051 = vmatpush.msra.mxu0 %v243
    %1052 = vmatpush.msra.mxu0 %v239
    %1053 = vmatpush.msra.mxu0 %v235
    %1054 = vmatpush.msra.mxu0 %v231
    %1055 = vmatpush.msra.mxu0 %v227
    %1056 = vmatpush.msra.mxu0 %v223
    %1057 = vmatmul.f32.gmra.mxu0 %v1031
    %v1058 = vpop.f32.mrf.mxu0
    %v1059 = vadd.f32 0.0, %v1058
    %1060 = vdwg.mxu0
    %1061 = vmatpush.msra.mxu0 %v284
    %1062 = vmatpush.msra.mxu0 %v280
    %1063 = vmatpush.msra.mxu0 %v276
    %1064 = vmatpush.msra.mxu0 %v272
    %1065 = vmatpush.msra.mxu0 %v268
    %1066 = vmatpush.msra.mxu0 %v264
    %1067 = vmatpush.msra.mxu0 %v260
    %1068 = vmatpush.msra.mxu0 %v256
    %1069 = vmatpush.msra.mxu0 %v252
    %1070 = vmatpush.msra.mxu0 %v248
    %1071 = vmatpush.msra.mxu0 %v244
    %1072 = vmatpush.msra.mxu0 %v240
    %1073 = vmatpush.msra.mxu0 %v236
    %1074 = vmatpush.msra.mxu0 %v232
    %1075 = vmatpush.msra.mxu0 %v228
    %1076 = vmatpush.msra.mxu0 %v224
    %1077 = vmatmul.f32.gmra.mxu0 %v1031
    %v1078 = vpop.f32.mrf.mxu0
    %v1079 = vadd.f32 0.0, %v1078
    %1080 = vdwg.mxu0
    %1081 = vmatpush.msra.mxu0 %v285
    %1082 = vmatpush.msra.mxu0 %v281
    %1083 = vmatpush.msra.mxu0 %v277
    %1084 = vmatpush.msra.mxu0 %v273
    %1085 = vmatpush.msra.mxu0 %v269
    %1086 = vmatpush.msra.mxu0 %v265
    %1087 = vmatpush.msra.mxu0 %v261
    %1088 = vmatpush.msra.mxu0 %v257
    %1089 = vmatpush.msra.mxu0 %v253
    %1090 = vmatpush.msra.mxu0 %v249
    %1091 = vmatpush.msra.mxu0 %v245
    %1092 = vmatpush.msra.mxu0 %v241
    %1093 = vmatpush.msra.mxu0 %v237
    %1094 = vmatpush.msra.mxu0 %v233
    %1095 = vmatpush.msra.mxu0 %v229
    %1096 = vmatpush.msra.mxu0 %v225
    %1097 = vmatmul.f32.gmra.mxu0 %v1031
    %v1098 = vpop.f32.mrf.mxu0
    %v1099 = vadd.f32 0.0, %v1098
    %1100 = vdwg.mxu0
    %1101 = vmatpush.msra.mxu0 %v286
    %1102 = vmatpush.msra.mxu0 %v282
    %1103 = vmatpush.msra.mxu0 %v278
    %1104 = vmatpush.msra.mxu0 %v274
    %1105 = vmatpush.msra.mxu0 %v270
    %1106 = vmatpush.msra.mxu0 %v266
    %1107 = vmatpush.msra.mxu0 %v262
    %1108 = vmatpush.msra.mxu0 %v258
    %1109 = vmatpush.msra.mxu0 %v254
    %1110 = vmatpush.msra.mxu0 %v250
    %1111 = vmatpush.msra.mxu0 %v246
    %1112 = vmatpush.msra.mxu0 %v242
    %1113 = vmatpush.msra.mxu0 %v238
    %1114 = vmatpush.msra.mxu0 %v234
    %1115 = vmatpush.msra.mxu0 %v230
    %1116 = vmatpush.msra.mxu0 %v226
    %1117 = vmatmul.f32.gmra.mxu0 %v1031
    %v1118 = vpop.f32.mrf.mxu0
    %v1119 = vadd.f32 0.0, %v1118
    %1120 = vdwg.mxu0
    %v1121 = vadd.f32 %v1037, %v1059
    %v1122 = vadd.f32 %v1038, %v1079
    %v1123 = vadd.f32 %v1039, %v1099
    %v1124 = vadd.f32 %v1040, %v1119
    %v1125 = vxor.u32 %v1121, 2147483648
    %v1126 = vxor.u32 %v1122, 2147483648
    %v1127 = vxor.u32 %v1123, 2147483648
    %v1128 = vmul.f32 %v1125, 1.442695
    %v1129 = vpow.pop %v1128
    %v1130 = vmul.f32 %v1126, 1.442695
    %v1131 = vpow.pop %v1130
    %v1132 = vmul.f32 %v1127, 1.442695
    %v1133 = vpow.pop %v1132
    %v1134 = vadd.f32 %v1129, 1.0
    %v1135 = vadd.f32 %v1131, 1.0
    %v1136 = vadd.f32 %v1133, 1.0
    %v1137 = vrcp.pop %v1134
    %v1138 = vmul.f32 %v1134, %v1137
    %v1139 = vsub.f32 1.0, %v1138
    %v1140 = vmul.f32 %v1137, %v1139
    %v1141 = vadd.f32 %v1137, %v1140
    %vm1142 = vweird.f32 %v1134
    %vm1143 = vweird.f32 %v1137
    %vm1144 = vmor %vm1142, %vm1143
    %v1145 = vsel %vm1144, %v1137, %v1141
    %v1146 = vand.u32 2147483647, %v1134
    %vm1147 = vcmp.eq.f32.partialorder %v1146, 8.507059e+37
    %v1148 = vand.u32 %v1134, 2147483648
    %v1149 = vor.u32 1.1754944e-38, %v1148
    %v1150 = vsel %vm1147, %v1149, %v1145
    %v1151 = vmul.f32 1.0, %v1150
    %v1152 = vrcp.pop %v1135
    %v1153 = vmul.f32 %v1135, %v1152
    %v1154 = vsub.f32 1.0, %v1153
    %v1155 = vmul.f32 %v1152, %v1154
    %v1156 = vadd.f32 %v1152, %v1155
    %vm1157 = vweird.f32 %v1135
    %vm1158 = vweird.f32 %v1152
    %vm1159 = vmor %vm1157, %vm1158
    %v1160 = vsel %vm1159, %v1152, %v1156
    %v1161 = vand.u32 2147483647, %v1135
    %vm1162 = vcmp.eq.f32.partialorder %v1161, 8.507059e+37
    %v1163 = vand.u32 %v1135, 2147483648
    %v1164 = vor.u32 1.1754944e-38, %v1163
    %v1165 = vsel %vm1162, %v1164, %v1160
    %v1166 = vmul.f32 1.0, %v1165
    %v1167 = vrcp.pop %v1136
    %v1168 = vmul.f32 %v1136, %v1167
    %v1169 = vsub.f32 1.0, %v1168
    %v1170 = vmul.f32 %v1167, %v1169
    %v1171 = vadd.f32 %v1167, %v1170
    %vm1172 = vweird.f32 %v1136
    %vm1173 = vweird.f32 %v1167
    %vm1174 = vmor %vm1172, %vm1173
    %v1175 = vsel %vm1174, %v1167, %v1171
    %v1176 = vand.u32 2147483647, %v1136
    %vm1177 = vcmp.eq.f32.partialorder %v1176, 8.507059e+37
    %v1178 = vand.u32 %v1136, 2147483648
    %v1179 = vor.u32 1.1754944e-38, %v1178
    %v1180 = vsel %vm1177, %v1179, %v1175
    %v1181 = vmul.f32 1.0, %v1180
    %v1182 = vtanh.pop %v1124
    %v1183 = vmul.f32 %v1166, %v1029
    %v1184 = vmul.f32 %v1151, %v1182
    %v1185 = vadd.f32 %v1183, %v1184
    %v1186 = vtanh.pop %v1185
    %v1187 = vmul.f32 %v1181, %v1186
    %s1188 = scalar_lea.vmem [#allocation2], 24
    %1189 = vst [vmem:[%s1188] sm:$0xff] %v1187
    %s1190 = smul.u32 4, 4
    %s1191 = smul.addr %s1190, 8
    %s1192 = scalar_lea.vmem [#allocation3], %s1191
    %v1193 = vld [vmem:[%s1192] sm:$0xff]
    %v1194 = vld [vmem:[%s1192 + $0x8] sm:$0xff]
    %v1195 = vld [vmem:[%s1192 + $0x10] sm:$0xff]
    %v1196 = vld [vmem:[%s1192 + $0x18] sm:$0xff]
    %1197 = vmatpush.msra.mxu0 %v283
    %1198 = vmatpush.msra.mxu0 %v279
    %1199 = vmatpush.msra.mxu0 %v275
    %1200 = vmatpush.msra.mxu0 %v271
    %1201 = vmatpush.msra.mxu0 %v267
    %1202 = vmatpush.msra.mxu0 %v263
    %1203 = vmatpush.msra.mxu0 %v259
    %1204 = vmatpush.msra.mxu0 %v255
    %1205 = vmatpush.msra.mxu0 %v251
    %1206 = vmatpush.msra.mxu0 %v247
    %1207 = vmatpush.msra.mxu0 %v243
    %1208 = vmatpush.msra.mxu0 %v239
    %1209 = vmatpush.msra.mxu0 %v235
    %1210 = vmatpush.msra.mxu0 %v231
    %1211 = vmatpush.msra.mxu0 %v227
    %1212 = vmatpush.msra.mxu0 %v223
    %1213 = vmatmul.f32.gmra.mxu0 %v1187
    %v1214 = vpop.f32.mrf.mxu0
    %v1215 = vadd.f32 0.0, %v1214
    %1216 = vdwg.mxu0
    %1217 = vmatpush.msra.mxu0 %v284
    %1218 = vmatpush.msra.mxu0 %v280
    %1219 = vmatpush.msra.mxu0 %v276
    %1220 = vmatpush.msra.mxu0 %v272
    %1221 = vmatpush.msra.mxu0 %v268
    %1222 = vmatpush.msra.mxu0 %v264
    %1223 = vmatpush.msra.mxu0 %v260
    %1224 = vmatpush.msra.mxu0 %v256
    %1225 = vmatpush.msra.mxu0 %v252
    %1226 = vmatpush.msra.mxu0 %v248
    %1227 = vmatpush.msra.mxu0 %v244
    %1228 = vmatpush.msra.mxu0 %v240
    %1229 = vmatpush.msra.mxu0 %v236
    %1230 = vmatpush.msra.mxu0 %v232
    %1231 = vmatpush.msra.mxu0 %v228
    %1232 = vmatpush.msra.mxu0 %v224
    %1233 = vmatmul.f32.gmra.mxu0 %v1187
    %v1234 = vpop.f32.mrf.mxu0
    %v1235 = vadd.f32 0.0, %v1234
    %1236 = vdwg.mxu0
    %1237 = vmatpush.msra.mxu0 %v285
    %1238 = vmatpush.msra.mxu0 %v281
    %1239 = vmatpush.msra.mxu0 %v277
    %1240 = vmatpush.msra.mxu0 %v273
    %1241 = vmatpush.msra.mxu0 %v269
    %1242 = vmatpush.msra.mxu0 %v265
    %1243 = vmatpush.msra.mxu0 %v261
    %1244 = vmatpush.msra.mxu0 %v257
    %1245 = vmatpush.msra.mxu0 %v253
    %1246 = vmatpush.msra.mxu0 %v249
    %1247 = vmatpush.msra.mxu0 %v245
    %1248 = vmatpush.msra.mxu0 %v241
    %1249 = vmatpush.msra.mxu0 %v237
    %1250 = vmatpush.msra.mxu0 %v233
    %1251 = vmatpush.msra.mxu0 %v229
    %1252 = vmatpush.msra.mxu0 %v225
    %1253 = vmatmul.f32.gmra.mxu0 %v1187
    %v1254 = vpop.f32.mrf.mxu0
    %v1255 = vadd.f32 0.0, %v1254
    %1256 = vdwg.mxu0
    %1257 = vmatpush.msra.mxu0 %v286
    %1258 = vmatpush.msra.mxu0 %v282
    %1259 = vmatpush.msra.mxu0 %v278
    %1260 = vmatpush.msra.mxu0 %v274
    %1261 = vmatpush.msra.mxu0 %v270
    %1262 = vmatpush.msra.mxu0 %v266
    %1263 = vmatpush.msra.mxu0 %v262
    %1264 = vmatpush.msra.mxu0 %v258
    %1265 = vmatpush.msra.mxu0 %v254
    %1266 = vmatpush.msra.mxu0 %v250
    %1267 = vmatpush.msra.mxu0 %v246
    %1268 = vmatpush.msra.mxu0 %v242
    %1269 = vmatpush.msra.mxu0 %v238
    %1270 = vmatpush.msra.mxu0 %v234
    %1271 = vmatpush.msra.mxu0 %v230
    %1272 = vmatpush.msra.mxu0 %v226
    %1273 = vmatmul.f32.gmra.mxu0 %v1187
    %v1274 = vpop.f32.mrf.mxu0
    %v1275 = vadd.f32 0.0, %v1274
    %1276 = vdwg.mxu0
    %v1277 = vadd.f32 %v1193, %v1215
    %v1278 = vadd.f32 %v1194, %v1235
    %v1279 = vadd.f32 %v1195, %v1255
    %v1280 = vadd.f32 %v1196, %v1275
    %v1281 = vxor.u32 %v1277, 2147483648
    %v1282 = vxor.u32 %v1278, 2147483648
    %v1283 = vxor.u32 %v1279, 2147483648
    %v1284 = vmul.f32 %v1281, 1.442695
    %v1285 = vpow.pop %v1284
    %v1286 = vmul.f32 %v1282, 1.442695
    %v1287 = vpow.pop %v1286
    %v1288 = vmul.f32 %v1283, 1.442695
    %v1289 = vpow.pop %v1288
    %v1290 = vadd.f32 %v1285, 1.0
    %v1291 = vadd.f32 %v1287, 1.0
    %v1292 = vadd.f32 %v1289, 1.0
    %v1293 = vrcp.pop %v1290
    %v1294 = vmul.f32 %v1290, %v1293
    %v1295 = vsub.f32 1.0, %v1294
    %v1296 = vmul.f32 %v1293, %v1295
    %v1297 = vadd.f32 %v1293, %v1296
    %vm1298 = vweird.f32 %v1290
    %vm1299 = vweird.f32 %v1293
    %vm1300 = vmor %vm1298, %vm1299
    %v1301 = vsel %vm1300, %v1293, %v1297
    %v1302 = vand.u32 2147483647, %v1290
    %vm1303 = vcmp.eq.f32.partialorder %v1302, 8.507059e+37
    %v1304 = vand.u32 %v1290, 2147483648
    %v1305 = vor.u32 1.1754944e-38, %v1304
    %v1306 = vsel %vm1303, %v1305, %v1301
    %v1307 = vmul.f32 1.0, %v1306
    %v1308 = vrcp.pop %v1291
    %v1309 = vmul.f32 %v1291, %v1308
    %v1310 = vsub.f32 1.0, %v1309
    %v1311 = vmul.f32 %v1308, %v1310
    %v1312 = vadd.f32 %v1308, %v1311
    %vm1313 = vweird.f32 %v1291
    %vm1314 = vweird.f32 %v1308
    %vm1315 = vmor %vm1313, %vm1314
    %v1316 = vsel %vm1315, %v1308, %v1312
    %v1317 = vand.u32 2147483647, %v1291
    %vm1318 = vcmp.eq.f32.partialorder %v1317, 8.507059e+37
    %v1319 = vand.u32 %v1291, 2147483648
    %v1320 = vor.u32 1.1754944e-38, %v1319
    %v1321 = vsel %vm1318, %v1320, %v1316
    %v1322 = vmul.f32 1.0, %v1321
    %v1323 = vrcp.pop %v1292
    %v1324 = vmul.f32 %v1292, %v1323
    %v1325 = vsub.f32 1.0, %v1324
    %v1326 = vmul.f32 %v1323, %v1325
    %v1327 = vadd.f32 %v1323, %v1326
    %vm1328 = vweird.f32 %v1292
    %vm1329 = vweird.f32 %v1323
    %vm1330 = vmor %vm1328, %vm1329
    %v1331 = vsel %vm1330, %v1323, %v1327
    %v1332 = vand.u32 2147483647, %v1292
    %vm1333 = vcmp.eq.f32.partialorder %v1332, 8.507059e+37
    %v1334 = vand.u32 %v1292, 2147483648
    %v1335 = vor.u32 1.1754944e-38, %v1334
    %v1336 = vsel %vm1333, %v1335, %v1331
    %v1337 = vmul.f32 1.0, %v1336
    %v1338 = vtanh.pop %v1280
    %v1339 = vmul.f32 %v1322, %v1185
    %v1340 = vmul.f32 %v1307, %v1338
    %v1341 = vadd.f32 %v1339, %v1340
    %v1342 = vtanh.pop %v1341
    %v1343 = vmul.f32 %v1337, %v1342
    %s1344 = scalar_lea.vmem [#allocation2], 32
    %1345 = vst [vmem:[%s1344] sm:$0xff] %v1343
    %s1346 = smul.u32 5, 4
    %s1347 = smul.addr %s1346, 8
    %s1348 = scalar_lea.vmem [#allocation3], %s1347
    %v1349 = vld [vmem:[%s1348] sm:$0xff]
    %v1350 = vld [vmem:[%s1348 + $0x8] sm:$0xff]
    %v1351 = vld [vmem:[%s1348 + $0x10] sm:$0xff]
    %v1352 = vld [vmem:[%s1348 + $0x18] sm:$0xff]
    %1353 = vmatpush.msra.mxu0 %v283
    %1354 = vmatpush.msra.mxu0 %v279
    %1355 = vmatpush.msra.mxu0 %v275
    %1356 = vmatpush.msra.mxu0 %v271
    %1357 = vmatpush.msra.mxu0 %v267
    %1358 = vmatpush.msra.mxu0 %v263
    %1359 = vmatpush.msra.mxu0 %v259
    %1360 = vmatpush.msra.mxu0 %v255
    %1361 = vmatpush.msra.mxu0 %v251
    %1362 = vmatpush.msra.mxu0 %v247
    %1363 = vmatpush.msra.mxu0 %v243
    %1364 = vmatpush.msra.mxu0 %v239
    %1365 = vmatpush.msra.mxu0 %v235
    %1366 = vmatpush.msra.mxu0 %v231
    %1367 = vmatpush.msra.mxu0 %v227
    %1368 = vmatpush.msra.mxu0 %v223
    %1369 = vmatmul.f32.gmra.mxu0 %v1343
    %v1370 = vpop.f32.mrf.mxu0
    %v1371 = vadd.f32 0.0, %v1370
    %1372 = vdwg.mxu0
    %1373 = vmatpush.msra.mxu0 %v284
    %1374 = vmatpush.msra.mxu0 %v280
    %1375 = vmatpush.msra.mxu0 %v276
    %1376 = vmatpush.msra.mxu0 %v272
    %1377 = vmatpush.msra.mxu0 %v268
    %1378 = vmatpush.msra.mxu0 %v264
    %1379 = vmatpush.msra.mxu0 %v260
    %1380 = vmatpush.msra.mxu0 %v256
    %1381 = vmatpush.msra.mxu0 %v252
    %1382 = vmatpush.msra.mxu0 %v248
    %1383 = vmatpush.msra.mxu0 %v244
    %1384 = vmatpush.msra.mxu0 %v240
    %1385 = vmatpush.msra.mxu0 %v236
    %1386 = vmatpush.msra.mxu0 %v232
    %1387 = vmatpush.msra.mxu0 %v228
    %1388 = vmatpush.msra.mxu0 %v224
    %1389 = vmatmul.f32.gmra.mxu0 %v1343
    %v1390 = vpop.f32.mrf.mxu0
    %v1391 = vadd.f32 0.0, %v1390
    %1392 = vdwg.mxu0
    %1393 = vmatpush.msra.mxu0 %v285
    %1394 = vmatpush.msra.mxu0 %v281
    %1395 = vmatpush.msra.mxu0 %v277
    %1396 = vmatpush.msra.mxu0 %v273
    %1397 = vmatpush.msra.mxu0 %v269
    %1398 = vmatpush.msra.mxu0 %v265
    %1399 = vmatpush.msra.mxu0 %v261
    %1400 = vmatpush.msra.mxu0 %v257
    %1401 = vmatpush.msra.mxu0 %v253
    %1402 = vmatpush.msra.mxu0 %v249
    %1403 = vmatpush.msra.mxu0 %v245
    %1404 = vmatpush.msra.mxu0 %v241
    %1405 = vmatpush.msra.mxu0 %v237
    %1406 = vmatpush.msra.mxu0 %v233
    %1407 = vmatpush.msra.mxu0 %v229
    %1408 = vmatpush.msra.mxu0 %v225
    %1409 = vmatmul.f32.gmra.mxu0 %v1343
    %v1410 = vpop.f32.mrf.mxu0
    %v1411 = vadd.f32 0.0, %v1410
    %1412 = vdwg.mxu0
    %1413 = vmatpush.msra.mxu0 %v286
    %1414 = vmatpush.msra.mxu0 %v282
    %1415 = vmatpush.msra.mxu0 %v278
    %1416 = vmatpush.msra.mxu0 %v274
    %1417 = vmatpush.msra.mxu0 %v270
    %1418 = vmatpush.msra.mxu0 %v266
    %1419 = vmatpush.msra.mxu0 %v262
    %1420 = vmatpush.msra.mxu0 %v258
    %1421 = vmatpush.msra.mxu0 %v254
    %1422 = vmatpush.msra.mxu0 %v250
    %1423 = vmatpush.msra.mxu0 %v246
    %1424 = vmatpush.msra.mxu0 %v242
    %1425 = vmatpush.msra.mxu0 %v238
    %1426 = vmatpush.msra.mxu0 %v234
    %1427 = vmatpush.msra.mxu0 %v230
    %1428 = vmatpush.msra.mxu0 %v226
    %1429 = vmatmul.f32.gmra.mxu0 %v1343
    %v1430 = vpop.f32.mrf.mxu0
    %v1431 = vadd.f32 0.0, %v1430
    %1432 = vdwg.mxu0
    %v1433 = vadd.f32 %v1349, %v1371
    %v1434 = vadd.f32 %v1350, %v1391
    %v1435 = vadd.f32 %v1351, %v1411
    %v1436 = vadd.f32 %v1352, %v1431
    %v1437 = vxor.u32 %v1433, 2147483648
    %v1438 = vxor.u32 %v1434, 2147483648
    %v1439 = vxor.u32 %v1435, 2147483648
    %v1440 = vmul.f32 %v1437, 1.442695
    %v1441 = vpow.pop %v1440
    %v1442 = vmul.f32 %v1438, 1.442695
    %v1443 = vpow.pop %v1442
    %v1444 = vmul.f32 %v1439, 1.442695
    %v1445 = vpow.pop %v1444
    %v1446 = vadd.f32 %v1441, 1.0
    %v1447 = vadd.f32 %v1443, 1.0
    %v1448 = vadd.f32 %v1445, 1.0
    %v1449 = vrcp.pop %v1446
    %v1450 = vmul.f32 %v1446, %v1449
    %v1451 = vsub.f32 1.0, %v1450
    %v1452 = vmul.f32 %v1449, %v1451
    %v1453 = vadd.f32 %v1449, %v1452
    %vm1454 = vweird.f32 %v1446
    %vm1455 = vweird.f32 %v1449
    %vm1456 = vmor %vm1454, %vm1455
    %v1457 = vsel %vm1456, %v1449, %v1453
    %v1458 = vand.u32 2147483647, %v1446
    %vm1459 = vcmp.eq.f32.partialorder %v1458, 8.507059e+37
    %v1460 = vand.u32 %v1446, 2147483648
    %v1461 = vor.u32 1.1754944e-38, %v1460
    %v1462 = vsel %vm1459, %v1461, %v1457
    %v1463 = vmul.f32 1.0, %v1462
    %v1464 = vrcp.pop %v1447
    %v1465 = vmul.f32 %v1447, %v1464
    %v1466 = vsub.f32 1.0, %v1465
    %v1467 = vmul.f32 %v1464, %v1466
    %v1468 = vadd.f32 %v1464, %v1467
    %vm1469 = vweird.f32 %v1447
    %vm1470 = vweird.f32 %v1464
    %vm1471 = vmor %vm1469, %vm1470
    %v1472 = vsel %vm1471, %v1464, %v1468
    %v1473 = vand.u32 2147483647, %v1447
    %vm1474 = vcmp.eq.f32.partialorder %v1473, 8.507059e+37
    %v1475 = vand.u32 %v1447, 2147483648
    %v1476 = vor.u32 1.1754944e-38, %v1475
    %v1477 = vsel %vm1474, %v1476, %v1472
    %v1478 = vmul.f32 1.0, %v1477
    %v1479 = vrcp.pop %v1448
    %v1480 = vmul.f32 %v1448, %v1479
    %v1481 = vsub.f32 1.0, %v1480
    %v1482 = vmul.f32 %v1479, %v1481
    %v1483 = vadd.f32 %v1479, %v1482
    %vm1484 = vweird.f32 %v1448
    %vm1485 = vweird.f32 %v1479
    %vm1486 = vmor %vm1484, %vm1485
    %v1487 = vsel %vm1486, %v1479, %v1483
    %v1488 = vand.u32 2147483647, %v1448
    %vm1489 = vcmp.eq.f32.partialorder %v1488, 8.507059e+37
    %v1490 = vand.u32 %v1448, 2147483648
    %v1491 = vor.u32 1.1754944e-38, %v1490
    %v1492 = vsel %vm1489, %v1491, %v1487
    %v1493 = vmul.f32 1.0, %v1492
    %v1494 = vtanh.pop %v1436
    %v1495 = vmul.f32 %v1478, %v1341
    %v1496 = vmul.f32 %v1463, %v1494
    %v1497 = vadd.f32 %v1495, %v1496
    %v1498 = vtanh.pop %v1497
    %v1499 = vmul.f32 %v1493, %v1498
    %s1500 = scalar_lea.vmem [#allocation2], 40
    %1501 = vst [vmem:[%s1500] sm:$0xff] %v1499
    %s1502 = smul.u32 6, 4
    %s1503 = smul.addr %s1502, 8
    %s1504 = scalar_lea.vmem [#allocation3], %s1503
    %v1505 = vld [vmem:[%s1504] sm:$0xff]
    %v1506 = vld [vmem:[%s1504 + $0x8] sm:$0xff]
    %v1507 = vld [vmem:[%s1504 + $0x10] sm:$0xff]
    %v1508 = vld [vmem:[%s1504 + $0x18] sm:$0xff]
    %1509 = vmatpush.msra.mxu0 %v283
    %1510 = vmatpush.msra.mxu0 %v279
    %1511 = vmatpush.msra.mxu0 %v275
    %1512 = vmatpush.msra.mxu0 %v271
    %1513 = vmatpush.msra.mxu0 %v267
    %1514 = vmatpush.msra.mxu0 %v263
    %1515 = vmatpush.msra.mxu0 %v259
    %1516 = vmatpush.msra.mxu0 %v255
    %1517 = vmatpush.msra.mxu0 %v251
    %1518 = vmatpush.msra.mxu0 %v247
    %1519 = vmatpush.msra.mxu0 %v243
    %1520 = vmatpush.msra.mxu0 %v239
    %1521 = vmatpush.msra.mxu0 %v235
    %1522 = vmatpush.msra.mxu0 %v231
    %1523 = vmatpush.msra.mxu0 %v227
    %1524 = vmatpush.msra.mxu0 %v223
    %1525 = vmatmul.f32.gmra.mxu0 %v1499
    %v1526 = vpop.f32.mrf.mxu0
    %v1527 = vadd.f32 0.0, %v1526
    %1528 = vdwg.mxu0
    %1529 = vmatpush.msra.mxu0 %v284
    %1530 = vmatpush.msra.mxu0 %v280
    %1531 = vmatpush.msra.mxu0 %v276
    %1532 = vmatpush.msra.mxu0 %v272
    %1533 = vmatpush.msra.mxu0 %v268
    %1534 = vmatpush.msra.mxu0 %v264
    %1535 = vmatpush.msra.mxu0 %v260
    %1536 = vmatpush.msra.mxu0 %v256
    %1537 = vmatpush.msra.mxu0 %v252
    %1538 = vmatpush.msra.mxu0 %v248
    %1539 = vmatpush.msra.mxu0 %v244
    %1540 = vmatpush.msra.mxu0 %v240
    %1541 = vmatpush.msra.mxu0 %v236
    %1542 = vmatpush.msra.mxu0 %v232
    %1543 = vmatpush.msra.mxu0 %v228
    %1544 = vmatpush.msra.mxu0 %v224
    %1545 = vmatmul.f32.gmra.mxu0 %v1499
    %v1546 = vpop.f32.mrf.mxu0
    %v1547 = vadd.f32 0.0, %v1546
    %1548 = vdwg.mxu0
    %1549 = vmatpush.msra.mxu0 %v285
    %1550 = vmatpush.msra.mxu0 %v281
    %1551 = vmatpush.msra.mxu0 %v277
    %1552 = vmatpush.msra.mxu0 %v273
    %1553 = vmatpush.msra.mxu0 %v269
    %1554 = vmatpush.msra.mxu0 %v265
    %1555 = vmatpush.msra.mxu0 %v261
    %1556 = vmatpush.msra.mxu0 %v257
    %1557 = vmatpush.msra.mxu0 %v253
    %1558 = vmatpush.msra.mxu0 %v249
    %1559 = vmatpush.msra.mxu0 %v245
    %1560 = vmatpush.msra.mxu0 %v241
    %1561 = vmatpush.msra.mxu0 %v237
    %1562 = vmatpush.msra.mxu0 %v233
    %1563 = vmatpush.msra.mxu0 %v229
    %1564 = vmatpush.msra.mxu0 %v225
    %1565 = vmatmul.f32.gmra.mxu0 %v1499
    %v1566 = vpop.f32.mrf.mxu0
    %v1567 = vadd.f32 0.0, %v1566
    %1568 = vdwg.mxu0
    %1569 = vmatpush.msra.mxu0 %v286
    %1570 = vmatpush.msra.mxu0 %v282
    %1571 = vmatpush.msra.mxu0 %v278
    %1572 = vmatpush.msra.mxu0 %v274
    %1573 = vmatpush.msra.mxu0 %v270
    %1574 = vmatpush.msra.mxu0 %v266
    %1575 = vmatpush.msra.mxu0 %v262
    %1576 = vmatpush.msra.mxu0 %v258
    %1577 = vmatpush.msra.mxu0 %v254
    %1578 = vmatpush.msra.mxu0 %v250
    %1579 = vmatpush.msra.mxu0 %v246
    %1580 = vmatpush.msra.mxu0 %v242
    %1581 = vmatpush.msra.mxu0 %v238
    %1582 = vmatpush.msra.mxu0 %v234
    %1583 = vmatpush.msra.mxu0 %v230
    %1584 = vmatpush.msra.mxu0 %v226
    %1585 = vmatmul.f32.gmra.mxu0 %v1499
    %v1586 = vpop.f32.mrf.mxu0
    %v1587 = vadd.f32 0.0, %v1586
    %1588 = vdwg.mxu0
    %v1589 = vadd.f32 %v1505, %v1527
    %v1590 = vadd.f32 %v1506, %v1547
    %v1591 = vadd.f32 %v1507, %v1567
    %v1592 = vadd.f32 %v1508, %v1587
    %v1593 = vxor.u32 %v1589, 2147483648
    %v1594 = vxor.u32 %v1590, 2147483648
    %v1595 = vxor.u32 %v1591, 2147483648
    %v1596 = vmul.f32 %v1593, 1.442695
    %v1597 = vpow.pop %v1596
    %v1598 = vmul.f32 %v1594, 1.442695
    %v1599 = vpow.pop %v1598
    %v1600 = vmul.f32 %v1595, 1.442695
    %v1601 = vpow.pop %v1600
    %v1602 = vadd.f32 %v1597, 1.0
    %v1603 = vadd.f32 %v1599, 1.0
    %v1604 = vadd.f32 %v1601, 1.0
    %v1605 = vrcp.pop %v1602
    %v1606 = vmul.f32 %v1602, %v1605
    %v1607 = vsub.f32 1.0, %v1606
    %v1608 = vmul.f32 %v1605, %v1607
    %v1609 = vadd.f32 %v1605, %v1608
    %vm1610 = vweird.f32 %v1602
    %vm1611 = vweird.f32 %v1605
    %vm1612 = vmor %vm1610, %vm1611
    %v1613 = vsel %vm1612, %v1605, %v1609
    %v1614 = vand.u32 2147483647, %v1602
    %vm1615 = vcmp.eq.f32.partialorder %v1614, 8.507059e+37
    %v1616 = vand.u32 %v1602, 2147483648
    %v1617 = vor.u32 1.1754944e-38, %v1616
    %v1618 = vsel %vm1615, %v1617, %v1613
    %v1619 = vmul.f32 1.0, %v1618
    %v1620 = vrcp.pop %v1603
    %v1621 = vmul.f32 %v1603, %v1620
    %v1622 = vsub.f32 1.0, %v1621
    %v1623 = vmul.f32 %v1620, %v1622
    %v1624 = vadd.f32 %v1620, %v1623
    %vm1625 = vweird.f32 %v1603
    %vm1626 = vweird.f32 %v1620
    %vm1627 = vmor %vm1625, %vm1626
    %v1628 = vsel %vm1627, %v1620, %v1624
    %v1629 = vand.u32 2147483647, %v1603
    %vm1630 = vcmp.eq.f32.partialorder %v1629, 8.507059e+37
    %v1631 = vand.u32 %v1603, 2147483648
    %v1632 = vor.u32 1.1754944e-38, %v1631
    %v1633 = vsel %vm1630, %v1632, %v1628
    %v1634 = vmul.f32 1.0, %v1633
    %v1635 = vrcp.pop %v1604
    %v1636 = vmul.f32 %v1604, %v1635
    %v1637 = vsub.f32 1.0, %v1636
    %v1638 = vmul.f32 %v1635, %v1637
    %v1639 = vadd.f32 %v1635, %v1638
    %vm1640 = vweird.f32 %v1604
    %vm1641 = vweird.f32 %v1635
    %vm1642 = vmor %vm1640, %vm1641
    %v1643 = vsel %vm1642, %v1635, %v1639
    %v1644 = vand.u32 2147483647, %v1604
    %vm1645 = vcmp.eq.f32.partialorder %v1644, 8.507059e+37
    %v1646 = vand.u32 %v1604, 2147483648
    %v1647 = vor.u32 1.1754944e-38, %v1646
    %v1648 = vsel %vm1645, %v1647, %v1643
    %v1649 = vmul.f32 1.0, %v1648
    %v1650 = vtanh.pop %v1592
    %v1651 = vmul.f32 %v1634, %v1497
    %v1652 = vmul.f32 %v1619, %v1650
    %v1653 = vadd.f32 %v1651, %v1652
    %v1654 = vtanh.pop %v1653
    %v1655 = vmul.f32 %v1649, %v1654
    %s1656 = scalar_lea.vmem [#allocation2], 48
    %1657 = vst [vmem:[%s1656] sm:$0xff] %v1655
    %s1658 = smul.u32 7, 4
    %s1659 = smul.addr %s1658, 8
    %s1660 = scalar_lea.vmem [#allocation3], %s1659
    %v1661 = vld [vmem:[%s1660] sm:$0xff]
    %v1662 = vld [vmem:[%s1660 + $0x8] sm:$0xff]
    %v1663 = vld [vmem:[%s1660 + $0x10] sm:$0xff]
    %v1664 = vld [vmem:[%s1660 + $0x18] sm:$0xff]
    %1665 = vmatpush.msra.mxu0 %v283
    %1666 = vmatpush.msra.mxu0 %v279
    %1667 = vmatpush.msra.mxu0 %v275
    %1668 = vmatpush.msra.mxu0 %v271
    %1669 = vmatpush.msra.mxu0 %v267
    %1670 = vmatpush.msra.mxu0 %v263
    %1671 = vmatpush.msra.mxu0 %v259
    %1672 = vmatpush.msra.mxu0 %v255
    %1673 = vmatpush.msra.mxu0 %v251
    %1674 = vmatpush.msra.mxu0 %v247
    %1675 = vmatpush.msra.mxu0 %v243
    %1676 = vmatpush.msra.mxu0 %v239
    %1677 = vmatpush.msra.mxu0 %v235
    %1678 = vmatpush.msra.mxu0 %v231
    %1679 = vmatpush.msra.mxu0 %v227
    %1680 = vmatpush.msra.mxu0 %v223
    %1681 = vmatmul.f32.gmra.mxu0 %v1655
    %v1682 = vpop.f32.mrf.mxu0
    %v1683 = vadd.f32 0.0, %v1682
    %1684 = vdwg.mxu0
    %1685 = vmatpush.msra.mxu0 %v284
    %1686 = vmatpush.msra.mxu0 %v280
    %1687 = vmatpush.msra.mxu0 %v276
    %1688 = vmatpush.msra.mxu0 %v272
    %1689 = vmatpush.msra.mxu0 %v268
    %1690 = vmatpush.msra.mxu0 %v264
    %1691 = vmatpush.msra.mxu0 %v260
    %1692 = vmatpush.msra.mxu0 %v256
    %1693 = vmatpush.msra.mxu0 %v252
    %1694 = vmatpush.msra.mxu0 %v248
    %1695 = vmatpush.msra.mxu0 %v244
    %1696 = vmatpush.msra.mxu0 %v240
    %1697 = vmatpush.msra.mxu0 %v236
    %1698 = vmatpush.msra.mxu0 %v232
    %1699 = vmatpush.msra.mxu0 %v228
    %1700 = vmatpush.msra.mxu0 %v224
    %1701 = vmatmul.f32.gmra.mxu0 %v1655
    %v1702 = vpop.f32.mrf.mxu0
    %v1703 = vadd.f32 0.0, %v1702
    %1704 = vdwg.mxu0
    %1705 = vmatpush.msra.mxu0 %v285
    %1706 = vmatpush.msra.mxu0 %v281
    %1707 = vmatpush.msra.mxu0 %v277
    %1708 = vmatpush.msra.mxu0 %v273
    %1709 = vmatpush.msra.mxu0 %v269
    %1710 = vmatpush.msra.mxu0 %v265
    %1711 = vmatpush.msra.mxu0 %v261
    %1712 = vmatpush.msra.mxu0 %v257
    %1713 = vmatpush.msra.mxu0 %v253
    %1714 = vmatpush.msra.mxu0 %v249
    %1715 = vmatpush.msra.mxu0 %v245
    %1716 = vmatpush.msra.mxu0 %v241
    %1717 = vmatpush.msra.mxu0 %v237
    %1718 = vmatpush.msra.mxu0 %v233
    %1719 = vmatpush.msra.mxu0 %v229
    %1720 = vmatpush.msra.mxu0 %v225
    %1721 = vmatmul.f32.gmra.mxu0 %v1655
    %v1722 = vpop.f32.mrf.mxu0
    %v1723 = vadd.f32 0.0, %v1722
    %1724 = vdwg.mxu0
    %1725 = vmatpush.msra.mxu0 %v286
    %1726 = vmatpush.msra.mxu0 %v282
    %1727 = vmatpush.msra.mxu0 %v278
    %1728 = vmatpush.msra.mxu0 %v274
    %1729 = vmatpush.msra.mxu0 %v270
    %1730 = vmatpush.msra.mxu0 %v266
    %1731 = vmatpush.msra.mxu0 %v262
    %1732 = vmatpush.msra.mxu0 %v258
    %1733 = vmatpush.msra.mxu0 %v254
    %1734 = vmatpush.msra.mxu0 %v250
    %1735 = vmatpush.msra.mxu0 %v246
    %1736 = vmatpush.msra.mxu0 %v242
    %1737 = vmatpush.msra.mxu0 %v238
    %1738 = vmatpush.msra.mxu0 %v234
    %1739 = vmatpush.msra.mxu0 %v230
    %1740 = vmatpush.msra.mxu0 %v226
    %1741 = vmatmul.f32.gmra.mxu0 %v1655
    %v1742 = vpop.f32.mrf.mxu0
    %v1743 = vadd.f32 0.0, %v1742
    %1744 = vdwg.mxu0
    %v1745 = vadd.f32 %v1661, %v1683
    %v1746 = vadd.f32 %v1662, %v1703
    %v1747 = vadd.f32 %v1663, %v1723
    %v1748 = vadd.f32 %v1664, %v1743
    %v1749 = vxor.u32 %v1745, 2147483648
    %v1750 = vxor.u32 %v1746, 2147483648
    %v1751 = vxor.u32 %v1747, 2147483648
    %v1752 = vmul.f32 %v1749, 1.442695
    %v1753 = vpow.pop %v1752
    %v1754 = vmul.f32 %v1750, 1.442695
    %v1755 = vpow.pop %v1754
    %v1756 = vmul.f32 %v1751, 1.442695
    %v1757 = vpow.pop %v1756
    %v1758 = vadd.f32 %v1753, 1.0
    %v1759 = vadd.f32 %v1755, 1.0
    %v1760 = vadd.f32 %v1757, 1.0
    %v1761 = vrcp.pop %v1758
    %v1762 = vmul.f32 %v1758, %v1761
    %v1763 = vsub.f32 1.0, %v1762
    %v1764 = vmul.f32 %v1761, %v1763
    %v1765 = vadd.f32 %v1761, %v1764
    %vm1766 = vweird.f32 %v1758
    %vm1767 = vweird.f32 %v1761
    %vm1768 = vmor %vm1766, %vm1767
    %v1769 = vsel %vm1768, %v1761, %v1765
    %v1770 = vand.u32 2147483647, %v1758
    %vm1771 = vcmp.eq.f32.partialorder %v1770, 8.507059e+37
    %v1772 = vand.u32 %v1758, 2147483648
    %v1773 = vor.u32 1.1754944e-38, %v1772
    %v1774 = vsel %vm1771, %v1773, %v1769
    %v1775 = vmul.f32 1.0, %v1774
    %v1776 = vrcp.pop %v1759
    %v1777 = vmul.f32 %v1759, %v1776
    %v1778 = vsub.f32 1.0, %v1777
    %v1779 = vmul.f32 %v1776, %v1778
    %v1780 = vadd.f32 %v1776, %v1779
    %vm1781 = vweird.f32 %v1759
    %vm1782 = vweird.f32 %v1776
    %vm1783 = vmor %vm1781, %vm1782
    %v1784 = vsel %vm1783, %v1776, %v1780
    %v1785 = vand.u32 2147483647, %v1759
    %vm1786 = vcmp.eq.f32.partialorder %v1785, 8.507059e+37
    %v1787 = vand.u32 %v1759, 2147483648
    %v1788 = vor.u32 1.1754944e-38, %v1787
    %v1789 = vsel %vm1786, %v1788, %v1784
    %v1790 = vmul.f32 1.0, %v1789
    %v1791 = vrcp.pop %v1760
    %v1792 = vmul.f32 %v1760, %v1791
    %v1793 = vsub.f32 1.0, %v1792
    %v1794 = vmul.f32 %v1791, %v1793
    %v1795 = vadd.f32 %v1791, %v1794
    %vm1796 = vweird.f32 %v1760
    %vm1797 = vweird.f32 %v1791
    %vm1798 = vmor %vm1796, %vm1797
    %v1799 = vsel %vm1798, %v1791, %v1795
    %v1800 = vand.u32 2147483647, %v1760
    %vm1801 = vcmp.eq.f32.partialorder %v1800, 8.507059e+37
    %v1802 = vand.u32 %v1760, 2147483648
    %v1803 = vor.u32 1.1754944e-38, %v1802
    %v1804 = vsel %vm1801, %v1803, %v1799
    %v1805 = vmul.f32 1.0, %v1804
    %v1806 = vtanh.pop %v1748
    %v1807 = vmul.f32 %v1790, %v1653
    %v1808 = vmul.f32 %v1775, %v1806
    %v1809 = vadd.f32 %v1807, %v1808
    %v1810 = vtanh.pop %v1809
    %v1811 = vmul.f32 %v1805, %v1810
    %s1812 = scalar_lea.vmem [#allocation2], 56
    %1813 = vst [vmem:[%s1812] sm:$0xff] %v1811
    %1814 = vst [vmem:[%s8] sm:$0xff] %v1811
    %1815 = vst [vmem:[%s9] sm:$0xff] %v1809
    %s1816 = scalar_lea.vmem [#allocation8], 512
    %v1817 = vld [vmem:[%s1816] sm:$0xff]
    %v1818 = vld [vmem:[%s1816 + $0x8] sm:$0xff]
    %v1819 = vld [vmem:[%s1816 + $0x10] sm:$0xff]
    %v1820 = vld [vmem:[%s1816 + $0x18] sm:$0xff]
    %v1821 = vld [vmem:[%s1816 + $0x20] sm:$0xff]
    %v1822 = vld [vmem:[%s1816 + $0x28] sm:$0xff]
    %v1823 = vld [vmem:[%s1816 + $0x30] sm:$0xff]
    %v1824 = vld [vmem:[%s1816 + $0x38] sm:$0xff]
    %v1825 = vld [vmem:[%s1816 + $0x40] sm:$0xff]
    %v1826 = vld [vmem:[%s1816 + $0x48] sm:$0xff]
    %v1827 = vld [vmem:[%s1816 + $0x50] sm:$0xff]
    %v1828 = vld [vmem:[%s1816 + $0x58] sm:$0xff]
    %v1829 = vld [vmem:[%s1816 + $0x60] sm:$0xff]
    %v1830 = vld [vmem:[%s1816 + $0x68] sm:$0xff]
    %v1831 = vld [vmem:[%s1816 + $0x70] sm:$0xff]
    %v1832 = vld [vmem:[%s1816 + $0x78] sm:$0xff]
    %v1833 = vld [vmem:[%s1816 + $0x80] sm:$0xff]
    %v1834 = vld [vmem:[%s1816 + $0x88] sm:$0xff]
    %v1835 = vld [vmem:[%s1816 + $0x90] sm:$0xff]
    %v1836 = vld [vmem:[%s1816 + $0x98] sm:$0xff]
    %v1837 = vld [vmem:[%s1816 + $0xa0] sm:$0xff]
    %v1838 = vld [vmem:[%s1816 + $0xa8] sm:$0xff]
    %v1839 = vld [vmem:[%s1816 + $0xb0] sm:$0xff]
    %v1840 = vld [vmem:[%s1816 + $0xb8] sm:$0xff]
    %v1841 = vld [vmem:[%s1816 + $0xc0] sm:$0xff]
    %v1842 = vld [vmem:[%s1816 + $0xc8] sm:$0xff]
    %v1843 = vld [vmem:[%s1816 + $0xd0] sm:$0xff]
    %v1844 = vld [vmem:[%s1816 + $0xd8] sm:$0xff]
    %v1845 = vld [vmem:[%s1816 + $0xe0] sm:$0xff]
    %v1846 = vld [vmem:[%s1816 + $0xe8] sm:$0xff]
    %v1847 = vld [vmem:[%s1816 + $0xf0] sm:$0xff]
    %v1848 = vld [vmem:[%s1816 + $0xf8] sm:$0xff]
    %v1849 = vld [vmem:[%s1816 + $0x100] sm:$0xff]
    %v1850 = vld [vmem:[%s1816 + $0x108] sm:$0xff]
    %v1851 = vld [vmem:[%s1816 + $0x110] sm:$0xff]
    %v1852 = vld [vmem:[%s1816 + $0x118] sm:$0xff]
    %v1853 = vld [vmem:[%s1816 + $0x120] sm:$0xff]
    %v1854 = vld [vmem:[%s1816 + $0x128] sm:$0xff]
    %v1855 = vld [vmem:[%s1816 + $0x130] sm:$0xff]
    %v1856 = vld [vmem:[%s1816 + $0x138] sm:$0xff]
    %v1857 = vld [vmem:[%s1816 + $0x140] sm:$0xff]
    %v1858 = vld [vmem:[%s1816 + $0x148] sm:$0xff]
    %v1859 = vld [vmem:[%s1816 + $0x150] sm:$0xff]
    %v1860 = vld [vmem:[%s1816 + $0x158] sm:$0xff]
    %v1861 = vld [vmem:[%s1816 + $0x160] sm:$0xff]
    %v1862 = vld [vmem:[%s1816 + $0x168] sm:$0xff]
    %v1863 = vld [vmem:[%s1816 + $0x170] sm:$0xff]
    %v1864 = vld [vmem:[%s1816 + $0x178] sm:$0xff]
    %v1865 = vld [vmem:[%s1816 + $0x180] sm:$0xff]
    %v1866 = vld [vmem:[%s1816 + $0x188] sm:$0xff]
    %v1867 = vld [vmem:[%s1816 + $0x190] sm:$0xff]
    %v1868 = vld [vmem:[%s1816 + $0x198] sm:$0xff]
    %v1869 = vld [vmem:[%s1816 + $0x1a0] sm:$0xff]
    %v1870 = vld [vmem:[%s1816 + $0x1a8] sm:$0xff]
    %v1871 = vld [vmem:[%s1816 + $0x1b0] sm:$0xff]
    %v1872 = vld [vmem:[%s1816 + $0x1b8] sm:$0xff]
    %v1873 = vld [vmem:[%s1816 + $0x1c0] sm:$0xff]
    %v1874 = vld [vmem:[%s1816 + $0x1c8] sm:$0xff]
    %v1875 = vld [vmem:[%s1816 + $0x1d0] sm:$0xff]
    %v1876 = vld [vmem:[%s1816 + $0x1d8] sm:$0xff]
    %v1877 = vld [vmem:[%s1816 + $0x1e0] sm:$0xff]
    %v1878 = vld [vmem:[%s1816 + $0x1e8] sm:$0xff]
    %v1879 = vld [vmem:[%s1816 + $0x1f0] sm:$0xff]
    %v1880 = vld [vmem:[%s1816 + $0x1f8] sm:$0xff]
    %v1881 = vld [vmem:[#allocation2] sm:$0xff]
    %v1882 = vld [vmem:[#allocation2 + $0x8] sm:$0xff]
    %v1883 = vld [vmem:[#allocation2 + $0x10] sm:$0xff]
    %v1884 = vld [vmem:[#allocation2 + $0x18] sm:$0xff]
    %v1885 = vld [vmem:[#allocation2 + $0x20] sm:$0xff]
    %v1886 = vld [vmem:[#allocation2 + $0x28] sm:$0xff]
    %v1887 = vld [vmem:[#allocation2 + $0x30] sm:$0xff]
    %v1888 = vld [vmem:[#allocation2 + $0x38] sm:$0xff]
    %s1889 = scalar_lea.vmem [#allocation6], 512
    %v1890 = vld [vmem:[%s1889] sm:$0xff]
    %v1891 = vld [vmem:[%s1889 + $0x8] sm:$0xff]
    %v1892 = vld [vmem:[%s1889 + $0x10] sm:$0xff]
    %v1893 = vld [vmem:[%s1889 + $0x18] sm:$0xff]
    %v1894 = vld [vmem:[%s1889 + $0x20] sm:$0xff]
    %v1895 = vld [vmem:[%s1889 + $0x28] sm:$0xff]
    %v1896 = vld [vmem:[%s1889 + $0x30] sm:$0xff]
    %v1897 = vld [vmem:[%s1889 + $0x38] sm:$0xff]
    %v1898 = vld [vmem:[%s1889 + $0x40] sm:$0xff]
    %v1899 = vld [vmem:[%s1889 + $0x48] sm:$0xff]
    %v1900 = vld [vmem:[%s1889 + $0x50] sm:$0xff]
    %v1901 = vld [vmem:[%s1889 + $0x58] sm:$0xff]
    %v1902 = vld [vmem:[%s1889 + $0x60] sm:$0xff]
    %v1903 = vld [vmem:[%s1889 + $0x68] sm:$0xff]
    %v1904 = vld [vmem:[%s1889 + $0x70] sm:$0xff]
    %v1905 = vld [vmem:[%s1889 + $0x78] sm:$0xff]
    %v1906 = vld [vmem:[%s1889 + $0x80] sm:$0xff]
    %v1907 = vld [vmem:[%s1889 + $0x88] sm:$0xff]
    %v1908 = vld [vmem:[%s1889 + $0x90] sm:$0xff]
    %v1909 = vld [vmem:[%s1889 + $0x98] sm:$0xff]
    %v1910 = vld [vmem:[%s1889 + $0xa0] sm:$0xff]
    %v1911 = vld [vmem:[%s1889 + $0xa8] sm:$0xff]
    %v1912 = vld [vmem:[%s1889 + $0xb0] sm:$0xff]
    %v1913 = vld [vmem:[%s1889 + $0xb8] sm:$0xff]
    %v1914 = vld [vmem:[%s1889 + $0xc0] sm:$0xff]
    %v1915 = vld [vmem:[%s1889 + $0xc8] sm:$0xff]
    %v1916 = vld [vmem:[%s1889 + $0xd0] sm:$0xff]
    %v1917 = vld [vmem:[%s1889 + $0xd8] sm:$0xff]
    %v1918 = vld [vmem:[%s1889 + $0xe0] sm:$0xff]
    %v1919 = vld [vmem:[%s1889 + $0xe8] sm:$0xff]
    %v1920 = vld [vmem:[%s1889 + $0xf0] sm:$0xff]
    %v1921 = vld [vmem:[%s1889 + $0xf8] sm:$0xff]
    %v1922 = vld [vmem:[%s1889 + $0x100] sm:$0xff]
    %v1923 = vld [vmem:[%s1889 + $0x108] sm:$0xff]
    %v1924 = vld [vmem:[%s1889 + $0x110] sm:$0xff]
    %v1925 = vld [vmem:[%s1889 + $0x118] sm:$0xff]
    %v1926 = vld [vmem:[%s1889 + $0x120] sm:$0xff]
    %v1927 = vld [vmem:[%s1889 + $0x128] sm:$0xff]
    %v1928 = vld [vmem:[%s1889 + $0x130] sm:$0xff]
    %v1929 = vld [vmem:[%s1889 + $0x138] sm:$0xff]
    %v1930 = vld [vmem:[%s1889 + $0x140] sm:$0xff]
    %v1931 = vld [vmem:[%s1889 + $0x148] sm:$0xff]
    %v1932 = vld [vmem:[%s1889 + $0x150] sm:$0xff]
    %v1933 = vld [vmem:[%s1889 + $0x158] sm:$0xff]
    %v1934 = vld [vmem:[%s1889 + $0x160] sm:$0xff]
    %v1935 = vld [vmem:[%s1889 + $0x168] sm:$0xff]
    %v1936 = vld [vmem:[%s1889 + $0x170] sm:$0xff]
    %v1937 = vld [vmem:[%s1889 + $0x178] sm:$0xff]
    %v1938 = vld [vmem:[%s1889 + $0x180] sm:$0xff]
    %v1939 = vld [vmem:[%s1889 + $0x188] sm:$0xff]
    %v1940 = vld [vmem:[%s1889 + $0x190] sm:$0xff]
    %v1941 = vld [vmem:[%s1889 + $0x198] sm:$0xff]
    %v1942 = vld [vmem:[%s1889 + $0x1a0] sm:$0xff]
    %v1943 = vld [vmem:[%s1889 + $0x1a8] sm:$0xff]
    %v1944 = vld [vmem:[%s1889 + $0x1b0] sm:$0xff]
    %v1945 = vld [vmem:[%s1889 + $0x1b8] sm:$0xff]
    %v1946 = vld [vmem:[%s1889 + $0x1c0] sm:$0xff]
    %v1947 = vld [vmem:[%s1889 + $0x1c8] sm:$0xff]
    %v1948 = vld [vmem:[%s1889 + $0x1d0] sm:$0xff]
    %v1949 = vld [vmem:[%s1889 + $0x1d8] sm:$0xff]
    %v1950 = vld [vmem:[%s1889 + $0x1e0] sm:$0xff]
    %v1951 = vld [vmem:[%s1889 + $0x1e8] sm:$0xff]
    %v1952 = vld [vmem:[%s1889 + $0x1f0] sm:$0xff]
    %v1953 = vld [vmem:[%s1889 + $0x1f8] sm:$0xff]
    %s1954 = scalar_lea.vmem %s4, 4
    %v1955 = vld [vmem:[%s1954] sm:$0xf]
    %v1957 = vperm.slane %v1955, 0
    %v1958 = vperm.slane %v1955, 1
    %v1959 = vperm.slane %v1955, 2
    %v1960 = vperm.slane %v1955, 3
    %1965 = vmatpush.msra.mxu0 %v1950
    %1966 = vmatpush.msra.mxu0 %v1946
    %1967 = vmatpush.msra.mxu0 %v1942
    %1968 = vmatpush.msra.mxu0 %v1938
    %1969 = vmatpush.msra.mxu0 %v1934
    %1970 = vmatpush.msra.mxu0 %v1930
    %1971 = vmatpush.msra.mxu0 %v1926
    %1972 = vmatpush.msra.mxu0 %v1922
    %1973 = vmatpush.msra.mxu0 %v1918
    %1974 = vmatpush.msra.mxu0 %v1914
    %1975 = vmatpush.msra.mxu0 %v1910
    %1976 = vmatpush.msra.mxu0 %v1906
    %1977 = vmatpush.msra.mxu0 %v1902
    %1978 = vmatpush.msra.mxu0 %v1898
    %1979 = vmatpush.msra.mxu0 %v1894
    %1980 = vmatpush.msra.mxu0 %v1890
    %1981 = vmatmul.f32.gmra.mxu0 %v1881
    %v1982 = vpop.f32.mrf.mxu0
    %v1983 = vadd.f32 %v1957, %v1982
    %1984 = vmatmul.f32.gmra.mxu0 %v1882
    %v1985 = vpop.f32.mrf.mxu0
    %v1986 = vadd.f32 %v1957, %v1985
    %1987 = vmatmul.f32.gmra.mxu0 %v1883
    %v1988 = vpop.f32.mrf.mxu0
    %v1989 = vadd.f32 %v1957, %v1988
    %1990 = vmatmul.f32.gmra.mxu0 %v1884
    %v1991 = vpop.f32.mrf.mxu0
    %v1992 = vadd.f32 %v1957, %v1991
    %1993 = vmatmul.f32.gmra.mxu0 %v1885
    %v1994 = vpop.f32.mrf.mxu0
    %v1995 = vadd.f32 %v1957, %v1994
    %1996 = vmatmul.f32.gmra.mxu0 %v1886
    %v1997 = vpop.f32.mrf.mxu0
    %v1998 = vadd.f32 %v1957, %v1997
    %1999 = vmatmul.f32.gmra.mxu0 %v1887
    %v2000 = vpop.f32.mrf.mxu0
    %v2001 = vadd.f32 %v1957, %v2000
    %2002 = vmatmul.f32.gmra.mxu0 %v1888
    %v2003 = vpop.f32.mrf.mxu0
    %v2004 = vadd.f32 %v1957, %v2003
    %2005 = vdwg.mxu0
    %2006 = vmatpush.msra.mxu0 %v1951
    %2007 = vmatpush.msra.mxu0 %v1947
    %2008 = vmatpush.msra.mxu0 %v1943
    %2009 = vmatpush.msra.mxu0 %v1939
    %2010 = vmatpush.msra.mxu0 %v1935
    %2011 = vmatpush.msra.mxu0 %v1931
    %2012 = vmatpush.msra.mxu0 %v1927
    %2013 = vmatpush.msra.mxu0 %v1923
    %2014 = vmatpush.msra.mxu0 %v1919
    %2015 = vmatpush.msra.mxu0 %v1915
    %2016 = vmatpush.msra.mxu0 %v1911
    %2017 = vmatpush.msra.mxu0 %v1907
    %2018 = vmatpush.msra.mxu0 %v1903
    %2019 = vmatpush.msra.mxu0 %v1899
    %2020 = vmatpush.msra.mxu0 %v1895
    %2021 = vmatpush.msra.mxu0 %v1891
    %2022 = vmatmul.f32.gmra.mxu0 %v1881
    %v2023 = vpop.f32.mrf.mxu0
    %v2024 = vadd.f32 %v1958, %v2023
    %2025 = vmatmul.f32.gmra.mxu0 %v1882
    %v2026 = vpop.f32.mrf.mxu0
    %v2027 = vadd.f32 %v1958, %v2026
    %2028 = vmatmul.f32.gmra.mxu0 %v1883
    %v2029 = vpop.f32.mrf.mxu0
    %v2030 = vadd.f32 %v1958, %v2029
    %2031 = vmatmul.f32.gmra.mxu0 %v1884
    %v2032 = vpop.f32.mrf.mxu0
    %v2033 = vadd.f32 %v1958, %v2032
    %2034 = vmatmul.f32.gmra.mxu0 %v1885
    %v2035 = vpop.f32.mrf.mxu0
    %v2036 = vadd.f32 %v1958, %v2035
    %2037 = vmatmul.f32.gmra.mxu0 %v1886
    %v2038 = vpop.f32.mrf.mxu0
    %v2039 = vadd.f32 %v1958, %v2038
    %2040 = vmatmul.f32.gmra.mxu0 %v1887
    %v2041 = vpop.f32.mrf.mxu0
    %v2042 = vadd.f32 %v1958, %v2041
    %2043 = vmatmul.f32.gmra.mxu0 %v1888
    %v2044 = vpop.f32.mrf.mxu0
    %v2045 = vadd.f32 %v1958, %v2044
    %2046 = vdwg.mxu0
    %2047 = vmatpush.msra.mxu0 %v1952
    %2048 = vmatpush.msra.mxu0 %v1948
    %2049 = vmatpush.msra.mxu0 %v1944
    %2050 = vmatpush.msra.mxu0 %v1940
    %2051 = vmatpush.msra.mxu0 %v1936
    %2052 = vmatpush.msra.mxu0 %v1932
    %2053 = vmatpush.msra.mxu0 %v1928
    %2054 = vmatpush.msra.mxu0 %v1924
    %2055 = vmatpush.msra.mxu0 %v1920
    %2056 = vmatpush.msra.mxu0 %v1916
    %2057 = vmatpush.msra.mxu0 %v1912
    %2058 = vmatpush.msra.mxu0 %v1908
    %2059 = vmatpush.msra.mxu0 %v1904
    %2060 = vmatpush.msra.mxu0 %v1900
    %2061 = vmatpush.msra.mxu0 %v1896
    %2062 = vmatpush.msra.mxu0 %v1892
    %2063 = vmatmul.f32.gmra.mxu0 %v1881
    %v2064 = vpop.f32.mrf.mxu0
    %v2065 = vadd.f32 %v1959, %v2064
    %2066 = vmatmul.f32.gmra.mxu0 %v1882
    %v2067 = vpop.f32.mrf.mxu0
    %v2068 = vadd.f32 %v1959, %v2067
    %2069 = vmatmul.f32.gmra.mxu0 %v1883
    %v2070 = vpop.f32.mrf.mxu0
    %v2071 = vadd.f32 %v1959, %v2070
    %2072 = vmatmul.f32.gmra.mxu0 %v1884
    %v2073 = vpop.f32.mrf.mxu0
    %v2074 = vadd.f32 %v1959, %v2073
    %2075 = vmatmul.f32.gmra.mxu0 %v1885
    %v2076 = vpop.f32.mrf.mxu0
    %v2077 = vadd.f32 %v1959, %v2076
    %2078 = vmatmul.f32.gmra.mxu0 %v1886
    %v2079 = vpop.f32.mrf.mxu0
    %v2080 = vadd.f32 %v1959, %v2079
    %2081 = vmatmul.f32.gmra.mxu0 %v1887
    %v2082 = vpop.f32.mrf.mxu0
    %v2083 = vadd.f32 %v1959, %v2082
    %2084 = vmatmul.f32.gmra.mxu0 %v1888
    %v2085 = vpop.f32.mrf.mxu0
    %v2086 = vadd.f32 %v1959, %v2085
    %2087 = vdwg.mxu0
    %2088 = vmatpush.msra.mxu0 %v1953
    %2089 = vmatpush.msra.mxu0 %v1949
    %2090 = vmatpush.msra.mxu0 %v1945
    %2091 = vmatpush.msra.mxu0 %v1941
    %2092 = vmatpush.msra.mxu0 %v1937
    %2093 = vmatpush.msra.mxu0 %v1933
    %2094 = vmatpush.msra.mxu0 %v1929
    %2095 = vmatpush.msra.mxu0 %v1925
    %2096 = vmatpush.msra.mxu0 %v1921
    %2097 = vmatpush.msra.mxu0 %v1917
    %2098 = vmatpush.msra.mxu0 %v1913
    %2099 = vmatpush.msra.mxu0 %v1909
    %2100 = vmatpush.msra.mxu0 %v1905
    %2101 = vmatpush.msra.mxu0 %v1901
    %2102 = vmatpush.msra.mxu0 %v1897
    %2103 = vmatpush.msra.mxu0 %v1893
    %2104 = vmatmul.f32.gmra.mxu0 %v1881
    %v2105 = vpop.f32.mrf.mxu0
    %v2106 = vadd.f32 %v1960, %v2105
    %2107 = vmatmul.f32.gmra.mxu0 %v1882
    %v2108 = vpop.f32.mrf.mxu0
    %v2109 = vadd.f32 %v1960, %v2108
    %2110 = vmatmul.f32.gmra.mxu0 %v1883
    %v2111 = vpop.f32.mrf.mxu0
    %v2112 = vadd.f32 %v1960, %v2111
    %2113 = vmatmul.f32.gmra.mxu0 %v1884
    %v2114 = vpop.f32.mrf.mxu0
    %v2115 = vadd.f32 %v1960, %v2114
    %2116 = vmatmul.f32.gmra.mxu0 %v1885
    %v2117 = vpop.f32.mrf.mxu0
    %v2118 = vadd.f32 %v1960, %v2117
    %2119 = vmatmul.f32.gmra.mxu0 %v1886
    %v2120 = vpop.f32.mrf.mxu0
    %v2121 = vadd.f32 %v1960, %v2120
    %2122 = vmatmul.f32.gmra.mxu0 %v1887
    %v2123 = vpop.f32.mrf.mxu0
    %v2124 = vadd.f32 %v1960, %v2123
    %2125 = vmatmul.f32.gmra.mxu0 %v1888
    %v2126 = vpop.f32.mrf.mxu0
    %v2127 = vadd.f32 %v1960, %v2126
    %2128 = vdwg.mxu0
    %2129 = vst [vmem:[#allocation3] sm:$0xff] %v1983
    %2130 = vst [vmem:[#allocation3 + $0x8] sm:$0xff] %v2024
    %2131 = vst [vmem:[#allocation3 + $0x10] sm:$0xff] %v2065
    %2132 = vst [vmem:[#allocation3 + $0x18] sm:$0xff] %v2106
    %2133 = vst [vmem:[#allocation3 + $0x20] sm:$0xff] %v1986
    %2134 = vst [vmem:[#allocation3 + $0x28] sm:$0xff] %v2027
    %2135 = vst [vmem:[#allocation3 + $0x30] sm:$0xff] %v2068
    %2136 = vst [vmem:[#allocation3 + $0x38] sm:$0xff] %v2109
    %2137 = vst [vmem:[#allocation3 + $0x40] sm:$0xff] %v1989
    %2138 = vst [vmem:[#allocation3 + $0x48] sm:$0xff] %v2030
    %2139 = vst [vmem:[#allocation3 + $0x50] sm:$0xff] %v2071
    %2140 = vst [vmem:[#allocation3 + $0x58] sm:$0xff] %v2112
    %2141 = vst [vmem:[#allocation3 + $0x60] sm:$0xff] %v1992
    %2142 = vst [vmem:[#allocation3 + $0x68] sm:$0xff] %v2033
    %2143 = vst [vmem:[#allocation3 + $0x70] sm:$0xff] %v2074
    %2144 = vst [vmem:[#allocation3 + $0x78] sm:$0xff] %v2115
    %2145 = vst [vmem:[#allocation3 + $0x80] sm:$0xff] %v1995
    %2146 = vst [vmem:[#allocation3 + $0x88] sm:$0xff] %v2036
    %2147 = vst [vmem:[#allocation3 + $0x90] sm:$0xff] %v2077
    %2148 = vst [vmem:[#allocation3 + $0x98] sm:$0xff] %v2118
    %2149 = vst [vmem:[#allocation3 + $0xa0] sm:$0xff] %v1998
    %2150 = vst [vmem:[#allocation3 + $0xa8] sm:$0xff] %v2039
    %2151 = vst [vmem:[#allocation3 + $0xb0] sm:$0xff] %v2080
    %2152 = vst [vmem:[#allocation3 + $0xb8] sm:$0xff] %v2121
    %2153 = vst [vmem:[#allocation3 + $0xc0] sm:$0xff] %v2001
    %2154 = vst [vmem:[#allocation3 + $0xc8] sm:$0xff] %v2042
    %2155 = vst [vmem:[#allocation3 + $0xd0] sm:$0xff] %v2083
    %2156 = vst [vmem:[#allocation3 + $0xd8] sm:$0xff] %v2124
    %2157 = vst [vmem:[#allocation3 + $0xe0] sm:$0xff] %v2004
    %2158 = vst [vmem:[#allocation3 + $0xe8] sm:$0xff] %v2045
    %2159 = vst [vmem:[#allocation3 + $0xf0] sm:$0xff] %v2086
    %2160 = vst [vmem:[#allocation3 + $0xf8] sm:$0xff] %v2127
    %s2161 = scalar_lea.vmem %s8, 8
    %v2162 = vld [vmem:[%s2161] sm:$0xff]
    %s2163 = scalar_lea.vmem %s9, 8
    %v2164 = vld [vmem:[%s2163] sm:$0xff]
    %v2165 = vld [vmem:[%s569] sm:$0xff]
    %v2166 = vld [vmem:[%s569 + $0x8] sm:$0xff]
    %v2167 = vld [vmem:[%s569 + $0x10] sm:$0xff]
    %v2168 = vld [vmem:[%s569 + $0x18] sm:$0xff]
    %2169 = vmatpush.msra.mxu0 %v1877
    %2170 = vmatpush.msra.mxu0 %v1873
    %2171 = vmatpush.msra.mxu0 %v1869
    %2172 = vmatpush.msra.mxu0 %v1865
    %2173 = vmatpush.msra.mxu0 %v1861
    %2174 = vmatpush.msra.mxu0 %v1857
    %2175 = vmatpush.msra.mxu0 %v1853
    %2176 = vmatpush.msra.mxu0 %v1849
    %2177 = vmatpush.msra.mxu0 %v1845
    %2178 = vmatpush.msra.mxu0 %v1841
    %2179 = vmatpush.msra.mxu0 %v1837
    %2180 = vmatpush.msra.mxu0 %v1833
    %2181 = vmatpush.msra.mxu0 %v1829
    %2182 = vmatpush.msra.mxu0 %v1825
    %2183 = vmatpush.msra.mxu0 %v1821
    %2184 = vmatpush.msra.mxu0 %v1817
    %2185 = vmatmul.f32.gmra.mxu0 %v2162
    %v2186 = vpop.f32.mrf.mxu0
    %v2187 = vadd.f32 0.0, %v2186
    %2188 = vdwg.mxu0
    %2189 = vmatpush.msra.mxu0 %v1878
    %2190 = vmatpush.msra.mxu0 %v1874
    %2191 = vmatpush.msra.mxu0 %v1870
    %2192 = vmatpush.msra.mxu0 %v1866
    %2193 = vmatpush.msra.mxu0 %v1862
    %2194 = vmatpush.msra.mxu0 %v1858
    %2195 = vmatpush.msra.mxu0 %v1854
    %2196 = vmatpush.msra.mxu0 %v1850
    %2197 = vmatpush.msra.mxu0 %v1846
    %2198 = vmatpush.msra.mxu0 %v1842
    %2199 = vmatpush.msra.mxu0 %v1838
    %2200 = vmatpush.msra.mxu0 %v1834
    %2201 = vmatpush.msra.mxu0 %v1830
    %2202 = vmatpush.msra.mxu0 %v1826
    %2203 = vmatpush.msra.mxu0 %v1822
    %2204 = vmatpush.msra.mxu0 %v1818
    %2205 = vmatmul.f32.gmra.mxu0 %v2162
    %v2206 = vpop.f32.mrf.mxu0
    %v2207 = vadd.f32 0.0, %v2206
    %2208 = vdwg.mxu0
    %2209 = vmatpush.msra.mxu0 %v1879
    %2210 = vmatpush.msra.mxu0 %v1875
    %2211 = vmatpush.msra.mxu0 %v1871
    %2212 = vmatpush.msra.mxu0 %v1867
    %2213 = vmatpush.msra.mxu0 %v1863
    %2214 = vmatpush.msra.mxu0 %v1859
    %2215 = vmatpush.msra.mxu0 %v1855
    %2216 = vmatpush.msra.mxu0 %v1851
    %2217 = vmatpush.msra.mxu0 %v1847
    %2218 = vmatpush.msra.mxu0 %v1843
    %2219 = vmatpush.msra.mxu0 %v1839
    %2220 = vmatpush.msra.mxu0 %v1835
    %2221 = vmatpush.msra.mxu0 %v1831
    %2222 = vmatpush.msra.mxu0 %v1827
    %2223 = vmatpush.msra.mxu0 %v1823
    %2224 = vmatpush.msra.mxu0 %v1819
    %2225 = vmatmul.f32.gmra.mxu0 %v2162
    %v2226 = vpop.f32.mrf.mxu0
    %v2227 = vadd.f32 0.0, %v2226
    %2228 = vdwg.mxu0
    %2229 = vmatpush.msra.mxu0 %v1880
    %2230 = vmatpush.msra.mxu0 %v1876
    %2231 = vmatpush.msra.mxu0 %v1872
    %2232 = vmatpush.msra.mxu0 %v1868
    %2233 = vmatpush.msra.mxu0 %v1864
    %2234 = vmatpush.msra.mxu0 %v1860
    %2235 = vmatpush.msra.mxu0 %v1856
    %2236 = vmatpush.msra.mxu0 %v1852
    %2237 = vmatpush.msra.mxu0 %v1848
    %2238 = vmatpush.msra.mxu0 %v1844
    %2239 = vmatpush.msra.mxu0 %v1840
    %2240 = vmatpush.msra.mxu0 %v1836
    %2241 = vmatpush.msra.mxu0 %v1832
    %2242 = vmatpush.msra.mxu0 %v1828
    %2243 = vmatpush.msra.mxu0 %v1824
    %2244 = vmatpush.msra.mxu0 %v1820
    %2245 = vmatmul.f32.gmra.mxu0 %v2162
    %v2246 = vpop.f32.mrf.mxu0
    %v2247 = vadd.f32 0.0, %v2246
    %2248 = vdwg.mxu0
    %v2249 = vadd.f32 %v2165, %v2187
    %v2250 = vadd.f32 %v2166, %v2207
    %v2251 = vadd.f32 %v2167, %v2227
    %v2252 = vadd.f32 %v2168, %v2247
    %v2253 = vxor.u32 %v2249, 2147483648
    %v2254 = vxor.u32 %v2250, 2147483648
    %v2255 = vxor.u32 %v2251, 2147483648
    %v2256 = vmul.f32 %v2253, 1.442695
    %v2257 = vpow.pop %v2256
    %v2258 = vmul.f32 %v2254, 1.442695
    %v2259 = vpow.pop %v2258
    %v2260 = vmul.f32 %v2255, 1.442695
    %v2261 = vpow.pop %v2260
    %v2262 = vadd.f32 %v2257, 1.0
    %v2263 = vadd.f32 %v2259, 1.0
    %v2264 = vadd.f32 %v2261, 1.0
    %v2265 = vrcp.pop %v2262
    %v2266 = vmul.f32 %v2262, %v2265
    %v2267 = vsub.f32 1.0, %v2266
    %v2268 = vmul.f32 %v2265, %v2267
    %v2269 = vadd.f32 %v2265, %v2268
    %vm2270 = vweird.f32 %v2262
    %vm2271 = vweird.f32 %v2265
    %vm2272 = vmor %vm2270, %vm2271
    %v2273 = vsel %vm2272, %v2265, %v2269
    %v2274 = vand.u32 2147483647, %v2262
    %vm2275 = vcmp.eq.f32.partialorder %v2274, 8.507059e+37
    %v2276 = vand.u32 %v2262, 2147483648
    %v2277 = vor.u32 1.1754944e-38, %v2276
    %v2278 = vsel %vm2275, %v2277, %v2273
    %v2279 = vmul.f32 1.0, %v2278
    %v2280 = vrcp.pop %v2263
    %v2281 = vmul.f32 %v2263, %v2280
    %v2282 = vsub.f32 1.0, %v2281
    %v2283 = vmul.f32 %v2280, %v2282
    %v2284 = vadd.f32 %v2280, %v2283
    %vm2285 = vweird.f32 %v2263
    %vm2286 = vweird.f32 %v2280
    %vm2287 = vmor %vm2285, %vm2286
    %v2288 = vsel %vm2287, %v2280, %v2284
    %v2289 = vand.u32 2147483647, %v2263
    %vm2290 = vcmp.eq.f32.partialorder %v2289, 8.507059e+37
    %v2291 = vand.u32 %v2263, 2147483648
    %v2292 = vor.u32 1.1754944e-38, %v2291
    %v2293 = vsel %vm2290, %v2292, %v2288
    %v2294 = vmul.f32 1.0, %v2293
    %v2295 = vrcp.pop %v2264
    %v2296 = vmul.f32 %v2264, %v2295
    %v2297 = vsub.f32 1.0, %v2296
    %v2298 = vmul.f32 %v2295, %v2297
    %v2299 = vadd.f32 %v2295, %v2298
    %vm2300 = vweird.f32 %v2264
    %vm2301 = vweird.f32 %v2295
    %vm2302 = vmor %vm2300, %vm2301
    %v2303 = vsel %vm2302, %v2295, %v2299
    %v2304 = vand.u32 2147483647, %v2264
    %vm2305 = vcmp.eq.f32.partialorder %v2304, 8.507059e+37
    %v2306 = vand.u32 %v2264, 2147483648
    %v2307 = vor.u32 1.1754944e-38, %v2306
    %v2308 = vsel %vm2305, %v2307, %v2303
    %v2309 = vmul.f32 1.0, %v2308
    %v2310 = vtanh.pop %v2252
    %v2311 = vmul.f32 %v2294, %v2164
    %v2312 = vmul.f32 %v2279, %v2310
    %v2313 = vadd.f32 %v2311, %v2312
    %v2314 = vtanh.pop %v2313
    %v2315 = vmul.f32 %v2309, %v2314
    %2316 = vst [vmem:[#allocation2] sm:$0xff] %v2315
    %v2317 = vld [vmem:[%s724] sm:$0xff]
    %v2318 = vld [vmem:[%s724 + $0x8] sm:$0xff]
    %v2319 = vld [vmem:[%s724 + $0x10] sm:$0xff]
    %v2320 = vld [vmem:[%s724 + $0x18] sm:$0xff]
    %2321 = vmatpush.msra.mxu0 %v1877
    %2322 = vmatpush.msra.mxu0 %v1873
    %2323 = vmatpush.msra.mxu0 %v1869
    %2324 = vmatpush.msra.mxu0 %v1865
    %2325 = vmatpush.msra.mxu0 %v1861
    %2326 = vmatpush.msra.mxu0 %v1857
    %2327 = vmatpush.msra.mxu0 %v1853
    %2328 = vmatpush.msra.mxu0 %v1849
    %2329 = vmatpush.msra.mxu0 %v1845
    %2330 = vmatpush.msra.mxu0 %v1841
    %2331 = vmatpush.msra.mxu0 %v1837
    %2332 = vmatpush.msra.mxu0 %v1833
    %2333 = vmatpush.msra.mxu0 %v1829
    %2334 = vmatpush.msra.mxu0 %v1825
    %2335 = vmatpush.msra.mxu0 %v1821
    %2336 = vmatpush.msra.mxu0 %v1817
    %2337 = vmatmul.f32.gmra.mxu0 %v2315
    %v2338 = vpop.f32.mrf.mxu0
    %v2339 = vadd.f32 0.0, %v2338
    %2340 = vdwg.mxu0
    %2341 = vmatpush.msra.mxu0 %v1878
    %2342 = vmatpush.msra.mxu0 %v1874
    %2343 = vmatpush.msra.mxu0 %v1870
    %2344 = vmatpush.msra.mxu0 %v1866
    %2345 = vmatpush.msra.mxu0 %v1862
    %2346 = vmatpush.msra.mxu0 %v1858
    %2347 = vmatpush.msra.mxu0 %v1854
    %2348 = vmatpush.msra.mxu0 %v1850
    %2349 = vmatpush.msra.mxu0 %v1846
    %2350 = vmatpush.msra.mxu0 %v1842
    %2351 = vmatpush.msra.mxu0 %v1838
    %2352 = vmatpush.msra.mxu0 %v1834
    %2353 = vmatpush.msra.mxu0 %v1830
    %2354 = vmatpush.msra.mxu0 %v1826
    %2355 = vmatpush.msra.mxu0 %v1822
    %2356 = vmatpush.msra.mxu0 %v1818
    %2357 = vmatmul.f32.gmra.mxu0 %v2315
    %v2358 = vpop.f32.mrf.mxu0
    %v2359 = vadd.f32 0.0, %v2358
    %2360 = vdwg.mxu0
    %2361 = vmatpush.msra.mxu0 %v1879
    %2362 = vmatpush.msra.mxu0 %v1875
    %2363 = vmatpush.msra.mxu0 %v1871
    %2364 = vmatpush.msra.mxu0 %v1867
    %2365 = vmatpush.msra.mxu0 %v1863
    %2366 = vmatpush.msra.mxu0 %v1859
    %2367 = vmatpush.msra.mxu0 %v1855
    %2368 = vmatpush.msra.mxu0 %v1851
    %2369 = vmatpush.msra.mxu0 %v1847
    %2370 = vmatpush.msra.mxu0 %v1843
    %2371 = vmatpush.msra.mxu0 %v1839
    %2372 = vmatpush.msra.mxu0 %v1835
    %2373 = vmatpush.msra.mxu0 %v1831
    %2374 = vmatpush.msra.mxu0 %v1827
    %2375 = vmatpush.msra.mxu0 %v1823
    %2376 = vmatpush.msra.mxu0 %v1819
    %2377 = vmatmul.f32.gmra.mxu0 %v2315
    %v2378 = vpop.f32.mrf.mxu0
    %v2379 = vadd.f32 0.0, %v2378
    %2380 = vdwg.mxu0
    %2381 = vmatpush.msra.mxu0 %v1880
    %2382 = vmatpush.msra.mxu0 %v1876
    %2383 = vmatpush.msra.mxu0 %v1872
    %2384 = vmatpush.msra.mxu0 %v1868
    %2385 = vmatpush.msra.mxu0 %v1864
    %2386 = vmatpush.msra.mxu0 %v1860
    %2387 = vmatpush.msra.mxu0 %v1856
    %2388 = vmatpush.msra.mxu0 %v1852
    %2389 = vmatpush.msra.mxu0 %v1848
    %2390 = vmatpush.msra.mxu0 %v1844
    %2391 = vmatpush.msra.mxu0 %v1840
    %2392 = vmatpush.msra.mxu0 %v1836
    %2393 = vmatpush.msra.mxu0 %v1832
    %2394 = vmatpush.msra.mxu0 %v1828
    %2395 = vmatpush.msra.mxu0 %v1824
    %2396 = vmatpush.msra.mxu0 %v1820
    %2397 = vmatmul.f32.gmra.mxu0 %v2315
    %v2398 = vpop.f32.mrf.mxu0
    %v2399 = vadd.f32 0.0, %v2398
    %2400 = vdwg.mxu0
    %v2401 = vadd.f32 %v2317, %v2339
    %v2402 = vadd.f32 %v2318, %v2359
    %v2403 = vadd.f32 %v2319, %v2379
    %v2404 = vadd.f32 %v2320, %v2399
    %v2405 = vxor.u32 %v2401, 2147483648
    %v2406 = vxor.u32 %v2402, 2147483648
    %v2407 = vxor.u32 %v2403, 2147483648
    %v2408 = vmul.f32 %v2405, 1.442695
    %v2409 = vpow.pop %v2408
    %v2410 = vmul.f32 %v2406, 1.442695
    %v2411 = vpow.pop %v2410
    %v2412 = vmul.f32 %v2407, 1.442695
    %v2413 = vpow.pop %v2412
    %v2414 = vadd.f32 %v2409, 1.0
    %v2415 = vadd.f32 %v2411, 1.0
    %v2416 = vadd.f32 %v2413, 1.0
    %v2417 = vrcp.pop %v2414
    %v2418 = vmul.f32 %v2414, %v2417
    %v2419 = vsub.f32 1.0, %v2418
    %v2420 = vmul.f32 %v2417, %v2419
    %v2421 = vadd.f32 %v2417, %v2420
    %vm2422 = vweird.f32 %v2414
    %vm2423 = vweird.f32 %v2417
    %vm2424 = vmor %vm2422, %vm2423
    %v2425 = vsel %vm2424, %v2417, %v2421
    %v2426 = vand.u32 2147483647, %v2414
    %vm2427 = vcmp.eq.f32.partialorder %v2426, 8.507059e+37
    %v2428 = vand.u32 %v2414, 2147483648
    %v2429 = vor.u32 1.1754944e-38, %v2428
    %v2430 = vsel %vm2427, %v2429, %v2425
    %v2431 = vmul.f32 1.0, %v2430
    %v2432 = vrcp.pop %v2415
    %v2433 = vmul.f32 %v2415, %v2432
    %v2434 = vsub.f32 1.0, %v2433
    %v2435 = vmul.f32 %v2432, %v2434
    %v2436 = vadd.f32 %v2432, %v2435
    %vm2437 = vweird.f32 %v2415
    %vm2438 = vweird.f32 %v2432
    %vm2439 = vmor %vm2437, %vm2438
    %v2440 = vsel %vm2439, %v2432, %v2436
    %v2441 = vand.u32 2147483647, %v2415
    %vm2442 = vcmp.eq.f32.partialorder %v2441, 8.507059e+37
    %v2443 = vand.u32 %v2415, 2147483648
    %v2444 = vor.u32 1.1754944e-38, %v2443
    %v2445 = vsel %vm2442, %v2444, %v2440
    %v2446 = vmul.f32 1.0, %v2445
    %v2447 = vrcp.pop %v2416
    %v2448 = vmul.f32 %v2416, %v2447
    %v2449 = vsub.f32 1.0, %v2448
    %v2450 = vmul.f32 %v2447, %v2449
    %v2451 = vadd.f32 %v2447, %v2450
    %vm2452 = vweird.f32 %v2416
    %vm2453 = vweird.f32 %v2447
    %vm2454 = vmor %vm2452, %vm2453
    %v2455 = vsel %vm2454, %v2447, %v2451
    %v2456 = vand.u32 2147483647, %v2416
    %vm2457 = vcmp.eq.f32.partialorder %v2456, 8.507059e+37
    %v2458 = vand.u32 %v2416, 2147483648
    %v2459 = vor.u32 1.1754944e-38, %v2458
    %v2460 = vsel %vm2457, %v2459, %v2455
    %v2461 = vmul.f32 1.0, %v2460
    %v2462 = vtanh.pop %v2404
    %v2463 = vmul.f32 %v2446, %v2313
    %v2464 = vmul.f32 %v2431, %v2462
    %v2465 = vadd.f32 %v2463, %v2464
    %v2466 = vtanh.pop %v2465
    %v2467 = vmul.f32 %v2461, %v2466
    %2468 = vst [vmem:[%s876] sm:$0xff] %v2467
    %v2469 = vld [vmem:[%s880] sm:$0xff]
    %v2470 = vld [vmem:[%s880 + $0x8] sm:$0xff]
    %v2471 = vld [vmem:[%s880 + $0x10] sm:$0xff]
    %v2472 = vld [vmem:[%s880 + $0x18] sm:$0xff]
    %2473 = vmatpush.msra.mxu0 %v1877
    %2474 = vmatpush.msra.mxu0 %v1873
    %2475 = vmatpush.msra.mxu0 %v1869
    %2476 = vmatpush.msra.mxu0 %v1865
    %2477 = vmatpush.msra.mxu0 %v1861
    %2478 = vmatpush.msra.mxu0 %v1857
    %2479 = vmatpush.msra.mxu0 %v1853
    %2480 = vmatpush.msra.mxu0 %v1849
    %2481 = vmatpush.msra.mxu0 %v1845
    %2482 = vmatpush.msra.mxu0 %v1841
    %2483 = vmatpush.msra.mxu0 %v1837
    %2484 = vmatpush.msra.mxu0 %v1833
    %2485 = vmatpush.msra.mxu0 %v1829
    %2486 = vmatpush.msra.mxu0 %v1825
    %2487 = vmatpush.msra.mxu0 %v1821
    %2488 = vmatpush.msra.mxu0 %v1817
    %2489 = vmatmul.f32.gmra.mxu0 %v2467
    %v2490 = vpop.f32.mrf.mxu0
    %v2491 = vadd.f32 0.0, %v2490
    %2492 = vdwg.mxu0
    %2493 = vmatpush.msra.mxu0 %v1878
    %2494 = vmatpush.msra.mxu0 %v1874
    %2495 = vmatpush.msra.mxu0 %v1870
    %2496 = vmatpush.msra.mxu0 %v1866
    %2497 = vmatpush.msra.mxu0 %v1862
    %2498 = vmatpush.msra.mxu0 %v1858
    %2499 = vmatpush.msra.mxu0 %v1854
    %2500 = vmatpush.msra.mxu0 %v1850
    %2501 = vmatpush.msra.mxu0 %v1846
    %2502 = vmatpush.msra.mxu0 %v1842
    %2503 = vmatpush.msra.mxu0 %v1838
    %2504 = vmatpush.msra.mxu0 %v1834
    %2505 = vmatpush.msra.mxu0 %v1830
    %2506 = vmatpush.msra.mxu0 %v1826
    %2507 = vmatpush.msra.mxu0 %v1822
    %2508 = vmatpush.msra.mxu0 %v1818
    %2509 = vmatmul.f32.gmra.mxu0 %v2467
    %v2510 = vpop.f32.mrf.mxu0
    %v2511 = vadd.f32 0.0, %v2510
    %2512 = vdwg.mxu0
    %2513 = vmatpush.msra.mxu0 %v1879
    %2514 = vmatpush.msra.mxu0 %v1875
    %2515 = vmatpush.msra.mxu0 %v1871
    %2516 = vmatpush.msra.mxu0 %v1867
    %2517 = vmatpush.msra.mxu0 %v1863
    %2518 = vmatpush.msra.mxu0 %v1859
    %2519 = vmatpush.msra.mxu0 %v1855
    %2520 = vmatpush.msra.mxu0 %v1851
    %2521 = vmatpush.msra.mxu0 %v1847
    %2522 = vmatpush.msra.mxu0 %v1843
    %2523 = vmatpush.msra.mxu0 %v1839
    %2524 = vmatpush.msra.mxu0 %v1835
    %2525 = vmatpush.msra.mxu0 %v1831
    %2526 = vmatpush.msra.mxu0 %v1827
    %2527 = vmatpush.msra.mxu0 %v1823
    %2528 = vmatpush.msra.mxu0 %v1819
    %2529 = vmatmul.f32.gmra.mxu0 %v2467
    %v2530 = vpop.f32.mrf.mxu0
    %v2531 = vadd.f32 0.0, %v2530
    %2532 = vdwg.mxu0
    %2533 = vmatpush.msra.mxu0 %v1880
    %2534 = vmatpush.msra.mxu0 %v1876
    %2535 = vmatpush.msra.mxu0 %v1872
    %2536 = vmatpush.msra.mxu0 %v1868
    %2537 = vmatpush.msra.mxu0 %v1864
    %2538 = vmatpush.msra.mxu0 %v1860
    %2539 = vmatpush.msra.mxu0 %v1856
    %2540 = vmatpush.msra.mxu0 %v1852
    %2541 = vmatpush.msra.mxu0 %v1848
    %2542 = vmatpush.msra.mxu0 %v1844
    %2543 = vmatpush.msra.mxu0 %v1840
    %2544 = vmatpush.msra.mxu0 %v1836
    %2545 = vmatpush.msra.mxu0 %v1832
    %2546 = vmatpush.msra.mxu0 %v1828
    %2547 = vmatpush.msra.mxu0 %v1824
    %2548 = vmatpush.msra.mxu0 %v1820
    %2549 = vmatmul.f32.gmra.mxu0 %v2467
    %v2550 = vpop.f32.mrf.mxu0
    %v2551 = vadd.f32 0.0, %v2550
    %2552 = vdwg.mxu0
    %v2553 = vadd.f32 %v2469, %v2491
    %v2554 = vadd.f32 %v2470, %v2511
    %v2555 = vadd.f32 %v2471, %v2531
    %v2556 = vadd.f32 %v2472, %v2551
    %v2557 = vxor.u32 %v2553, 2147483648
    %v2558 = vxor.u32 %v2554, 2147483648
    %v2559 = vxor.u32 %v2555, 2147483648
    %v2560 = vmul.f32 %v2557, 1.442695
    %v2561 = vpow.pop %v2560
    %v2562 = vmul.f32 %v2558, 1.442695
    %v2563 = vpow.pop %v2562
    %v2564 = vmul.f32 %v2559, 1.442695
    %v2565 = vpow.pop %v2564
    %v2566 = vadd.f32 %v2561, 1.0
    %v2567 = vadd.f32 %v2563, 1.0
    %v2568 = vadd.f32 %v2565, 1.0
    %v2569 = vrcp.pop %v2566
    %v2570 = vmul.f32 %v2566, %v2569
    %v2571 = vsub.f32 1.0, %v2570
    %v2572 = vmul.f32 %v2569, %v2571
    %v2573 = vadd.f32 %v2569, %v2572
    %vm2574 = vweird.f32 %v2566
    %vm2575 = vweird.f32 %v2569
    %vm2576 = vmor %vm2574, %vm2575
    %v2577 = vsel %vm2576, %v2569, %v2573
    %v2578 = vand.u32 2147483647, %v2566
    %vm2579 = vcmp.eq.f32.partialorder %v2578, 8.507059e+37
    %v2580 = vand.u32 %v2566, 2147483648
    %v2581 = vor.u32 1.1754944e-38, %v2580
    %v2582 = vsel %vm2579, %v2581, %v2577
    %v2583 = vmul.f32 1.0, %v2582
    %v2584 = vrcp.pop %v2567
    %v2585 = vmul.f32 %v2567, %v2584
    %v2586 = vsub.f32 1.0, %v2585
    %v2587 = vmul.f32 %v2584, %v2586
    %v2588 = vadd.f32 %v2584, %v2587
    %vm2589 = vweird.f32 %v2567
    %vm2590 = vweird.f32 %v2584
    %vm2591 = vmor %vm2589, %vm2590
    %v2592 = vsel %vm2591, %v2584, %v2588
    %v2593 = vand.u32 2147483647, %v2567
    %vm2594 = vcmp.eq.f32.partialorder %v2593, 8.507059e+37
    %v2595 = vand.u32 %v2567, 2147483648
    %v2596 = vor.u32 1.1754944e-38, %v2595
    %v2597 = vsel %vm2594, %v2596, %v2592
    %v2598 = vmul.f32 1.0, %v2597
    %v2599 = vrcp.pop %v2568
    %v2600 = vmul.f32 %v2568, %v2599
    %v2601 = vsub.f32 1.0, %v2600
    %v2602 = vmul.f32 %v2599, %v2601
    %v2603 = vadd.f32 %v2599, %v2602
    %vm2604 = vweird.f32 %v2568
    %vm2605 = vweird.f32 %v2599
    %vm2606 = vmor %vm2604, %vm2605
    %v2607 = vsel %vm2606, %v2599, %v2603
    %v2608 = vand.u32 2147483647, %v2568
    %vm2609 = vcmp.eq.f32.partialorder %v2608, 8.507059e+37
    %v2610 = vand.u32 %v2568, 2147483648
    %v2611 = vor.u32 1.1754944e-38, %v2610
    %v2612 = vsel %vm2609, %v2611, %v2607
    %v2613 = vmul.f32 1.0, %v2612
    %v2614 = vtanh.pop %v2556
    %v2615 = vmul.f32 %v2598, %v2465
    %v2616 = vmul.f32 %v2583, %v2614
    %v2617 = vadd.f32 %v2615, %v2616
    %v2618 = vtanh.pop %v2617
    %v2619 = vmul.f32 %v2613, %v2618
    %2620 = vst [vmem:[%s1032] sm:$0xff] %v2619
    %v2621 = vld [vmem:[%s1036] sm:$0xff]
    %v2622 = vld [vmem:[%s1036 + $0x8] sm:$0xff]
    %v2623 = vld [vmem:[%s1036 + $0x10] sm:$0xff]
    %v2624 = vld [vmem:[%s1036 + $0x18] sm:$0xff]
    %2625 = vmatpush.msra.mxu0 %v1877
    %2626 = vmatpush.msra.mxu0 %v1873
    %2627 = vmatpush.msra.mxu0 %v1869
    %2628 = vmatpush.msra.mxu0 %v1865
    %2629 = vmatpush.msra.mxu0 %v1861
    %2630 = vmatpush.msra.mxu0 %v1857
    %2631 = vmatpush.msra.mxu0 %v1853
    %2632 = vmatpush.msra.mxu0 %v1849
    %2633 = vmatpush.msra.mxu0 %v1845
    %2634 = vmatpush.msra.mxu0 %v1841
    %2635 = vmatpush.msra.mxu0 %v1837
    %2636 = vmatpush.msra.mxu0 %v1833
    %2637 = vmatpush.msra.mxu0 %v1829
    %2638 = vmatpush.msra.mxu0 %v1825
    %2639 = vmatpush.msra.mxu0 %v1821
    %2640 = vmatpush.msra.mxu0 %v1817
    %2641 = vmatmul.f32.gmra.mxu0 %v2619
    %v2642 = vpop.f32.mrf.mxu0
    %v2643 = vadd.f32 0.0, %v2642
    %2644 = vdwg.mxu0
    %2645 = vmatpush.msra.mxu0 %v1878
    %2646 = vmatpush.msra.mxu0 %v1874
    %2647 = vmatpush.msra.mxu0 %v1870
    %2648 = vmatpush.msra.mxu0 %v1866
    %2649 = vmatpush.msra.mxu0 %v1862
    %2650 = vmatpush.msra.mxu0 %v1858
    %2651 = vmatpush.msra.mxu0 %v1854
    %2652 = vmatpush.msra.mxu0 %v1850
    %2653 = vmatpush.msra.mxu0 %v1846
    %2654 = vmatpush.msra.mxu0 %v1842
    %2655 = vmatpush.msra.mxu0 %v1838
    %2656 = vmatpush.msra.mxu0 %v1834
    %2657 = vmatpush.msra.mxu0 %v1830
    %2658 = vmatpush.msra.mxu0 %v1826
    %2659 = vmatpush.msra.mxu0 %v1822
    %2660 = vmatpush.msra.mxu0 %v1818
    %2661 = vmatmul.f32.gmra.mxu0 %v2619
    %v2662 = vpop.f32.mrf.mxu0
    %v2663 = vadd.f32 0.0, %v2662
    %2664 = vdwg.mxu0
    %2665 = vmatpush.msra.mxu0 %v1879
    %2666 = vmatpush.msra.mxu0 %v1875
    %2667 = vmatpush.msra.mxu0 %v1871
    %2668 = vmatpush.msra.mxu0 %v1867
    %2669 = vmatpush.msra.mxu0 %v1863
    %2670 = vmatpush.msra.mxu0 %v1859
    %2671 = vmatpush.msra.mxu0 %v1855
    %2672 = vmatpush.msra.mxu0 %v1851
    %2673 = vmatpush.msra.mxu0 %v1847
    %2674 = vmatpush.msra.mxu0 %v1843
    %2675 = vmatpush.msra.mxu0 %v1839
    %2676 = vmatpush.msra.mxu0 %v1835
    %2677 = vmatpush.msra.mxu0 %v1831
    %2678 = vmatpush.msra.mxu0 %v1827
    %2679 = vmatpush.msra.mxu0 %v1823
    %2680 = vmatpush.msra.mxu0 %v1819
    %2681 = vmatmul.f32.gmra.mxu0 %v2619
    %v2682 = vpop.f32.mrf.mxu0
    %v2683 = vadd.f32 0.0, %v2682
    %2684 = vdwg.mxu0
    %2685 = vmatpush.msra.mxu0 %v1880
    %2686 = vmatpush.msra.mxu0 %v1876
    %2687 = vmatpush.msra.mxu0 %v1872
    %2688 = vmatpush.msra.mxu0 %v1868
    %2689 = vmatpush.msra.mxu0 %v1864
    %2690 = vmatpush.msra.mxu0 %v1860
    %2691 = vmatpush.msra.mxu0 %v1856
    %2692 = vmatpush.msra.mxu0 %v1852
    %2693 = vmatpush.msra.mxu0 %v1848
    %2694 = vmatpush.msra.mxu0 %v1844
    %2695 = vmatpush.msra.mxu0 %v1840
    %2696 = vmatpush.msra.mxu0 %v1836
    %2697 = vmatpush.msra.mxu0 %v1832
    %2698 = vmatpush.msra.mxu0 %v1828
    %2699 = vmatpush.msra.mxu0 %v1824
    %2700 = vmatpush.msra.mxu0 %v1820
    %2701 = vmatmul.f32.gmra.mxu0 %v2619
    %v2702 = vpop.f32.mrf.mxu0
    %v2703 = vadd.f32 0.0, %v2702
    %2704 = vdwg.mxu0
    %v2705 = vadd.f32 %v2621, %v2643
    %v2706 = vadd.f32 %v2622, %v2663
    %v2707 = vadd.f32 %v2623, %v2683
    %v2708 = vadd.f32 %v2624, %v2703
    %v2709 = vxor.u32 %v2705, 2147483648
    %v2710 = vxor.u32 %v2706, 2147483648
    %v2711 = vxor.u32 %v2707, 2147483648
    %v2712 = vmul.f32 %v2709, 1.442695
    %v2713 = vpow.pop %v2712
    %v2714 = vmul.f32 %v2710, 1.442695
    %v2715 = vpow.pop %v2714
    %v2716 = vmul.f32 %v2711, 1.442695
    %v2717 = vpow.pop %v2716
    %v2718 = vadd.f32 %v2713, 1.0
    %v2719 = vadd.f32 %v2715, 1.0
    %v2720 = vadd.f32 %v2717, 1.0
    %v2721 = vrcp.pop %v2718
    %v2722 = vmul.f32 %v2718, %v2721
    %v2723 = vsub.f32 1.0, %v2722
    %v2724 = vmul.f32 %v2721, %v2723
    %v2725 = vadd.f32 %v2721, %v2724
    %vm2726 = vweird.f32 %v2718
    %vm2727 = vweird.f32 %v2721
    %vm2728 = vmor %vm2726, %vm2727
    %v2729 = vsel %vm2728, %v2721, %v2725
    %v2730 = vand.u32 2147483647, %v2718
    %vm2731 = vcmp.eq.f32.partialorder %v2730, 8.507059e+37
    %v2732 = vand.u32 %v2718, 2147483648
    %v2733 = vor.u32 1.1754944e-38, %v2732
    %v2734 = vsel %vm2731, %v2733, %v2729
    %v2735 = vmul.f32 1.0, %v2734
    %v2736 = vrcp.pop %v2719
    %v2737 = vmul.f32 %v2719, %v2736
    %v2738 = vsub.f32 1.0, %v2737
    %v2739 = vmul.f32 %v2736, %v2738
    %v2740 = vadd.f32 %v2736, %v2739
    %vm2741 = vweird.f32 %v2719
    %vm2742 = vweird.f32 %v2736
    %vm2743 = vmor %vm2741, %vm2742
    %v2744 = vsel %vm2743, %v2736, %v2740
    %v2745 = vand.u32 2147483647, %v2719
    %vm2746 = vcmp.eq.f32.partialorder %v2745, 8.507059e+37
    %v2747 = vand.u32 %v2719, 2147483648
    %v2748 = vor.u32 1.1754944e-38, %v2747
    %v2749 = vsel %vm2746, %v2748, %v2744
    %v2750 = vmul.f32 1.0, %v2749
    %v2751 = vrcp.pop %v2720
    %v2752 = vmul.f32 %v2720, %v2751
    %v2753 = vsub.f32 1.0, %v2752
    %v2754 = vmul.f32 %v2751, %v2753
    %v2755 = vadd.f32 %v2751, %v2754
    %vm2756 = vweird.f32 %v2720
    %vm2757 = vweird.f32 %v2751
    %vm2758 = vmor %vm2756, %vm2757
    %v2759 = vsel %vm2758, %v2751, %v2755
    %v2760 = vand.u32 2147483647, %v2720
    %vm2761 = vcmp.eq.f32.partialorder %v2760, 8.507059e+37
    %v2762 = vand.u32 %v2720, 2147483648
    %v2763 = vor.u32 1.1754944e-38, %v2762
    %v2764 = vsel %vm2761, %v2763, %v2759
    %v2765 = vmul.f32 1.0, %v2764
    %v2766 = vtanh.pop %v2708
    %v2767 = vmul.f32 %v2750, %v2617
    %v2768 = vmul.f32 %v2735, %v2766
    %v2769 = vadd.f32 %v2767, %v2768
    %v2770 = vtanh.pop %v2769
    %v2771 = vmul.f32 %v2765, %v2770
    %2772 = vst [vmem:[%s1188] sm:$0xff] %v2771
    %v2773 = vld [vmem:[%s1192] sm:$0xff]
    %v2774 = vld [vmem:[%s1192 + $0x8] sm:$0xff]
    %v2775 = vld [vmem:[%s1192 + $0x10] sm:$0xff]
    %v2776 = vld [vmem:[%s1192 + $0x18] sm:$0xff]
    %2777 = vmatpush.msra.mxu0 %v1877
    %2778 = vmatpush.msra.mxu0 %v1873
    %2779 = vmatpush.msra.mxu0 %v1869
    %2780 = vmatpush.msra.mxu0 %v1865
    %2781 = vmatpush.msra.mxu0 %v1861
    %2782 = vmatpush.msra.mxu0 %v1857
    %2783 = vmatpush.msra.mxu0 %v1853
    %2784 = vmatpush.msra.mxu0 %v1849
    %2785 = vmatpush.msra.mxu0 %v1845
    %2786 = vmatpush.msra.mxu0 %v1841
    %2787 = vmatpush.msra.mxu0 %v1837
    %2788 = vmatpush.msra.mxu0 %v1833
    %2789 = vmatpush.msra.mxu0 %v1829
    %2790 = vmatpush.msra.mxu0 %v1825
    %2791 = vmatpush.msra.mxu0 %v1821
    %2792 = vmatpush.msra.mxu0 %v1817
    %2793 = vmatmul.f32.gmra.mxu0 %v2771
    %v2794 = vpop.f32.mrf.mxu0
    %v2795 = vadd.f32 0.0, %v2794
    %2796 = vdwg.mxu0
    %2797 = vmatpush.msra.mxu0 %v1878
    %2798 = vmatpush.msra.mxu0 %v1874
    %2799 = vmatpush.msra.mxu0 %v1870
    %2800 = vmatpush.msra.mxu0 %v1866
    %2801 = vmatpush.msra.mxu0 %v1862
    %2802 = vmatpush.msra.mxu0 %v1858
    %2803 = vmatpush.msra.mxu0 %v1854
    %2804 = vmatpush.msra.mxu0 %v1850
    %2805 = vmatpush.msra.mxu0 %v1846
    %2806 = vmatpush.msra.mxu0 %v1842
    %2807 = vmatpush.msra.mxu0 %v1838
    %2808 = vmatpush.msra.mxu0 %v1834
    %2809 = vmatpush.msra.mxu0 %v1830
    %2810 = vmatpush.msra.mxu0 %v1826
    %2811 = vmatpush.msra.mxu0 %v1822
    %2812 = vmatpush.msra.mxu0 %v1818
    %2813 = vmatmul.f32.gmra.mxu0 %v2771
    %v2814 = vpop.f32.mrf.mxu0
    %v2815 = vadd.f32 0.0, %v2814
    %2816 = vdwg.mxu0
    %2817 = vmatpush.msra.mxu0 %v1879
    %2818 = vmatpush.msra.mxu0 %v1875
    %2819 = vmatpush.msra.mxu0 %v1871
    %2820 = vmatpush.msra.mxu0 %v1867
    %2821 = vmatpush.msra.mxu0 %v1863
    %2822 = vmatpush.msra.mxu0 %v1859
    %2823 = vmatpush.msra.mxu0 %v1855
    %2824 = vmatpush.msra.mxu0 %v1851
    %2825 = vmatpush.msra.mxu0 %v1847
    %2826 = vmatpush.msra.mxu0 %v1843
    %2827 = vmatpush.msra.mxu0 %v1839
    %2828 = vmatpush.msra.mxu0 %v1835
    %2829 = vmatpush.msra.mxu0 %v1831
    %2830 = vmatpush.msra.mxu0 %v1827
    %2831 = vmatpush.msra.mxu0 %v1823
    %2832 = vmatpush.msra.mxu0 %v1819
    %2833 = vmatmul.f32.gmra.mxu0 %v2771
    %v2834 = vpop.f32.mrf.mxu0
    %v2835 = vadd.f32 0.0, %v2834
    %2836 = vdwg.mxu0
    %2837 = vmatpush.msra.mxu0 %v1880
    %2838 = vmatpush.msra.mxu0 %v1876
    %2839 = vmatpush.msra.mxu0 %v1872
    %2840 = vmatpush.msra.mxu0 %v1868
    %2841 = vmatpush.msra.mxu0 %v1864
    %2842 = vmatpush.msra.mxu0 %v1860
    %2843 = vmatpush.msra.mxu0 %v1856
    %2844 = vmatpush.msra.mxu0 %v1852
    %2845 = vmatpush.msra.mxu0 %v1848
    %2846 = vmatpush.msra.mxu0 %v1844
    %2847 = vmatpush.msra.mxu0 %v1840
    %2848 = vmatpush.msra.mxu0 %v1836
    %2849 = vmatpush.msra.mxu0 %v1832
    %2850 = vmatpush.msra.mxu0 %v1828
    %2851 = vmatpush.msra.mxu0 %v1824
    %2852 = vmatpush.msra.mxu0 %v1820
    %2853 = vmatmul.f32.gmra.mxu0 %v2771
    %v2854 = vpop.f32.mrf.mxu0
    %v2855 = vadd.f32 0.0, %v2854
    %2856 = vdwg.mxu0
    %v2857 = vadd.f32 %v2773, %v2795
    %v2858 = vadd.f32 %v2774, %v2815
    %v2859 = vadd.f32 %v2775, %v2835
    %v2860 = vadd.f32 %v2776, %v2855
    %v2861 = vxor.u32 %v2857, 2147483648
    %v2862 = vxor.u32 %v2858, 2147483648
    %v2863 = vxor.u32 %v2859, 2147483648
    %v2864 = vmul.f32 %v2861, 1.442695
    %v2865 = vpow.pop %v2864
    %v2866 = vmul.f32 %v2862, 1.442695
    %v2867 = vpow.pop %v2866
    %v2868 = vmul.f32 %v2863, 1.442695
    %v2869 = vpow.pop %v2868
    %v2870 = vadd.f32 %v2865, 1.0
    %v2871 = vadd.f32 %v2867, 1.0
    %v2872 = vadd.f32 %v2869, 1.0
    %v2873 = vrcp.pop %v2870
    %v2874 = vmul.f32 %v2870, %v2873
    %v2875 = vsub.f32 1.0, %v2874
    %v2876 = vmul.f32 %v2873, %v2875
    %v2877 = vadd.f32 %v2873, %v2876
    %vm2878 = vweird.f32 %v2870
    %vm2879 = vweird.f32 %v2873
    %vm2880 = vmor %vm2878, %vm2879
    %v2881 = vsel %vm2880, %v2873, %v2877
    %v2882 = vand.u32 2147483647, %v2870
    %vm2883 = vcmp.eq.f32.partialorder %v2882, 8.507059e+37
    %v2884 = vand.u32 %v2870, 2147483648
    %v2885 = vor.u32 1.1754944e-38, %v2884
    %v2886 = vsel %vm2883, %v2885, %v2881
    %v2887 = vmul.f32 1.0, %v2886
    %v2888 = vrcp.pop %v2871
    %v2889 = vmul.f32 %v2871, %v2888
    %v2890 = vsub.f32 1.0, %v2889
    %v2891 = vmul.f32 %v2888, %v2890
    %v2892 = vadd.f32 %v2888, %v2891
    %vm2893 = vweird.f32 %v2871
    %vm2894 = vweird.f32 %v2888
    %vm2895 = vmor %vm2893, %vm2894
    %v2896 = vsel %vm2895, %v2888, %v2892
    %v2897 = vand.u32 2147483647, %v2871
    %vm2898 = vcmp.eq.f32.partialorder %v2897, 8.507059e+37
    %v2899 = vand.u32 %v2871, 2147483648
    %v2900 = vor.u32 1.1754944e-38, %v2899
    %v2901 = vsel %vm2898, %v2900, %v2896
    %v2902 = vmul.f32 1.0, %v2901
    %v2903 = vrcp.pop %v2872
    %v2904 = vmul.f32 %v2872, %v2903
    %v2905 = vsub.f32 1.0, %v2904
    %v2906 = vmul.f32 %v2903, %v2905
    %v2907 = vadd.f32 %v2903, %v2906
    %vm2908 = vweird.f32 %v2872
    %vm2909 = vweird.f32 %v2903
    %vm2910 = vmor %vm2908, %vm2909
    %v2911 = vsel %vm2910, %v2903, %v2907
    %v2912 = vand.u32 2147483647, %v2872
    %vm2913 = vcmp.eq.f32.partialorder %v2912, 8.507059e+37
    %v2914 = vand.u32 %v2872, 2147483648
    %v2915 = vor.u32 1.1754944e-38, %v2914
    %v2916 = vsel %vm2913, %v2915, %v2911
    %v2917 = vmul.f32 1.0, %v2916
    %v2918 = vtanh.pop %v2860
    %v2919 = vmul.f32 %v2902, %v2769
    %v2920 = vmul.f32 %v2887, %v2918
    %v2921 = vadd.f32 %v2919, %v2920
    %v2922 = vtanh.pop %v2921
    %v2923 = vmul.f32 %v2917, %v2922
    %2924 = vst [vmem:[%s1344] sm:$0xff] %v2923
    %v2925 = vld [vmem:[%s1348] sm:$0xff]
    %v2926 = vld [vmem:[%s1348 + $0x8] sm:$0xff]
    %v2927 = vld [vmem:[%s1348 + $0x10] sm:$0xff]
    %v2928 = vld [vmem:[%s1348 + $0x18] sm:$0xff]
    %2929 = vmatpush.msra.mxu0 %v1877
    %2930 = vmatpush.msra.mxu0 %v1873
    %2931 = vmatpush.msra.mxu0 %v1869
    %2932 = vmatpush.msra.mxu0 %v1865
    %2933 = vmatpush.msra.mxu0 %v1861
    %2934 = vmatpush.msra.mxu0 %v1857
    %2935 = vmatpush.msra.mxu0 %v1853
    %2936 = vmatpush.msra.mxu0 %v1849
    %2937 = vmatpush.msra.mxu0 %v1845
    %2938 = vmatpush.msra.mxu0 %v1841
    %2939 = vmatpush.msra.mxu0 %v1837
    %2940 = vmatpush.msra.mxu0 %v1833
    %2941 = vmatpush.msra.mxu0 %v1829
    %2942 = vmatpush.msra.mxu0 %v1825
    %2943 = vmatpush.msra.mxu0 %v1821
    %2944 = vmatpush.msra.mxu0 %v1817
    %2945 = vmatmul.f32.gmra.mxu0 %v2923
    %v2946 = vpop.f32.mrf.mxu0
    %v2947 = vadd.f32 0.0, %v2946
    %2948 = vdwg.mxu0
    %2949 = vmatpush.msra.mxu0 %v1878
    %2950 = vmatpush.msra.mxu0 %v1874
    %2951 = vmatpush.msra.mxu0 %v1870
    %2952 = vmatpush.msra.mxu0 %v1866
    %2953 = vmatpush.msra.mxu0 %v1862
    %2954 = vmatpush.msra.mxu0 %v1858
    %2955 = vmatpush.msra.mxu0 %v1854
    %2956 = vmatpush.msra.mxu0 %v1850
    %2957 = vmatpush.msra.mxu0 %v1846
    %2958 = vmatpush.msra.mxu0 %v1842
    %2959 = vmatpush.msra.mxu0 %v1838
    %2960 = vmatpush.msra.mxu0 %v1834
    %2961 = vmatpush.msra.mxu0 %v1830
    %2962 = vmatpush.msra.mxu0 %v1826
    %2963 = vmatpush.msra.mxu0 %v1822
    %2964 = vmatpush.msra.mxu0 %v1818
    %2965 = vmatmul.f32.gmra.mxu0 %v2923
    %v2966 = vpop.f32.mrf.mxu0
    %v2967 = vadd.f32 0.0, %v2966
    %2968 = vdwg.mxu0
    %2969 = vmatpush.msra.mxu0 %v1879
    %2970 = vmatpush.msra.mxu0 %v1875
    %2971 = vmatpush.msra.mxu0 %v1871
    %2972 = vmatpush.msra.mxu0 %v1867
    %2973 = vmatpush.msra.mxu0 %v1863
    %2974 = vmatpush.msra.mxu0 %v1859
    %2975 = vmatpush.msra.mxu0 %v1855
    %2976 = vmatpush.msra.mxu0 %v1851
    %2977 = vmatpush.msra.mxu0 %v1847
    %2978 = vmatpush.msra.mxu0 %v1843
    %2979 = vmatpush.msra.mxu0 %v1839
    %2980 = vmatpush.msra.mxu0 %v1835
    %2981 = vmatpush.msra.mxu0 %v1831
    %2982 = vmatpush.msra.mxu0 %v1827
    %2983 = vmatpush.msra.mxu0 %v1823
    %2984 = vmatpush.msra.mxu0 %v1819
    %2985 = vmatmul.f32.gmra.mxu0 %v2923
    %v2986 = vpop.f32.mrf.mxu0
    %v2987 = vadd.f32 0.0, %v2986
    %2988 = vdwg.mxu0
    %2989 = vmatpush.msra.mxu0 %v1880
    %2990 = vmatpush.msra.mxu0 %v1876
    %2991 = vmatpush.msra.mxu0 %v1872
    %2992 = vmatpush.msra.mxu0 %v1868
    %2993 = vmatpush.msra.mxu0 %v1864
    %2994 = vmatpush.msra.mxu0 %v1860
    %2995 = vmatpush.msra.mxu0 %v1856
    %2996 = vmatpush.msra.mxu0 %v1852
    %2997 = vmatpush.msra.mxu0 %v1848
    %2998 = vmatpush.msra.mxu0 %v1844
    %2999 = vmatpush.msra.mxu0 %v1840
    %3000 = vmatpush.msra.mxu0 %v1836
    %3001 = vmatpush.msra.mxu0 %v1832
    %3002 = vmatpush.msra.mxu0 %v1828
    %3003 = vmatpush.msra.mxu0 %v1824
    %3004 = vmatpush.msra.mxu0 %v1820
    %3005 = vmatmul.f32.gmra.mxu0 %v2923
    %v3006 = vpop.f32.mrf.mxu0
    %v3007 = vadd.f32 0.0, %v3006
    %3008 = vdwg.mxu0
    %v3009 = vadd.f32 %v2925, %v2947
    %v3010 = vadd.f32 %v2926, %v2967
    %v3011 = vadd.f32 %v2927, %v2987
    %v3012 = vadd.f32 %v2928, %v3007
    %v3013 = vxor.u32 %v3009, 2147483648
    %v3014 = vxor.u32 %v3010, 2147483648
    %v3015 = vxor.u32 %v3011, 2147483648
    %v3016 = vmul.f32 %v3013, 1.442695
    %v3017 = vpow.pop %v3016
    %v3018 = vmul.f32 %v3014, 1.442695
    %v3019 = vpow.pop %v3018
    %v3020 = vmul.f32 %v3015, 1.442695
    %v3021 = vpow.pop %v3020
    %v3022 = vadd.f32 %v3017, 1.0
    %v3023 = vadd.f32 %v3019, 1.0
    %v3024 = vadd.f32 %v3021, 1.0
    %v3025 = vrcp.pop %v3022
    %v3026 = vmul.f32 %v3022, %v3025
    %v3027 = vsub.f32 1.0, %v3026
    %v3028 = vmul.f32 %v3025, %v3027
    %v3029 = vadd.f32 %v3025, %v3028
    %vm3030 = vweird.f32 %v3022
    %vm3031 = vweird.f32 %v3025
    %vm3032 = vmor %vm3030, %vm3031
    %v3033 = vsel %vm3032, %v3025, %v3029
    %v3034 = vand.u32 2147483647, %v3022
    %vm3035 = vcmp.eq.f32.partialorder %v3034, 8.507059e+37
    %v3036 = vand.u32 %v3022, 2147483648
    %v3037 = vor.u32 1.1754944e-38, %v3036
    %v3038 = vsel %vm3035, %v3037, %v3033
    %v3039 = vmul.f32 1.0, %v3038
    %v3040 = vrcp.pop %v3023
    %v3041 = vmul.f32 %v3023, %v3040
    %v3042 = vsub.f32 1.0, %v3041
    %v3043 = vmul.f32 %v3040, %v3042
    %v3044 = vadd.f32 %v3040, %v3043
    %vm3045 = vweird.f32 %v3023
    %vm3046 = vweird.f32 %v3040
    %vm3047 = vmor %vm3045, %vm3046
    %v3048 = vsel %vm3047, %v3040, %v3044
    %v3049 = vand.u32 2147483647, %v3023
    %vm3050 = vcmp.eq.f32.partialorder %v3049, 8.507059e+37
    %v3051 = vand.u32 %v3023, 2147483648
    %v3052 = vor.u32 1.1754944e-38, %v3051
    %v3053 = vsel %vm3050, %v3052, %v3048
    %v3054 = vmul.f32 1.0, %v3053
    %v3055 = vrcp.pop %v3024
    %v3056 = vmul.f32 %v3024, %v3055
    %v3057 = vsub.f32 1.0, %v3056
    %v3058 = vmul.f32 %v3055, %v3057
    %v3059 = vadd.f32 %v3055, %v3058
    %vm3060 = vweird.f32 %v3024
    %vm3061 = vweird.f32 %v3055
    %vm3062 = vmor %vm3060, %vm3061
    %v3063 = vsel %vm3062, %v3055, %v3059
    %v3064 = vand.u32 2147483647, %v3024
    %vm3065 = vcmp.eq.f32.partialorder %v3064, 8.507059e+37
    %v3066 = vand.u32 %v3024, 2147483648
    %v3067 = vor.u32 1.1754944e-38, %v3066
    %v3068 = vsel %vm3065, %v3067, %v3063
    %v3069 = vmul.f32 1.0, %v3068
    %v3070 = vtanh.pop %v3012
    %v3071 = vmul.f32 %v3054, %v2921
    %v3072 = vmul.f32 %v3039, %v3070
    %v3073 = vadd.f32 %v3071, %v3072
    %v3074 = vtanh.pop %v3073
    %v3075 = vmul.f32 %v3069, %v3074
    %3076 = vst [vmem:[%s1500] sm:$0xff] %v3075
    %v3077 = vld [vmem:[%s1504] sm:$0xff]
    %v3078 = vld [vmem:[%s1504 + $0x8] sm:$0xff]
    %v3079 = vld [vmem:[%s1504 + $0x10] sm:$0xff]
    %v3080 = vld [vmem:[%s1504 + $0x18] sm:$0xff]
    %3081 = vmatpush.msra.mxu0 %v1877
    %3082 = vmatpush.msra.mxu0 %v1873
    %3083 = vmatpush.msra.mxu0 %v1869
    %3084 = vmatpush.msra.mxu0 %v1865
    %3085 = vmatpush.msra.mxu0 %v1861
    %3086 = vmatpush.msra.mxu0 %v1857
    %3087 = vmatpush.msra.mxu0 %v1853
    %3088 = vmatpush.msra.mxu0 %v1849
    %3089 = vmatpush.msra.mxu0 %v1845
    %3090 = vmatpush.msra.mxu0 %v1841
    %3091 = vmatpush.msra.mxu0 %v1837
    %3092 = vmatpush.msra.mxu0 %v1833
    %3093 = vmatpush.msra.mxu0 %v1829
    %3094 = vmatpush.msra.mxu0 %v1825
    %3095 = vmatpush.msra.mxu0 %v1821
    %3096 = vmatpush.msra.mxu0 %v1817
    %3097 = vmatmul.f32.gmra.mxu0 %v3075
    %v3098 = vpop.f32.mrf.mxu0
    %v3099 = vadd.f32 0.0, %v3098
    %3100 = vdwg.mxu0
    %3101 = vmatpush.msra.mxu0 %v1878
    %3102 = vmatpush.msra.mxu0 %v1874
    %3103 = vmatpush.msra.mxu0 %v1870
    %3104 = vmatpush.msra.mxu0 %v1866
    %3105 = vmatpush.msra.mxu0 %v1862
    %3106 = vmatpush.msra.mxu0 %v1858
    %3107 = vmatpush.msra.mxu0 %v1854
    %3108 = vmatpush.msra.mxu0 %v1850
    %3109 = vmatpush.msra.mxu0 %v1846
    %3110 = vmatpush.msra.mxu0 %v1842
    %3111 = vmatpush.msra.mxu0 %v1838
    %3112 = vmatpush.msra.mxu0 %v1834
    %3113 = vmatpush.msra.mxu0 %v1830
    %3114 = vmatpush.msra.mxu0 %v1826
    %3115 = vmatpush.msra.mxu0 %v1822
    %3116 = vmatpush.msra.mxu0 %v1818
    %3117 = vmatmul.f32.gmra.mxu0 %v3075
    %v3118 = vpop.f32.mrf.mxu0
    %v3119 = vadd.f32 0.0, %v3118
    %3120 = vdwg.mxu0
    %3121 = vmatpush.msra.mxu0 %v1879
    %3122 = vmatpush.msra.mxu0 %v1875
    %3123 = vmatpush.msra.mxu0 %v1871
    %3124 = vmatpush.msra.mxu0 %v1867
    %3125 = vmatpush.msra.mxu0 %v1863
    %3126 = vmatpush.msra.mxu0 %v1859
    %3127 = vmatpush.msra.mxu0 %v1855
    %3128 = vmatpush.msra.mxu0 %v1851
    %3129 = vmatpush.msra.mxu0 %v1847
    %3130 = vmatpush.msra.mxu0 %v1843
    %3131 = vmatpush.msra.mxu0 %v1839
    %3132 = vmatpush.msra.mxu0 %v1835
    %3133 = vmatpush.msra.mxu0 %v1831
    %3134 = vmatpush.msra.mxu0 %v1827
    %3135 = vmatpush.msra.mxu0 %v1823
    %3136 = vmatpush.msra.mxu0 %v1819
    %3137 = vmatmul.f32.gmra.mxu0 %v3075
    %v3138 = vpop.f32.mrf.mxu0
    %v3139 = vadd.f32 0.0, %v3138
    %3140 = vdwg.mxu0
    %3141 = vmatpush.msra.mxu0 %v1880
    %3142 = vmatpush.msra.mxu0 %v1876
    %3143 = vmatpush.msra.mxu0 %v1872
    %3144 = vmatpush.msra.mxu0 %v1868
    %3145 = vmatpush.msra.mxu0 %v1864
    %3146 = vmatpush.msra.mxu0 %v1860
    %3147 = vmatpush.msra.mxu0 %v1856
    %3148 = vmatpush.msra.mxu0 %v1852
    %3149 = vmatpush.msra.mxu0 %v1848
    %3150 = vmatpush.msra.mxu0 %v1844
    %3151 = vmatpush.msra.mxu0 %v1840
    %3152 = vmatpush.msra.mxu0 %v1836
    %3153 = vmatpush.msra.mxu0 %v1832
    %3154 = vmatpush.msra.mxu0 %v1828
    %3155 = vmatpush.msra.mxu0 %v1824
    %3156 = vmatpush.msra.mxu0 %v1820
    %3157 = vmatmul.f32.gmra.mxu0 %v3075
    %v3158 = vpop.f32.mrf.mxu0
    %v3159 = vadd.f32 0.0, %v3158
    %3160 = vdwg.mxu0
    %v3161 = vadd.f32 %v3077, %v3099
    %v3162 = vadd.f32 %v3078, %v3119
    %v3163 = vadd.f32 %v3079, %v3139
    %v3164 = vadd.f32 %v3080, %v3159
    %v3165 = vxor.u32 %v3161, 2147483648
    %v3166 = vxor.u32 %v3162, 2147483648
    %v3167 = vxor.u32 %v3163, 2147483648
    %v3168 = vmul.f32 %v3165, 1.442695
    %v3169 = vpow.pop %v3168
    %v3170 = vmul.f32 %v3166, 1.442695
    %v3171 = vpow.pop %v3170
    %v3172 = vmul.f32 %v3167, 1.442695
    %v3173 = vpow.pop %v3172
    %v3174 = vadd.f32 %v3169, 1.0
    %v3175 = vadd.f32 %v3171, 1.0
    %v3176 = vadd.f32 %v3173, 1.0
    %v3177 = vrcp.pop %v3174
    %v3178 = vmul.f32 %v3174, %v3177
    %v3179 = vsub.f32 1.0, %v3178
    %v3180 = vmul.f32 %v3177, %v3179
    %v3181 = vadd.f32 %v3177, %v3180
    %vm3182 = vweird.f32 %v3174
    %vm3183 = vweird.f32 %v3177
    %vm3184 = vmor %vm3182, %vm3183
    %v3185 = vsel %vm3184, %v3177, %v3181
    %v3186 = vand.u32 2147483647, %v3174
    %vm3187 = vcmp.eq.f32.partialorder %v3186, 8.507059e+37
    %v3188 = vand.u32 %v3174, 2147483648
    %v3189 = vor.u32 1.1754944e-38, %v3188
    %v3190 = vsel %vm3187, %v3189, %v3185
    %v3191 = vmul.f32 1.0, %v3190
    %v3192 = vrcp.pop %v3175
    %v3193 = vmul.f32 %v3175, %v3192
    %v3194 = vsub.f32 1.0, %v3193
    %v3195 = vmul.f32 %v3192, %v3194
    %v3196 = vadd.f32 %v3192, %v3195
    %vm3197 = vweird.f32 %v3175
    %vm3198 = vweird.f32 %v3192
    %vm3199 = vmor %vm3197, %vm3198
    %v3200 = vsel %vm3199, %v3192, %v3196
    %v3201 = vand.u32 2147483647, %v3175
    %vm3202 = vcmp.eq.f32.partialorder %v3201, 8.507059e+37
    %v3203 = vand.u32 %v3175, 2147483648
    %v3204 = vor.u32 1.1754944e-38, %v3203
    %v3205 = vsel %vm3202, %v3204, %v3200
    %v3206 = vmul.f32 1.0, %v3205
    %v3207 = vrcp.pop %v3176
    %v3208 = vmul.f32 %v3176, %v3207
    %v3209 = vsub.f32 1.0, %v3208
    %v3210 = vmul.f32 %v3207, %v3209
    %v3211 = vadd.f32 %v3207, %v3210
    %vm3212 = vweird.f32 %v3176
    %vm3213 = vweird.f32 %v3207
    %vm3214 = vmor %vm3212, %vm3213
    %v3215 = vsel %vm3214, %v3207, %v3211
    %v3216 = vand.u32 2147483647, %v3176
    %vm3217 = vcmp.eq.f32.partialorder %v3216, 8.507059e+37
    %v3218 = vand.u32 %v3176, 2147483648
    %v3219 = vor.u32 1.1754944e-38, %v3218
    %v3220 = vsel %vm3217, %v3219, %v3215
    %v3221 = vmul.f32 1.0, %v3220
    %v3222 = vtanh.pop %v3164
    %v3223 = vmul.f32 %v3206, %v3073
    %v3224 = vmul.f32 %v3191, %v3222
    %v3225 = vadd.f32 %v3223, %v3224
    %v3226 = vtanh.pop %v3225
    %v3227 = vmul.f32 %v3221, %v3226
    %3228 = vst [vmem:[%s1656] sm:$0xff] %v3227
    %v3229 = vld [vmem:[%s1660] sm:$0xff]
    %v3230 = vld [vmem:[%s1660 + $0x8] sm:$0xff]
    %v3231 = vld [vmem:[%s1660 + $0x10] sm:$0xff]
    %v3232 = vld [vmem:[%s1660 + $0x18] sm:$0xff]
    %3233 = vmatpush.msra.mxu0 %v1877
    %3234 = vmatpush.msra.mxu0 %v1873
    %3235 = vmatpush.msra.mxu0 %v1869
    %3236 = vmatpush.msra.mxu0 %v1865
    %3237 = vmatpush.msra.mxu0 %v1861
    %3238 = vmatpush.msra.mxu0 %v1857
    %3239 = vmatpush.msra.mxu0 %v1853
    %3240 = vmatpush.msra.mxu0 %v1849
    %3241 = vmatpush.msra.mxu0 %v1845
    %3242 = vmatpush.msra.mxu0 %v1841
    %3243 = vmatpush.msra.mxu0 %v1837
    %3244 = vmatpush.msra.mxu0 %v1833
    %3245 = vmatpush.msra.mxu0 %v1829
    %3246 = vmatpush.msra.mxu0 %v1825
    %3247 = vmatpush.msra.mxu0 %v1821
    %3248 = vmatpush.msra.mxu0 %v1817
    %3249 = vmatmul.f32.gmra.mxu0 %v3227
    %v3250 = vpop.f32.mrf.mxu0
    %v3251 = vadd.f32 0.0, %v3250
    %3252 = vdwg.mxu0
    %3253 = vmatpush.msra.mxu0 %v1878
    %3254 = vmatpush.msra.mxu0 %v1874
    %3255 = vmatpush.msra.mxu0 %v1870
    %3256 = vmatpush.msra.mxu0 %v1866
    %3257 = vmatpush.msra.mxu0 %v1862
    %3258 = vmatpush.msra.mxu0 %v1858
    %3259 = vmatpush.msra.mxu0 %v1854
    %3260 = vmatpush.msra.mxu0 %v1850
    %3261 = vmatpush.msra.mxu0 %v1846
    %3262 = vmatpush.msra.mxu0 %v1842
    %3263 = vmatpush.msra.mxu0 %v1838
    %3264 = vmatpush.msra.mxu0 %v1834
    %3265 = vmatpush.msra.mxu0 %v1830
    %3266 = vmatpush.msra.mxu0 %v1826
    %3267 = vmatpush.msra.mxu0 %v1822
    %3268 = vmatpush.msra.mxu0 %v1818
    %3269 = vmatmul.f32.gmra.mxu0 %v3227
    %v3270 = vpop.f32.mrf.mxu0
    %v3271 = vadd.f32 0.0, %v3270
    %3272 = vdwg.mxu0
    %3273 = vmatpush.msra.mxu0 %v1879
    %3274 = vmatpush.msra.mxu0 %v1875
    %3275 = vmatpush.msra.mxu0 %v1871
    %3276 = vmatpush.msra.mxu0 %v1867
    %3277 = vmatpush.msra.mxu0 %v1863
    %3278 = vmatpush.msra.mxu0 %v1859
    %3279 = vmatpush.msra.mxu0 %v1855
    %3280 = vmatpush.msra.mxu0 %v1851
    %3281 = vmatpush.msra.mxu0 %v1847
    %3282 = vmatpush.msra.mxu0 %v1843
    %3283 = vmatpush.msra.mxu0 %v1839
    %3284 = vmatpush.msra.mxu0 %v1835
    %3285 = vmatpush.msra.mxu0 %v1831
    %3286 = vmatpush.msra.mxu0 %v1827
    %3287 = vmatpush.msra.mxu0 %v1823
    %3288 = vmatpush.msra.mxu0 %v1819
    %3289 = vmatmul.f32.gmra.mxu0 %v3227
    %v3290 = vpop.f32.mrf.mxu0
    %v3291 = vadd.f32 0.0, %v3290
    %3292 = vdwg.mxu0
    %3293 = vmatpush.msra.mxu0 %v1880
    %3294 = vmatpush.msra.mxu0 %v1876
    %3295 = vmatpush.msra.mxu0 %v1872
    %3296 = vmatpush.msra.mxu0 %v1868
    %3297 = vmatpush.msra.mxu0 %v1864
    %3298 = vmatpush.msra.mxu0 %v1860
    %3299 = vmatpush.msra.mxu0 %v1856
    %3300 = vmatpush.msra.mxu0 %v1852
    %3301 = vmatpush.msra.mxu0 %v1848
    %3302 = vmatpush.msra.mxu0 %v1844
    %3303 = vmatpush.msra.mxu0 %v1840
    %3304 = vmatpush.msra.mxu0 %v1836
    %3305 = vmatpush.msra.mxu0 %v1832
    %3306 = vmatpush.msra.mxu0 %v1828
    %3307 = vmatpush.msra.mxu0 %v1824
    %3308 = vmatpush.msra.mxu0 %v1820
    %3309 = vmatmul.f32.gmra.mxu0 %v3227
    %v3310 = vpop.f32.mrf.mxu0
    %v3311 = vadd.f32 0.0, %v3310
    %3312 = vdwg.mxu0
    %v3313 = vadd.f32 %v3229, %v3251
    %v3314 = vadd.f32 %v3230, %v3271
    %v3315 = vadd.f32 %v3231, %v3291
    %v3316 = vadd.f32 %v3232, %v3311
    %v3317 = vxor.u32 %v3313, 2147483648
    %v3318 = vxor.u32 %v3314, 2147483648
    %v3319 = vxor.u32 %v3315, 2147483648
    %v3320 = vmul.f32 %v3317, 1.442695
    %v3321 = vpow.pop %v3320
    %v3322 = vmul.f32 %v3318, 1.442695
    %v3323 = vpow.pop %v3322
    %v3324 = vmul.f32 %v3319, 1.442695
    %v3325 = vpow.pop %v3324
    %v3326 = vadd.f32 %v3321, 1.0
    %v3327 = vadd.f32 %v3323, 1.0
    %v3328 = vadd.f32 %v3325, 1.0
    %v3329 = vrcp.pop %v3326
    %v3330 = vmul.f32 %v3326, %v3329
    %v3331 = vsub.f32 1.0, %v3330
    %v3332 = vmul.f32 %v3329, %v3331
    %v3333 = vadd.f32 %v3329, %v3332
    %vm3334 = vweird.f32 %v3326
    %vm3335 = vweird.f32 %v3329
    %vm3336 = vmor %vm3334, %vm3335
    %v3337 = vsel %vm3336, %v3329, %v3333
    %v3338 = vand.u32 2147483647, %v3326
    %vm3339 = vcmp.eq.f32.partialorder %v3338, 8.507059e+37
    %v3340 = vand.u32 %v3326, 2147483648
    %v3341 = vor.u32 1.1754944e-38, %v3340
    %v3342 = vsel %vm3339, %v3341, %v3337
    %v3343 = vmul.f32 1.0, %v3342
    %v3344 = vrcp.pop %v3327
    %v3345 = vmul.f32 %v3327, %v3344
    %v3346 = vsub.f32 1.0, %v3345
    %v3347 = vmul.f32 %v3344, %v3346
    %v3348 = vadd.f32 %v3344, %v3347
    %vm3349 = vweird.f32 %v3327
    %vm3350 = vweird.f32 %v3344
    %vm3351 = vmor %vm3349, %vm3350
    %v3352 = vsel %vm3351, %v3344, %v3348
    %v3353 = vand.u32 2147483647, %v3327
    %vm3354 = vcmp.eq.f32.partialorder %v3353, 8.507059e+37
    %v3355 = vand.u32 %v3327, 2147483648
    %v3356 = vor.u32 1.1754944e-38, %v3355
    %v3357 = vsel %vm3354, %v3356, %v3352
    %v3358 = vmul.f32 1.0, %v3357
    %v3359 = vrcp.pop %v3328
    %v3360 = vmul.f32 %v3328, %v3359
    %v3361 = vsub.f32 1.0, %v3360
    %v3362 = vmul.f32 %v3359, %v3361
    %v3363 = vadd.f32 %v3359, %v3362
    %vm3364 = vweird.f32 %v3328
    %vm3365 = vweird.f32 %v3359
    %vm3366 = vmor %vm3364, %vm3365
    %v3367 = vsel %vm3366, %v3359, %v3363
    %v3368 = vand.u32 2147483647, %v3328
    %vm3369 = vcmp.eq.f32.partialorder %v3368, 8.507059e+37
    %v3370 = vand.u32 %v3328, 2147483648
    %v3371 = vor.u32 1.1754944e-38, %v3370
    %v3372 = vsel %vm3369, %v3371, %v3367
    %v3373 = vmul.f32 1.0, %v3372
    %v3374 = vtanh.pop %v3316
    %v3375 = vmul.f32 %v3358, %v3225
    %v3376 = vmul.f32 %v3343, %v3374
    %v3377 = vadd.f32 %v3375, %v3376
    %v3378 = vtanh.pop %v3377
    %v3379 = vmul.f32 %v3373, %v3378
    %3380 = vst [vmem:[%s1812] sm:$0xff] %v3379
    %3381 = vst [vmem:[%s2161] sm:$0xff] %v3379
    %3382 = vst [vmem:[%s2163] sm:$0xff] %v3377
    %v3383 = vld [vmem:[#allocation2] sm:$0xff]
    %v3384 = vld [vmem:[#allocation2 + $0x8] sm:$0xff]
    %v3385 = vld [vmem:[#allocation2 + $0x10] sm:$0xff]
    %v3386 = vld [vmem:[#allocation2 + $0x18] sm:$0xff]
    %v3387 = vld [vmem:[#allocation2 + $0x20] sm:$0xff]
    %v3388 = vld [vmem:[#allocation2 + $0x28] sm:$0xff]
    %v3389 = vld [vmem:[#allocation2 + $0x30] sm:$0xff]
    %v3390 = vld [vmem:[#allocation2 + $0x38] sm:$0xff]
    %v3391 = vld [vmem:[#allocation9] sm:$0xff]
    %v3392 = vld [vmem:[#allocation9 + $0x8] sm:$0xff]
    %v3393 = vld [vmem:[#allocation9 + $0x10] sm:$0xff]
    %v3394 = vld [vmem:[#allocation9 + $0x18] sm:$0xff]
    %v3395 = vld [vmem:[#allocation9 + $0x20] sm:$0xff]
    %v3396 = vld [vmem:[#allocation9 + $0x28] sm:$0xff]
    %v3397 = vld [vmem:[#allocation9 + $0x30] sm:$0xff]
    %v3398 = vld [vmem:[#allocation9 + $0x38] sm:$0xff]
    %v3399 = vld [vmem:[#allocation9 + $0x40] sm:$0xff]
    %v3400 = vld [vmem:[#allocation9 + $0x48] sm:$0xff]
    %v3401 = vld [vmem:[#allocation9 + $0x50] sm:$0xff]
    %v3402 = vld [vmem:[#allocation9 + $0x58] sm:$0xff]
    %v3403 = vld [vmem:[#allocation9 + $0x60] sm:$0xff]
    %v3404 = vld [vmem:[#allocation9 + $0x68] sm:$0xff]
    %v3405 = vld [vmem:[#allocation9 + $0x70] sm:$0xff]
    %v3406 = vld [vmem:[#allocation9 + $0x78] sm:$0xff]
    %v3407 = vld [vmem:[%s6] sm:$0x1]
    %v3409 = vperm.slane %v3407, 0
    %3411 = vmatpush.msra.mxu0 %v3406
    %3412 = vmatpush.msra.mxu0 %v3405
    %3413 = vmatpush.msra.mxu0 %v3404
    %3414 = vmatpush.msra.mxu0 %v3403
    %3415 = vmatpush.msra.mxu0 %v3402
    %3416 = vmatpush.msra.mxu0 %v3401
    %3417 = vmatpush.msra.mxu0 %v3400
    %3418 = vmatpush.msra.mxu0 %v3399
    %3419 = vmatpush.msra.mxu0 %v3398
    %3420 = vmatpush.msra.mxu0 %v3397
    %3421 = vmatpush.msra.mxu0 %v3396
    %3422 = vmatpush.msra.mxu0 %v3395
    %3423 = vmatpush.msra.mxu0 %v3394
    %3424 = vmatpush.msra.mxu0 %v3393
    %3425 = vmatpush.msra.mxu0 %v3392
    %3426 = vmatpush.msra.mxu0 %v3391
    %3427 = vmatmul.f32.gmra.mxu0 %v3383
    %v3428 = vpop.f32.mrf.mxu0
    %v3429 = vadd.f32 %v3409, %v3428
    %3430 = vmatmul.f32.gmra.mxu0 %v3384
    %v3431 = vpop.f32.mrf.mxu0
    %v3432 = vadd.f32 %v3409, %v3431
    %3433 = vmatmul.f32.gmra.mxu0 %v3385
    %v3434 = vpop.f32.mrf.mxu0
    %v3435 = vadd.f32 %v3409, %v3434
    %3436 = vmatmul.f32.gmra.mxu0 %v3386
    %v3437 = vpop.f32.mrf.mxu0
    %v3438 = vadd.f32 %v3409, %v3437
    %3439 = vmatmul.f32.gmra.mxu0 %v3387
    %v3440 = vpop.f32.mrf.mxu0
    %v3441 = vadd.f32 %v3409, %v3440
    %3442 = vmatmul.f32.gmra.mxu0 %v3388
    %v3443 = vpop.f32.mrf.mxu0
    %v3444 = vadd.f32 %v3409, %v3443
    %3445 = vmatmul.f32.gmra.mxu0 %v3389
    %v3446 = vpop.f32.mrf.mxu0
    %v3447 = vadd.f32 %v3409, %v3446
    %3448 = vmatmul.f32.gmra.mxu0 %v3390
    %v3449 = vpop.f32.mrf.mxu0
    %v3450 = vadd.f32 %v3409, %v3449
    %3451 = vdwg.mxu0
    %3452 = vst [vmem:[%s7] sm:$0xff] %v3429
    %3453 = vst [vmem:[%s7 + $0x8] sm:$0xff] %v3432
    %3454 = vst [vmem:[%s7 + $0x10] sm:$0xff] %v3435
    %3455 = vst [vmem:[%s7 + $0x18] sm:$0xff] %v3438
    %3456 = vst [vmem:[%s7 + $0x20] sm:$0xff] %v3441
    %3457 = vst [vmem:[%s7 + $0x28] sm:$0xff] %v3444
    %3458 = vst [vmem:[%s7 + $0x30] sm:$0xff] %v3447
    %3459 = vst [vmem:[%s7 + $0x38] sm:$0xff] %v3450
    // Predicated region
    $region50: #{password_rnn_forward.1} parent=1 // pred_check
      _
    $region51: #{password_rnn_forward.1} parent=1 // pred_check_branch
      %3461 = sbr.rel (0) target = $region53
    $region52: #{password_rnn_forward.1} parent=1 // pred_region
      _
    $region53: #{password_rnn_forward.1} parent=1 // pred_fallthru
      _
    // Predicated region
    $region54: #{password_rnn_forward.1} parent=1 // pred_check
      _
    $region55: #{password_rnn_forward.1} parent=1 // pred_check_branch
      %3463 = sbr.rel (0) target = $region57
    $region56: #{password_rnn_forward.1} parent=1 // pred_region
      _
    $region57: #{password_rnn_forward.1} parent=1 // pred_fallthru
      _
    // Predicated region
    $region58: #{password_rnn_forward.1} parent=1 // pred_check
      _
    $region59: #{password_rnn_forward.1} parent=1 // pred_check_branch
      %3465 = sbr.rel (0) target = $region61
    $region60: #{password_rnn_forward.1} parent=1 // pred_region
      _
    $region61: #{password_rnn_forward.1} parent=1 // pred_fallthru
      _
    // Predicated region
    $region62: #{password_rnn_forward.1} parent=1 // pred_check
      _
    $region63: #{password_rnn_forward.1} parent=1 // pred_check_branch
      %3467 = sbr.rel (0) target = $region65
    $region64: #{password_rnn_forward.1} parent=1 // pred_region
      _
    $region65: #{password_rnn_forward.1} parent=1 // pred_fallthru
      _
    // Predicated region
    $region66: #{password_rnn_forward.1} parent=1 // pred_check
      _
    $region67: #{password_rnn_forward.1} parent=1 // pred_check_branch
      %3469 = sbr.rel (0) target = $region69
    $region68: #{password_rnn_forward.1} parent=1 // pred_region
      _
    $region69: #{password_rnn_forward.1} parent=1 // pred_fallthru
      _
    // Predicated region
    $region70: #{password_rnn_forward.1} parent=1 // pred_check
      _
    $region71: #{password_rnn_forward.1} parent=1 // pred_check_branch
      %3471 = sbr.rel (0) target = $region73
    $region72: #{password_rnn_forward.1} parent=1 // pred_region
      _
    $region73: #{password_rnn_forward.1} parent=1 // pred_fallthru
      _
    %3472 = vsyncpa [#allocation5], 1
    %3473 = vsyncpa [#allocation7], 1
    %3474 = vsyncpa [#allocation10], 1

</llo_original>
